<compile_context>
chip_gen: v7x
topology: tpu7x:2x2x1
jax: 0.10.0
libtpu: 0.0.40
codegen_flags: <defaults>
</compile_context>

<pallas_src>
import functools
import math

import jax
import jax.numpy as jnp
from jax import lax
from jax.experimental import pallas as pl
from jax.experimental.pallas import tpu as pltpu

# ---------------- small config (original sizes in comments) ----------------
B = 2            # batch
S = 8            # words per sentence                   (orig 56)
T = 6            # EEG time steps per word
D_IN = 32        # GRU input dim                        (orig 104)
H = 64           # GRU hidden                           (orig 512)
F = 2 * H        # in_feature = bi-GRU output dim       (orig 840; lane-dense 128 here)
NHEAD = 4        # encoder attention heads              (orig 8)
HEAD_DIM = F // NHEAD
DFF = 256        # encoder feed-forward dim             (orig 2048)
NLAYERS = 2      # encoder layers                       (orig 12)
C = 8            # conv1d_point out channels            (orig 64)
G = 128          # brain_projection dim                 (orig 768)
DBART = 128      # bart embedding dim                   (orig 1024)
VOCAB = 100
N_SUBJECTS = 30

# Number of row blocks along the leading "parallel" grid axis.  Keep 1 on
# v5e/v6e (single TensorCore, maximize matmul M); set to 2 on v7x so the two
# TensorCores each take half the sentences.
ROW_BLOCKS = 1

FP32 = jnp.float32
BF16 = jnp.bfloat16


# ---------------- helpers usable inside kernels ----------------
def _gelu(x):
    # exact (erf) GELU, matching torch.nn.GELU() / activation='gelu'
    return 0.5 * x * (1.0 + lax.erf(x * 0.7071067811865476))


def _layernorm(x, g, b, eps=1e-5):
    mu = jnp.mean(x, axis=-1, keepdims=True)
    var = jnp.mean((x - mu) ** 2, axis=-1, keepdims=True)
    return (x - mu) * lax.rsqrt(var + eps) * g + b


def _bf(x):
    return x.astype(BF16)


def _mm(x, w):
    # bf16 MXU matmul with f32 accumulation (w is stored bf16)
    return jnp.dot(_bf(x), w, preferred_element_type=FP32)


# ---------------- fused Pallas kernel ----------------
def fused_kernel(*refs, batch, seq, nhead, head_dim):
    (feat_ref, bias_ref, alpha_ref, beta_ref, pos_ref,
     fc_w1, fc_b1, fc_w2, fc_b2,
     wqkv, bqkv, wo, bo, ln1g, ln1b,
     wf1, bf1, wf2, bf2, ln2g, ln2b,
     lne_g, lne_b, bp_w1, bp_b1, bp_w2, bp_b2,
     g2b_w, g2b_b, g2b_g, g2b_bb,
     out_ref, acc_ref) = refs

    l = pl.program_id(1)
    n = batch * seq
    f = nhead * head_dim

    # ---- stage 1 (first layer step): fc ProjectionHead + subject affine + pos
    @pl.when(l == 0)
    def _pre():
        x0 = feat_ref[...]                                     # (n, F) f32
        proj = _mm(x0, fc_w1[...]) + fc_b1[...]
        y = _mm(_gelu(proj), fc_w2[...]) + fc_b2[...]
        enc = y + proj                                         # ProjectionHead
        acc_ref[...] = enc * alpha_ref[...] + beta_ref[...] + pos_ref[...]

    # ---- stage 2: transformer encoder layer `l` (weights streamed by BlockSpec)
    x = acc_ref[...]                                           # (n, F) f32

    # Fused Q/K/V projection: ONE (n,F)x(F,3F) MXU matmul; the 1/sqrt(head_dim)
    # scale is already folded into the Q columns of wqkv.
    qkv = _mm(x, wqkv[0]) + bqkv[0]                            # (n, 3F) f32

    def head_slice(base, h):                                   # (batch, seq, head_dim)
        return qkv[:, base + h * head_dim: base + (h + 1) * head_dim] \
            .reshape(batch, seq, head_dim)

    # Per-head score tensors (tiny (S,S) matmuls), softmax fused across heads.
    scores = []
    for h in range(nhead):                                     # static unroll
        qh = _bf(head_slice(0, h))
        kh = _bf(head_slice(f, h))
        scores.append(jnp.einsum('bqd,bkd->bqk', qh, kh,
                                 preferred_element_type=FP32))
    sc = jnp.concatenate(scores, axis=1) + bias_ref[...]       # (batch, H*S, S)
    sc = sc - jnp.max(sc, axis=-1, keepdims=True)
    p = jnp.exp(sc)
    p = p * pl.reciprocal(jnp.sum(p, axis=-1, keepdims=True), approx=True)

    # Per-head context, concatenated along lanes, then ONE (F,F) Wo matmul.
    ctxs = []
    for h in range(nhead):
        vh = _bf(head_slice(2 * f, h))
        ph = _bf(p[:, h * seq:(h + 1) * seq, :])
        ctxs.append(jnp.einsum('bqk,bkd->bqd', ph, vh,
                               preferred_element_type=FP32).reshape(n, head_dim))
    ctx = jnp.concatenate(ctxs, axis=-1)                       # (n, F)
    attn = _mm(ctx, wo[0]) + bo[0]

    y1 = _layernorm(x + attn, ln1g[0], ln1b[0])
    ffn = _mm(_gelu(_mm(y1, wf1[0]) + bf1[0]), wf2[0]) + bf2[0]
    acc_ref[...] = _layernorm(y1 + ffn, ln2g[0], ln2b[0])

    # ---- stage 3 (last layer step): final LN + brain_projection + gpt2->bart
    @pl.when(l == pl.num_programs(1) - 1)
    def _post():
        xb = _layernorm(acc_ref[...], lne_g[...], lne_b[...])
        pr = _mm(xb, bp_w1[...]) + bp_b1[...]
        gp = _mm(_gelu(pr), bp_w2[...]) + bp_b2[...] + pr      # ProjectionHead
        hb = _mm(gp, g2b_w[...]) + g2b_b[...]
        hb = _layernorm(hb, g2b_g[...], g2b_bb[...])
        out_ref[...] = _gelu(hb).astype(out_ref.dtype)


def fused_brain_encoder(feat2d, bias_keys, alpha2d, beta2d, pos2d, params,
                        row_blocks=ROW_BLOCKS):
    n, f = feat2d.shape
    b, _, s = bias_keys.shape
    assert n % row_blocks == 0 and b % row_blocks == 0
    rows_pb = n // row_blocks          # rows per grid row-block
    b_pb = b // row_blocks             # sentences per grid row-block

    enc = params["encoder"]
    fc = params["fc"]
    bp = params["brain_projection"]
    g2b = params["g2b"]

    row_in = [feat2d, bias_keys, alpha2d, beta2d, pos2d]
    pre_w = [fc["w1"], fc["b1"], fc["w2"], fc["b2"]]
    stacked = [enc[k] for k in ("wqkv", "bqkv", "wo", "bo",
                                "ln1_g", "ln1_b", "wf1", "bf1", "wf2", "bf2",
                                "ln2_g", "ln2_b")]
    post = [params["ln_emb_g"], params["ln_emb_b"],
            bp["w1"], bp["b1"], bp["w2"], bp["b2"],
            g2b["w"], g2b["b"], g2b["ln_g"], g2b["ln_b"]]

    def const_spec(a):
        nd = a.ndim
        return pl.BlockSpec(a.shape, lambda r, l, nd=nd: (0,) * nd)

    def layer_spec(a):
        nd = a.ndim
        return pl.BlockSpec((1,) + a.shape[1:],
                            lambda r, l, nd=nd: (l,) + (0,) * (nd - 1))

    def row_spec(a, rows):
        nd = a.ndim
        return pl.BlockSpec((rows,) + a.shape[1:],
                            lambda r, l, nd=nd: (r,) + (0,) * (nd - 1))

    row_rows = [rows_pb, b_pb, rows_pb, rows_pb, rows_pb]
    in_specs = ([row_spec(a, rw) for a, rw in zip(row_in, row_rows)]
                + [const_spec(a) for a in pre_w]
                + [layer_spec(a) for a in stacked]
                + [const_spec(a) for a in post])

    kernel = functools.partial(fused_kernel, batch=b_pb, seq=s,
                               nhead=NHEAD, head_dim=f // NHEAD)
    return pl.pallas_call(
        kernel,
        out_shape=jax.ShapeDtypeStruct((n, DBART), FP32),
        grid=(row_blocks, NLAYERS),
        in_specs=in_specs,
        out_specs=pl.BlockSpec((rows_pb, DBART), lambda r, l: (r, 0)),
        scratch_shapes=[pltpu.VMEM((rows_pb, f), FP32)],
        compiler_params=pltpu.CompilerParams(
            dimension_semantics=("parallel", "arbitrary"),
            vmem_limit_bytes=48 * 1024 * 1024),
    )(*row_in, *pre_w, *stacked, *post)


# ---------------- FeatureEmbedded: 2-layer bidirectional GRU (plain JAX) ----
def gru_layer_scan(x_tnd, w_ih, w_hh, b_ih, b_hh):
    # Input projection hoisted out of the scan: one batched matmul over T*N
    # rows; only the recurrent (N,H)@(H,3H) matmul stays sequential.
    gi_all = jnp.einsum('tnd,gd->tng', x_tnd, w_ih) + b_ih       # (T, N, 3H)
    n = x_tnd.shape[1]
    h_dim = w_hh.shape[1]

    def step(h, gi_t):
        gh = h @ w_hh.T + b_hh
        i_r, i_z, i_n = jnp.split(gi_t, 3, axis=-1)
        h_r, h_z, h_n = jnp.split(gh, 3, axis=-1)
        r = jax.nn.sigmoid(i_r + h_r)
        z = jax.nn.sigmoid(i_z + h_z)
        cand = jnp.tanh(i_n + r * h_n)
        h_new = (1.0 - z) * cand + z * h
        return h_new, h_new

    h0 = jnp.zeros((n, h_dim), x_tnd.dtype)
    _, hs = lax.scan(step, h0, gi_all)
    return hs                                                    # (T, N, H)


def feature_embedded_forward(gru_params, x, lengths):
    # x: (B, S, T, D_IN), lengths: (B, S) -> (B, S, 2H); reproduces reading
    # lstm_outs[len-1, i, :] of a packed bidirectional 2-layer GRU.
    (l1f, l1b), (l2f, l2b) = gru_params
    bb, ss, tt, dd = x.shape
    n = bb * ss
    x_ntd = x.reshape(n, tt, dd)
    lens = lengths.reshape(n)
    t_idx = jnp.arange(tt)
    rev_idx = jnp.clip(lens[:, None] - 1 - t_idx[None, :], 0, tt - 1)  # (N, T)

    def rev_gather(a_ntf):      # reverse each sequence's valid window
        return jnp.take_along_axis(a_ntf, rev_idx[:, :, None], axis=1)

    def to_tn(a):
        return jnp.swapaxes(a, 0, 1)

    # layer 1 (bidirectional)
    hf1 = to_tn(gru_layer_scan(to_tn(x_ntd), *l1f))               # (N, T, H)
    hb1r = to_tn(gru_layer_scan(to_tn(rev_gather(x_ntd)), *l1b))  # (N, T, H) rev time
    out1 = jnp.concatenate([hf1, rev_gather(hb1r)], axis=-1)      # (N, T, 2H)
    # layer 2 (bidirectional)
    hf2 = to_tn(gru_layer_scan(to_tn(out1), *l2f))                # (N, T, H)
    hb2r = gru_layer_scan(to_tn(rev_gather(out1)), *l2b)          # (T, N, H) rev time
    # packed-GRU output at t = len-1: fwd state after len steps, bwd after 1.
    fwd_last = jnp.take_along_axis(hf2, (lens - 1)[:, None, None], axis=1)[:, 0, :]
    bwd_first = hb2r[0]
    h_dim = l1f[1].shape[1]
    return jnp.concatenate([fwd_last, bwd_first], axis=-1).reshape(bb, ss, 2 * h_dim)


# ---------------- parameters ----------------
def init_params(key):
    kit = iter(jax.random.split(key, 64))

    def nrm(shape, dtype=FP32, scale=0.05):
        return (scale * jax.random.normal(next(kit), shape)).astype(dtype)

    def zeros(shape, dtype=FP32):
        return jnp.zeros(shape, dtype)

    def ones(shape, dtype=FP32):
        return jnp.ones(shape, dtype)

    def gru_dir(in_dim):  # (w_ih, w_hh, b_ih, b_hh); torch init sets biases to 0
        return (nrm((3 * H, in_dim)), nrm((3 * H, H)),
                zeros((3 * H,)), zeros((3 * H,)))

    gru = ((gru_dir(D_IN), gru_dir(D_IN)), (gru_dir(2 * H), gru_dir(2 * H)))

    def proj_head(din, dp):  # matmul weights bf16, biases f32
        return dict(w1=nrm((din, dp), BF16), b1=zeros((1, dp)),
                    w2=nrm((dp, dp), BF16), b2=zeros((1, dp)))

    # Encoder-layer weights stacked along a leading layer axis.  Q/K/V are
    # fused into a single head-major [Q | K | V] slab of shape (F, 3F); the
    # 1/sqrt(head_dim) attention scale is folded into the Q columns (a real
    # checkpoint conversion would also fold it into bq; biases are zero here).
    attn_scale = 1.0 / math.sqrt(HEAD_DIM)
    wq = nrm((NLAYERS, F, F))
    wk = nrm((NLAYERS, F, F))
    wv = nrm((NLAYERS, F, F))
    enc = dict(
        wqkv=jnp.concatenate([wq * attn_scale, wk, wv], axis=-1).astype(BF16),
        bqkv=zeros((NLAYERS, 1, 3 * F)),
        wo=nrm((NLAYERS, F, F), BF16),
        bo=zeros((NLAYERS, 1, F)),
        ln1_g=ones((NLAYERS, 1, F)), ln1_b=zeros((NLAYERS, 1, F)),
        wf1=nrm((NLAYERS, F, DFF), BF16), bf1=zeros((NLAYERS, 1, DFF)),
        wf2=nrm((NLAYERS, DFF, F), BF16), bf2=zeros((NLAYERS, 1, F)),
        ln2_g=ones((NLAYERS, 1, F)), ln2_b=zeros((NLAYERS, 1, F)),
    )

    return dict(
        gru=gru,
        fc=proj_head(F, F),
        conv_w=nrm((1, C)),                    # Conv1d(1, C, 1) weight (C,1,1) flattened
        conv_b=nrm((1, C)),
        subject_mats=nrm((N_SUBJECTS, C)),     # each nn.Parameter(randn(C,1)) flattened
        pos_embedding=nrm((1, S, F)),
        encoder=enc,
        ln_emb_g=ones((1, F)), ln_emb_b=zeros((1, F)),
        brain_projection=proj_head(F, G),
        g2b=dict(w=nrm((G, DBART), BF16), b=zeros((1, DBART)),
                 ln_g=ones((1, DBART)), ln_b=zeros((1, DBART))),
        bart_embed=nrm((VOCAB, DBART)),        # bart.model.encoder.embed_tokens (synthetic)
    )


# ---------------- full forward (stepone=True branch) ----------------
def brain_translator_forward(params, input_embeddings_batch, input_masks_invert,
                             lenghts_words, word_contents_batch, subject_ids):
    bb, ss = input_masks_invert.shape
    # FeatureEmbedded (GRU recurrence in plain JAX; see TODO above)
    feat = feature_embedded_forward(params["gru"], input_embeddings_batch,
                                    lenghts_words)
    feat2d = feat.reshape(bb * ss, F)          # fold batch into sublanes

    # conv1d_point(1->C,1) + per-subject (C,1) matmul == per-batch scalar affine:
    #   out = x * <subj, conv_w> + <subj, conv_b>
    subj = params["subject_mats"][subject_ids]                  # (B, C)
    alpha = jnp.sum(subj * params["conv_w"], axis=-1)           # (B,)
    beta = jnp.sum(subj * params["conv_b"], axis=-1)            # (B,)
    alpha2d = jnp.repeat(alpha, ss)[:, None]                    # (B*S, 1)
    beta2d = jnp.repeat(beta, ss)[:, None]
    pos2d = jnp.broadcast_to(params["pos_embedding"],
                             (bb, ss, F)).reshape(bb * ss, F)
    # Additive key-padding bias precomputed once (True = padding key).
    bias_keys = (input_masks_invert.astype(FP32) * (-1e30))[:, None, :]  # (B,1,S)

    brain_bart2d = fused_brain_encoder(feat2d, bias_keys, alpha2d, beta2d,
                                       pos2d, params)
    brain_bart = brain_bart2d.reshape(bb, ss, DBART)

    # stepone=True: MSE against bart.model.encoder.embed_tokens(word_contents)
    words_emb = params["bart_embed"][word_contents_batch]       # (B, S, DBART)
    loss = jnp.mean((brain_bart - words_emb) ** 2)
    return loss, brain_bart


if __name__ == "__main__":
    key = jax.random.PRNGKey(0)
    pkey, dkey = jax.random.split(key)
    params = init_params(pkey)

    k1, k2, k3 = jax.random.split(dkey, 3)
    input_embeddings_batch = jax.random.normal(k1, (B, S, T, D_IN), FP32)
    lenghts_words = jax.random.randint(k2, (B, S), 1, T + 1)
    input_masks_invert = jnp.zeros((B, S), bool).at[1, 6:].set(True)  # True = padding
    word_contents_batch = jax.random.randint(k3, (B, S), 0, VOCAB)
    subject_ids = jnp.array([0, 12], dtype=jnp.int32)                 # e.g. 'ZAB', 'YSD'

    fwd = jax.jit(brain_translator_forward)
    loss, brain_bart = fwd(params, input_embeddings_batch, input_masks_invert,
                           lenghts_words, word_contents_batch, subject_ids)
    jax.block_until_ready((loss, brain_bart))
    assert brain_bart.shape == (B, S, DBART)
    assert bool(jnp.isfinite(loss))
    print("KERNEL_OK")
</pallas_src>

<mosaic_0001>
module attributes {stable_mosaic.version = 11 : i64} {
  func.func @fused_kernel(%arg0: i32, %arg1: i32, %arg2: memref<16x128xf32, #tpu.memory_space<vmem>>, %arg3: memref<2x1x8xf32, #tpu.memory_space<vmem>>, %arg4: memref<16x1xf32, #tpu.memory_space<vmem>>, %arg5: memref<16x1xf32, #tpu.memory_space<vmem>>, %arg6: memref<16x128xf32, #tpu.memory_space<vmem>>, %arg7: memref<128x128xbf16, #tpu.memory_space<vmem>>, %arg8: memref<1x128xf32, #tpu.memory_space<vmem>>, %arg9: memref<128x128xbf16, #tpu.memory_space<vmem>>, %arg10: memref<1x128xf32, #tpu.memory_space<vmem>>, %arg11: memref<1x128x384xbf16, #tpu.memory_space<vmem>>, %arg12: memref<1x1x384xf32, #tpu.memory_space<vmem>>, %arg13: memref<1x128x128xbf16, #tpu.memory_space<vmem>>, %arg14: memref<1x1x128xf32, #tpu.memory_space<vmem>>, %arg15: memref<1x1x128xf32, #tpu.memory_space<vmem>>, %arg16: memref<1x1x128xf32, #tpu.memory_space<vmem>>, %arg17: memref<1x128x256xbf16, #tpu.memory_space<vmem>>, %arg18: memref<1x1x256xf32, #tpu.memory_space<vmem>>, %arg19: memref<1x256x128xbf16, #tpu.memory_space<vmem>>, %arg20: memref<1x1x128xf32, #tpu.memory_space<vmem>>, %arg21: memref<1x1x128xf32, #tpu.memory_space<vmem>>, %arg22: memref<1x1x128xf32, #tpu.memory_space<vmem>>, %arg23: memref<1x128xf32, #tpu.memory_space<vmem>>, %arg24: memref<1x128xf32, #tpu.memory_space<vmem>>, %arg25: memref<128x128xbf16, #tpu.memory_space<vmem>>, %arg26: memref<1x128xf32, #tpu.memory_space<vmem>>, %arg27: memref<128x128xbf16, #tpu.memory_space<vmem>>, %arg28: memref<1x128xf32, #tpu.memory_space<vmem>>, %arg29: memref<128x128xbf16, #tpu.memory_space<vmem>>, %arg30: memref<1x128xf32, #tpu.memory_space<vmem>>, %arg31: memref<1x128xf32, #tpu.memory_space<vmem>>, %arg32: memref<1x128xf32, #tpu.memory_space<vmem>>, %arg33: memref<16x128xf32, #tpu.memory_space<vmem>>, %arg34: memref<16x128xf32, #tpu.memory_space<vmem>>) attributes {dimension_semantics = [#tpu.dimension_semantics<parallel>, #tpu.dimension_semantics<arbitrary>], iteration_bounds = array<i64: 1, 2>, scalar_prefetch = 0 : i64, scratch_operands = 1 : i64, tpu.core_type = #tpu.core_type<tc>, window_params = [{transform_indices = @transform_0, window_bounds = array<i64: 16, 128>}, {transform_indices = @transform_1, window_bounds = array<i64: 2, 1, 8>}, {transform_indices = @transform_2, window_bounds = array<i64: 16, 1>}, {transform_indices = @transform_3, window_bounds = array<i64: 16, 1>}, {transform_indices = @transform_4, window_bounds = array<i64: 16, 128>}, {pipeline_mode = #tpu.pipeline_mode<synchronous>, transform_indices = @transform_5, window_bounds = array<i64: 128, 128>}, {pipeline_mode = #tpu.pipeline_mode<synchronous>, transform_indices = @transform_6, window_bounds = array<i64: 1, 128>}, {pipeline_mode = #tpu.pipeline_mode<synchronous>, transform_indices = @transform_7, window_bounds = array<i64: 128, 128>}, {pipeline_mode = #tpu.pipeline_mode<synchronous>, transform_indices = @transform_8, window_bounds = array<i64: 1, 128>}, {transform_indices = @transform_9, window_bounds = array<i64: 1, 128, 384>}, {transform_indices = @transform_10, window_bounds = array<i64: 1, 1, 384>}, {transform_indices = @transform_11, window_bounds = array<i64: 1, 128, 128>}, {transform_indices = @transform_12, window_bounds = array<i64: 1, 1, 128>}, {transform_indices = @transform_13, window_bounds = array<i64: 1, 1, 128>}, {transform_indices = @transform_14, window_bounds = array<i64: 1, 1, 128>}, {transform_indices = @transform_15, window_bounds = array<i64: 1, 128, 256>}, {transform_indices = @transform_16, window_bounds = array<i64: 1, 1, 256>}, {transform_indices = @transform_17, window_bounds = array<i64: 1, 256, 128>}, {transform_indices = @transform_18, window_bounds = array<i64: 1, 1, 128>}, {transform_indices = @transform_19, window_bounds = array<i64: 1, 1, 128>}, {transform_indices = @transform_20, window_bounds = array<i64: 1, 1, 128>}, {pipeline_mode = #tpu.pipeline_mode<synchronous>, transform_indices = @transform_21, window_bounds = array<i64: 1, 128>}, {pipeline_mode = #tpu.pipeline_mode<synchronous>, transform_indices = @transform_22, window_bounds = array<i64: 1, 128>}, {pipeline_mode = #tpu.pipeline_mode<synchronous>, transform_indices = @transform_23, window_bounds = array<i64: 128, 128>}, {pipeline_mode = #tpu.pipeline_mode<synchronous>, transform_indices = @transform_24, window_bounds = array<i64: 1, 128>}, {pipeline_mode = #tpu.pipeline_mode<synchronous>, transform_indices = @transform_25, window_bounds = array<i64: 128, 128>}, {pipeline_mode = #tpu.pipeline_mode<synchronous>, transform_indices = @transform_26, window_bounds = array<i64: 1, 128>}, {pipeline_mode = #tpu.pipeline_mode<synchronous>, transform_indices = @transform_27, window_bounds = array<i64: 128, 128>}, {pipeline_mode = #tpu.pipeline_mode<synchronous>, transform_indices = @transform_28, window_bounds = array<i64: 1, 128>}, {pipeline_mode = #tpu.pipeline_mode<synchronous>, transform_indices = @transform_29, window_bounds = array<i64: 1, 128>}, {pipeline_mode = #tpu.pipeline_mode<synchronous>, transform_indices = @transform_30, window_bounds = array<i64: 1, 128>}, {transform_indices = @transform_31, window_bounds = array<i64: 16, 128>}]} {
    %c0_i32 = arith.constant 0 : i32
    %0 = arith.cmpi eq, %arg1, %c0_i32 : i32
    %1 = arith.extui %0 : i1 to i32
    %c0_i32_0 = arith.constant 0 : i32
    %2 = arith.cmpi ne, %1, %c0_i32_0 : i32
    scf.if %2 {
      %c0_70 = arith.constant 0 : index
      %c0_71 = arith.constant 0 : index
      %173 = vector.load %arg2[%c0_70, %c0_71] : memref<16x128xf32, #tpu.memory_space<vmem>>, vector<16x128xf32>
      %c0_72 = arith.constant 0 : index
      %c0_73 = arith.constant 0 : index
      %174 = vector.load %arg7[%c0_72, %c0_73] : memref<128x128xbf16, #tpu.memory_space<vmem>>, vector<128x128xbf16>
      %175 = arith.truncf %173 : vector<16x128xf32> to vector<16x128xbf16>
      %cst_74 = arith.constant dense<0.000000e+00> : vector<16x128xf32>
      %176 = tpu.matmul %175, %174, %cst_74 {dimension_numbers = #tpu.dot_dimension_numbers<[1], [0], [0], [1], [0, 0, 1, 1], [], []>} : vector<16x128xbf16>, vector<128x128xbf16>, vector<16x128xf32> -> vector<16x128xf32>
      %c0_75 = arith.constant 0 : index
      %c0_76 = arith.constant 0 : index
      %177 = vector.load %arg8[%c0_75, %c0_76] : memref<1x128xf32, #tpu.memory_space<vmem>>, vector<1x128xf32>
      %178 = vector.broadcast %177 : vector<1x128xf32> to vector<16x128xf32>
      %179 = arith.addf %176, %178 : vector<16x128xf32>
      %cst_77 = arith.constant 5.000000e-01 : f32
      %180 = vector.broadcast %cst_77 : f32 to vector<16x128xf32>
      %181 = arith.mulf %180, %179 : vector<16x128xf32>
      %cst_78 = arith.constant 0.707106769 : f32
      %182 = vector.broadcast %cst_78 : f32 to vector<16x128xf32>
      %183 = arith.mulf %179, %182 : vector<16x128xf32>
      %184 = math.erf %183 : vector<16x128xf32>
      %cst_79 = arith.constant 1.000000e+00 : f32
      %185 = vector.broadcast %cst_79 : f32 to vector<16x128xf32>
      %186 = arith.addf %185, %184 : vector<16x128xf32>
      %187 = arith.mulf %181, %186 : vector<16x128xf32>
      %c0_80 = arith.constant 0 : index
      %c0_81 = arith.constant 0 : index
      %188 = vector.load %arg9[%c0_80, %c0_81] : memref<128x128xbf16, #tpu.memory_space<vmem>>, vector<128x128xbf16>
      %189 = arith.truncf %187 : vector<16x128xf32> to vector<16x128xbf16>
      %cst_82 = arith.constant dense<0.000000e+00> : vector<16x128xf32>
      %190 = tpu.matmul %189, %188, %cst_82 {dimension_numbers = #tpu.dot_dimension_numbers<[1], [0], [0], [1], [0, 0, 1, 1], [], []>} : vector<16x128xbf16>, vector<128x128xbf16>, vector<16x128xf32> -> vector<16x128xf32>
      %c0_83 = arith.constant 0 : index
      %c0_84 = arith.constant 0 : index
      %191 = vector.load %arg10[%c0_83, %c0_84] : memref<1x128xf32, #tpu.memory_space<vmem>>, vector<1x128xf32>
      %192 = vector.broadcast %191 : vector<1x128xf32> to vector<16x128xf32>
      %193 = arith.addf %190, %192 : vector<16x128xf32>
      %194 = arith.addf %193, %179 : vector<16x128xf32>
      %c0_85 = arith.constant 0 : index
      %c0_86 = arith.constant 0 : index
      %195 = vector.load %arg4[%c0_85, %c0_86] : memref<16x1xf32, #tpu.memory_space<vmem>>, vector<16x1xf32>
      %196 = vector.broadcast %195 : vector<16x1xf32> to vector<16x128xf32>
      %197 = arith.mulf %194, %196 : vector<16x128xf32>
      %c0_87 = arith.constant 0 : index
      %c0_88 = arith.constant 0 : index
      %198 = vector.load %arg5[%c0_87, %c0_88] : memref<16x1xf32, #tpu.memory_space<vmem>>, vector<16x1xf32>
      %199 = vector.broadcast %198 : vector<16x1xf32> to vector<16x128xf32>
      %200 = arith.addf %197, %199 : vector<16x128xf32>
      %c0_89 = arith.constant 0 : index
      %c0_90 = arith.constant 0 : index
      %201 = vector.load %arg6[%c0_89, %c0_90] : memref<16x128xf32, #tpu.memory_space<vmem>>, vector<16x128xf32>
      %202 = arith.addf %200, %201 : vector<16x128xf32>
      %c0_91 = arith.constant 0 : index
      %c0_92 = arith.constant 0 : index
      %203 = vector.load %arg34[%c0_91, %c0_92] : memref<16x128xf32, #tpu.memory_space<vmem>>, vector<16x128xf32>
      tpu.vector_store %arg34[%c0_91, %c0_92], %202 {strides = array<i32>} : memref<16x128xf32, #tpu.memory_space<vmem>>, vector<16x128xf32>,
    } else {
    }
    %c0 = arith.constant 0 : index
    %c0_1 = arith.constant 0 : index
    %3 = vector.load %arg34[%c0, %c0_1] : memref<16x128xf32, #tpu.memory_space<vmem>>, vector<16x128xf32>
    %c0_2 = arith.constant 0 : index
    %c0_3 = arith.constant 0 : index
    %c0_4 = arith.constant 0 : index
    %4 = vector.load %arg11[%c0_2, %c0_3, %c0_4] : memref<1x128x384xbf16, #tpu.memory_space<vmem>>, vector<1x128x384xbf16>
    %5 = vector.shape_cast %4 : vector<1x128x384xbf16> to vector<128x384xbf16>
    %6 = arith.truncf %3 : vector<16x128xf32> to vector<16x128xbf16>
    %cst = arith.constant dense<0.000000e+00> : vector<16x384xf32>
    %7 = tpu.matmul %6, %5, %cst {dimension_numbers = #tpu.dot_dimension_numbers<[1], [0], [0], [1], [0, 0, 1, 1], [], []>} : vector<16x128xbf16>, vector<128x384xbf16>, vector<16x384xf32> -> vector<16x384xf32>
    %c0_5 = arith.constant 0 : index
    %c0_6 = arith.constant 0 : index
    %c0_7 = arith.constant 0 : index
    %8 = vector.load %arg12[%c0_5, %c0_6, %c0_7] : memref<1x1x384xf32, #tpu.memory_space<vmem>>, vector<1x1x384xf32>
    %9 = vector.shape_cast %8 : vector<1x1x384xf32> to vector<1x384xf32>
    %10 = vector.broadcast %9 : vector<1x384xf32> to vector<16x384xf32>
    %11 = arith.addf %7, %10 : vector<16x384xf32>
    %12 = vector.extract_strided_slice %11 {offsets = [0, 0], sizes = [16, 32], strides = [1, 1]} : vector<16x384xf32> to vector<16x32xf32>
    %13 = vector.shape_cast %12 : vector<16x32xf32> to vector<2x8x32xf32>
    %14 = arith.truncf %13 : vector<2x8x32xf32> to vector<2x8x32xbf16>
    %15 = vector.extract_strided_slice %11 {offsets = [0, 128], sizes = [16, 32], strides = [1, 1]} : vector<16x384xf32> to vector<16x32xf32>
    %16 = vector.shape_cast %15 : vector<16x32xf32> to vector<2x8x32xf32>
    %17 = arith.truncf %16 : vector<2x8x32xf32> to vector<2x8x32xbf16>
    "tpu.trace_start"() <{level = 10 : i32, message = "bqd,bkd->bqk"}> : () -> ()
    %cst_8 = arith.constant dense<0.000000e+00> : vector<2x8x8xf32>
    %18 = tpu.matmul %14, %17, %cst_8 {dimension_numbers = #tpu.dot_dimension_numbers<[2], [2], [1], [1], [0, 0, 0, 1, 1, 1], [0], [0]>} : vector<2x8x32xbf16>, vector<2x8x32xbf16>, vector<2x8x8xf32> -> vector<2x8x8xf32>
    "tpu.trace_stop"() : () -> ()
    %19 = vector.extract_strided_slice %11 {offsets = [0, 32], sizes = [16, 32], strides = [1, 1]} : vector<16x384xf32> to vector<16x32xf32>
    %20 = vector.shape_cast %19 : vector<16x32xf32> to vector<2x8x32xf32>
    %21 = arith.truncf %20 : vector<2x8x32xf32> to vector<2x8x32xbf16>
    %22 = vector.extract_strided_slice %11 {offsets = [0, 160], sizes = [16, 32], strides = [1, 1]} : vector<16x384xf32> to vector<16x32xf32>
    %23 = vector.shape_cast %22 : vector<16x32xf32> to vector<2x8x32xf32>
    %24 = arith.truncf %23 : vector<2x8x32xf32> to vector<2x8x32xbf16>
    "tpu.trace_start"() <{level = 10 : i32, message = "bqd,bkd->bqk"}> : () -> ()
    %cst_9 = arith.constant dense<0.000000e+00> : vector<2x8x8xf32>
    %25 = tpu.matmul %21, %24, %cst_9 {dimension_numbers = #tpu.dot_dimension_numbers<[2], [2], [1], [1], [0, 0, 0, 1, 1, 1], [0], [0]>} : vector<2x8x32xbf16>, vector<2x8x32xbf16>, vector<2x8x8xf32> -> vector<2x8x8xf32>
    "tpu.trace_stop"() : () -> ()
    %26 = vector.extract_strided_slice %11 {offsets = [0, 64], sizes = [16, 32], strides = [1, 1]} : vector<16x384xf32> to vector<16x32xf32>
    %27 = vector.shape_cast %26 : vector<16x32xf32> to vector<2x8x32xf32>
    %28 = arith.truncf %27 : vector<2x8x32xf32> to vector<2x8x32xbf16>
    %29 = vector.extract_strided_slice %11 {offsets = [0, 192], sizes = [16, 32], strides = [1, 1]} : vector<16x384xf32> to vector<16x32xf32>
    %30 = vector.shape_cast %29 : vector<16x32xf32> to vector<2x8x32xf32>
    %31 = arith.truncf %30 : vector<2x8x32xf32> to vector<2x8x32xbf16>
    "tpu.trace_start"() <{level = 10 : i32, message = "bqd,bkd->bqk"}> : () -> ()
    %cst_10 = arith.constant dense<0.000000e+00> : vector<2x8x8xf32>
    %32 = tpu.matmul %28, %31, %cst_10 {dimension_numbers = #tpu.dot_dimension_numbers<[2], [2], [1], [1], [0, 0, 0, 1, 1, 1], [0], [0]>} : vector<2x8x32xbf16>, vector<2x8x32xbf16>, vector<2x8x8xf32> -> vector<2x8x8xf32>
    "tpu.trace_stop"() : () -> ()
    %33 = vector.extract_strided_slice %11 {offsets = [0, 96], sizes = [16, 32], strides = [1, 1]} : vector<16x384xf32> to vector<16x32xf32>
    %34 = vector.shape_cast %33 : vector<16x32xf32> to vector<2x8x32xf32>
    %35 = arith.truncf %34 : vector<2x8x32xf32> to vector<2x8x32xbf16>
    %36 = vector.extract_strided_slice %11 {offsets = [0, 224], sizes = [16, 32], strides = [1, 1]} : vector<16x384xf32> to vector<16x32xf32>
    %37 = vector.shape_cast %36 : vector<16x32xf32> to vector<2x8x32xf32>
    %38 = arith.truncf %37 : vector<2x8x32xf32> to vector<2x8x32xbf16>
    "tpu.trace_start"() <{level = 10 : i32, message = "bqd,bkd->bqk"}> : () -> ()
    %cst_11 = arith.constant dense<0.000000e+00> : vector<2x8x8xf32>
    %39 = tpu.matmul %35, %38, %cst_11 {dimension_numbers = #tpu.dot_dimension_numbers<[2], [2], [1], [1], [0, 0, 0, 1, 1, 1], [0], [0]>} : vector<2x8x32xbf16>, vector<2x8x32xbf16>, vector<2x8x8xf32> -> vector<2x8x8xf32>
    "tpu.trace_stop"() : () -> ()
    %40 = tpu.concatenate %18, %25, %32, %39 in 1 : vector<2x8x8xf32>, vector<2x8x8xf32>, vector<2x8x8xf32>, vector<2x8x8xf32> -> vector<2x32x8xf32>
    %c0_12 = arith.constant 0 : index
    %c0_13 = arith.constant 0 : index
    %c0_14 = arith.constant 0 : index
    %41 = vector.load %arg3[%c0_12, %c0_13, %c0_14] : memref<2x1x8xf32, #tpu.memory_space<vmem>>, vector<2x1x8xf32>
    %42 = vector.broadcast %41 : vector<2x1x8xf32> to vector<2x32x8xf32>
    %43 = arith.addf %40, %42 : vector<2x32x8xf32>
    %cst_15 = arith.constant dense<0xFF800000> : vector<2x32xf32>
    %44 = vector.multi_reduction <maximumf>, %43, %cst_15 [2] : vector<2x32x8xf32> to vector<2x32xf32>
    %45 = vector.shape_cast %44 : vector<2x32xf32> to vector<2x32x1xf32>
    %46 = vector.broadcast %45 : vector<2x32x1xf32> to vector<2x32x8xf32>
    %47 = arith.subf %43, %46 : vector<2x32x8xf32>
    %48 = math.exp %47 : vector<2x32x8xf32>
    %cst_16 = arith.constant dense<0.000000e+00> : vector<2x32xf32>
    %49 = vector.multi_reduction <add>, %48, %cst_16 [2] : vector<2x32x8xf32> to vector<2x32xf32>
    %50 = vector.shape_cast %49 : vector<2x32xf32> to vector<2x32x1xf32>
    %51 = tpu.reciprocal %50 {approx = true} : vector<2x32x1xf32> -> vector<2x32x1xf32>
    %52 = vector.broadcast %51 : vector<2x32x1xf32> to vector<2x32x8xf32>
    %53 = arith.mulf %48, %52 : vector<2x32x8xf32>
    %54 = vector.extract_strided_slice %11 {offsets = [0, 256], sizes = [16, 32], strides = [1, 1]} : vector<16x384xf32> to vector<16x32xf32>
    %55 = vector.shape_cast %54 : vector<16x32xf32> to vector<2x8x32xf32>
    %56 = arith.truncf %55 : vector<2x8x32xf32> to vector<2x8x32xbf16>
    %57 = vector.extract_strided_slice %53 {offsets = [0, 0, 0], sizes = [2, 8, 8], strides = [1, 1, 1]} : vector<2x32x8xf32> to vector<2x8x8xf32>
    %58 = arith.truncf %57 : vector<2x8x8xf32> to vector<2x8x8xbf16>
    "tpu.trace_start"() <{level = 10 : i32, message = "bqk,bkd->bqd"}> : () -> ()
    %cst_17 = arith.constant dense<0.000000e+00> : vector<2x8x32xf32>
    %59 = tpu.matmul %58, %56, %cst_17 {dimension_numbers = #tpu.dot_dimension_numbers<[2], [1], [1], [2], [0, 0, 0, 1, 1, 2], [0], [0]>} : vector<2x8x8xbf16>, vector<2x8x32xbf16>, vector<2x8x32xf32> -> vector<2x8x32xf32>
    "tpu.trace_stop"() : () -> ()
    %60 = vector.shape_cast %59 : vector<2x8x32xf32> to vector<16x32xf32>
    %61 = vector.extract_strided_slice %11 {offsets = [0, 288], sizes = [16, 32], strides = [1, 1]} : vector<16x384xf32> to vector<16x32xf32>
    %62 = vector.shape_cast %61 : vector<16x32xf32> to vector<2x8x32xf32>
    %63 = arith.truncf %62 : vector<2x8x32xf32> to vector<2x8x32xbf16>
    %64 = vector.extract_strided_slice %53 {offsets = [0, 8, 0], sizes = [2, 8, 8], strides = [1, 1, 1]} : vector<2x32x8xf32> to vector<2x8x8xf32>
    %65 = arith.truncf %64 : vector<2x8x8xf32> to vector<2x8x8xbf16>
    "tpu.trace_start"() <{level = 10 : i32, message = "bqk,bkd->bqd"}> : () -> ()
    %cst_18 = arith.constant dense<0.000000e+00> : vector<2x8x32xf32>
    %66 = tpu.matmul %65, %63, %cst_18 {dimension_numbers = #tpu.dot_dimension_numbers<[2], [1], [1], [2], [0, 0, 0, 1, 1, 2], [0], [0]>} : vector<2x8x8xbf16>, vector<2x8x32xbf16>, vector<2x8x32xf32> -> vector<2x8x32xf32>
    "tpu.trace_stop"() : () -> ()
    %67 = vector.shape_cast %66 : vector<2x8x32xf32> to vector<16x32xf32>
    %68 = vector.extract_strided_slice %11 {offsets = [0, 320], sizes = [16, 32], strides = [1, 1]} : vector<16x384xf32> to vector<16x32xf32>
    %69 = vector.shape_cast %68 : vector<16x32xf32> to vector<2x8x32xf32>
    %70 = arith.truncf %69 : vector<2x8x32xf32> to vector<2x8x32xbf16>
    %71 = vector.extract_strided_slice %53 {offsets = [0, 16, 0], sizes = [2, 8, 8], strides = [1, 1, 1]} : vector<2x32x8xf32> to vector<2x8x8xf32>
    %72 = arith.truncf %71 : vector<2x8x8xf32> to vector<2x8x8xbf16>
    "tpu.trace_start"() <{level = 10 : i32, message = "bqk,bkd->bqd"}> : () -> ()
    %cst_19 = arith.constant dense<0.000000e+00> : vector<2x8x32xf32>
    %73 = tpu.matmul %72, %70, %cst_19 {dimension_numbers = #tpu.dot_dimension_numbers<[2], [1], [1], [2], [0, 0, 0, 1, 1, 2], [0], [0]>} : vector<2x8x8xbf16>, vector<2x8x32xbf16>, vector<2x8x32xf32> -> vector<2x8x32xf32>
    "tpu.trace_stop"() : () -> ()
    %74 = vector.shape_cast %73 : vector<2x8x32xf32> to vector<16x32xf32>
    %75 = vector.extract_strided_slice %11 {offsets = [0, 352], sizes = [16, 32], strides = [1, 1]} : vector<16x384xf32> to vector<16x32xf32>
    %76 = vector.shape_cast %75 : vector<16x32xf32> to vector<2x8x32xf32>
    %77 = arith.truncf %76 : vector<2x8x32xf32> to vector<2x8x32xbf16>
    %78 = vector.extract_strided_slice %53 {offsets = [0, 24, 0], sizes = [2, 8, 8], strides = [1, 1, 1]} : vector<2x32x8xf32> to vector<2x8x8xf32>
    %79 = arith.truncf %78 : vector<2x8x8xf32> to vector<2x8x8xbf16>
    "tpu.trace_start"() <{level = 10 : i32, message = "bqk,bkd->bqd"}> : () -> ()
    %cst_20 = arith.constant dense<0.000000e+00> : vector<2x8x32xf32>
    %80 = tpu.matmul %79, %77, %cst_20 {dimension_numbers = #tpu.dot_dimension_numbers<[2], [1], [1], [2], [0, 0, 0, 1, 1, 2], [0], [0]>} : vector<2x8x8xbf16>, vector<2x8x32xbf16>, vector<2x8x32xf32> -> vector<2x8x32xf32>
    "tpu.trace_stop"() : () -> ()
    %81 = vector.shape_cast %80 : vector<2x8x32xf32> to vector<16x32xf32>
    %82 = tpu.concatenate %60, %67, %74, %81 in 1 : vector<16x32xf32>, vector<16x32xf32>, vector<16x32xf32>, vector<16x32xf32> -> vector<16x128xf32>
    %c0_21 = arith.constant 0 : index
    %c0_22 = arith.constant 0 : index
    %c0_23 = arith.constant 0 : index
    %83 = vector.load %arg13[%c0_21, %c0_22, %c0_23] : memref<1x128x128xbf16, #tpu.memory_space<vmem>>, vector<1x128x128xbf16>
    %84 = vector.shape_cast %83 : vector<1x128x128xbf16> to vector<128x128xbf16>
    %85 = arith.truncf %82 : vector<16x128xf32> to vector<16x128xbf16>
    %cst_24 = arith.constant dense<0.000000e+00> : vector<16x128xf32>
    %86 = tpu.matmul %85, %84, %cst_24 {dimension_numbers = #tpu.dot_dimension_numbers<[1], [0], [0], [1], [0, 0, 1, 1], [], []>} : vector<16x128xbf16>, vector<128x128xbf16>, vector<16x128xf32> -> vector<16x128xf32>
    %c0_25 = arith.constant 0 : index
    %c0_26 = arith.constant 0 : index
    %c0_27 = arith.constant 0 : index
    %87 = vector.load %arg14[%c0_25, %c0_26, %c0_27] : memref<1x1x128xf32, #tpu.memory_space<vmem>>, vector<1x1x128xf32>
    %88 = vector.shape_cast %87 : vector<1x1x128xf32> to vector<1x128xf32>
    %89 = vector.broadcast %88 : vector<1x128xf32> to vector<16x128xf32>
    %90 = arith.addf %86, %89 : vector<16x128xf32>
    %91 = arith.addf %3, %90 : vector<16x128xf32>
    %c0_28 = arith.constant 0 : index
    %c0_29 = arith.constant 0 : index
    %c0_30 = arith.constant 0 : index
    %92 = vector.load %arg15[%c0_28, %c0_29, %c0_30] : memref<1x1x128xf32, #tpu.memory_space<vmem>>, vector<1x1x128xf32>
    %93 = vector.shape_cast %92 : vector<1x1x128xf32> to vector<1x128xf32>
    %c0_31 = arith.constant 0 : index
    %c0_32 = arith.constant 0 : index
    %c0_33 = arith.constant 0 : index
    %94 = vector.load %arg16[%c0_31, %c0_32, %c0_33] : memref<1x1x128xf32, #tpu.memory_space<vmem>>, vector<1x1x128xf32>
    %95 = vector.shape_cast %94 : vector<1x1x128xf32> to vector<1x128xf32>
    %cst_34 = arith.constant dense<0.000000e+00> : vector<16xf32>
    %96 = vector.multi_reduction <add>, %91, %cst_34 [1] : vector<16x128xf32> to vector<16xf32>
    %97 = vector.shape_cast %96 : vector<16xf32> to vector<16x1xf32>
    %cst_35 = arith.constant 1.280000e+02 : f32
    %98 = vector.broadcast %cst_35 : f32 to vector<16x1xf32>
    %99 = arith.divf %97, %98 : vector<16x1xf32>
    %100 = vector.broadcast %99 : vector<16x1xf32> to vector<16x128xf32>
    %101 = arith.subf %91, %100 : vector<16x128xf32>
    %102 = arith.mulf %101, %101 : vector<16x128xf32>
    %cst_36 = arith.constant dense<0.000000e+00> : vector<16xf32>
    %103 = vector.multi_reduction <add>, %102, %cst_36 [1] : vector<16x128xf32> to vector<16xf32>
    %104 = vector.shape_cast %103 : vector<16xf32> to vector<16x1xf32>
    %cst_37 = arith.constant 1.280000e+02 : f32
    %105 = vector.broadcast %cst_37 : f32 to vector<16x1xf32>
    %106 = arith.divf %104, %105 : vector<16x1xf32>
    %107 = vector.broadcast %99 : vector<16x1xf32> to vector<16x128xf32>
    %108 = arith.subf %91, %107 : vector<16x128xf32>
    %cst_38 = arith.constant 9.99999974E-6 : f32
    %109 = vector.broadcast %cst_38 : f32 to vector<16x1xf32>
    %110 = arith.addf %106, %109 : vector<16x1xf32>
    %111 = math.rsqrt %110 : vector<16x1xf32>
    %112 = vector.broadcast %111 : vector<16x1xf32> to vector<16x128xf32>
    %113 = arith.mulf %108, %112 : vector<16x128xf32>
    %114 = vector.broadcast %93 : vector<1x128xf32> to vector<16x128xf32>
    %115 = arith.mulf %113, %114 : vector<16x128xf32>
    %116 = vector.broadcast %95 : vector<1x128xf32> to vector<16x128xf32>
    %117 = arith.addf %115, %116 : vector<16x128xf32>
    %c0_39 = arith.constant 0 : index
    %c0_40 = arith.constant 0 : index
    %c0_41 = arith.constant 0 : index
    %118 = vector.load %arg17[%c0_39, %c0_40, %c0_41] : memref<1x128x256xbf16, #tpu.memory_space<vmem>>, vector<1x128x256xbf16>
    %119 = vector.shape_cast %118 : vector<1x128x256xbf16> to vector<128x256xbf16>
    %120 = arith.truncf %117 : vector<16x128xf32> to vector<16x128xbf16>
    %cst_42 = arith.constant dense<0.000000e+00> : vector<16x256xf32>
    %121 = tpu.matmul %120, %119, %cst_42 {dimension_numbers = #tpu.dot_dimension_numbers<[1], [0], [0], [1], [0, 0, 1, 1], [], []>} : vector<16x128xbf16>, vector<128x256xbf16>, vector<16x256xf32> -> vector<16x256xf32>
    %c0_43 = arith.constant 0 : index
    %c0_44 = arith.constant 0 : index
    %c0_45 = arith.constant 0 : index
    %122 = vector.load %arg18[%c0_43, %c0_44, %c0_45] : memref<1x1x256xf32, #tpu.memory_space<vmem>>, vector<1x1x256xf32>
    %123 = vector.shape_cast %122 : vector<1x1x256xf32> to vector<1x256xf32>
    %124 = vector.broadcast %123 : vector<1x256xf32> to vector<16x256xf32>
    %125 = arith.addf %121, %124 : vector<16x256xf32>
    %cst_46 = arith.constant 5.000000e-01 : f32
    %126 = vector.broadcast %cst_46 : f32 to vector<16x256xf32>
    %127 = arith.mulf %126, %125 : vector<16x256xf32>
    %cst_47 = arith.constant 0.707106769 : f32
    %128 = vector.broadcast %cst_47 : f32 to vector<16x256xf32>
    %129 = arith.mulf %125, %128 : vector<16x256xf32>
    %130 = math.erf %129 : vector<16x256xf32>
    %cst_48 = arith.constant 1.000000e+00 : f32
    %131 = vector.broadcast %cst_48 : f32 to vector<16x256xf32>
    %132 = arith.addf %131, %130 : vector<16x256xf32>
    %133 = arith.mulf %127, %132 : vector<16x256xf32>
    %c0_49 = arith.constant 0 : index
    %c0_50 = arith.constant 0 : index
    %c0_51 = arith.constant 0 : index
    %134 = vector.load %arg19[%c0_49, %c0_50, %c0_51] : memref<1x256x128xbf16, #tpu.memory_space<vmem>>, vector<1x256x128xbf16>
    %135 = vector.shape_cast %134 : vector<1x256x128xbf16> to vector<256x128xbf16>
    %136 = arith.truncf %133 : vector<16x256xf32> to vector<16x256xbf16>
    %cst_52 = arith.constant dense<0.000000e+00> : vector<16x128xf32>
    %137 = tpu.matmul %136, %135, %cst_52 {dimension_numbers = #tpu.dot_dimension_numbers<[1], [0], [0], [1], [0, 0, 1, 1], [], []>} : vector<16x256xbf16>, vector<256x128xbf16>, vector<16x128xf32> -> vector<16x128xf32>
    %c0_53 = arith.constant 0 : index
    %c0_54 = arith.constant 0 : index
    %c0_55 = arith.constant 0 : index
    %138 = vector.load %arg20[%c0_53, %c0_54, %c0_55] : memref<1x1x128xf32, #tpu.memory_space<vmem>>, vector<1x1x128xf32>
    %139 = vector.shape_cast %138 : vector<1x1x128xf32> to vector<1x128xf32>
    %140 = vector.broadcast %139 : vector<1x128xf32> to vector<16x128xf32>
    %141 = arith.addf %137, %140 : vector<16x128xf32>
    %142 = arith.addf %117, %141 : vector<16x128xf32>
    %c0_56 = arith.constant 0 : index
    %c0_57 = arith.constant 0 : index
    %c0_58 = arith.constant 0 : index
    %143 = vector.load %arg21[%c0_56, %c0_57, %c0_58] : memref<1x1x128xf32, #tpu.memory_space<vmem>>, vector<1x1x128xf32>
    %144 = vector.shape_cast %143 : vector<1x1x128xf32> to vector<1x128xf32>
    %c0_59 = arith.constant 0 : index
    %c0_60 = arith.constant 0 : index
    %c0_61 = arith.constant 0 : index
    %145 = vector.load %arg22[%c0_59, %c0_60, %c0_61] : memref<1x1x128xf32, #tpu.memory_space<vmem>>, vector<1x1x128xf32>
    %146 = vector.shape_cast %145 : vector<1x1x128xf32> to vector<1x128xf32>
    %cst_62 = arith.constant dense<0.000000e+00> : vector<16xf32>
    %147 = vector.multi_reduction <add>, %142, %cst_62 [1] : vector<16x128xf32> to vector<16xf32>
    %148 = vector.shape_cast %147 : vector<16xf32> to vector<16x1xf32>
    %cst_63 = arith.constant 1.280000e+02 : f32
    %149 = vector.broadcast %cst_63 : f32 to vector<16x1xf32>
    %150 = arith.divf %148, %149 : vector<16x1xf32>
    %151 = vector.broadcast %150 : vector<16x1xf32> to vector<16x128xf32>
    %152 = arith.subf %142, %151 : vector<16x128xf32>
    %153 = arith.mulf %152, %152 : vector<16x128xf32>
    %cst_64 = arith.constant dense<0.000000e+00> : vector<16xf32>
    %154 = vector.multi_reduction <add>, %153, %cst_64 [1] : vector<16x128xf32> to vector<16xf32>
    %155 = vector.shape_cast %154 : vector<16xf32> to vector<16x1xf32>
    %cst_65 = arith.constant 1.280000e+02 : f32
    %156 = vector.broadcast %cst_65 : f32 to vector<16x1xf32>
    %157 = arith.divf %155, %156 : vector<16x1xf32>
    %158 = vector.broadcast %150 : vector<16x1xf32> to vector<16x128xf32>
    %159 = arith.subf %142, %158 : vector<16x128xf32>
    %cst_66 = arith.constant 9.99999974E-6 : f32
    %160 = vector.broadcast %cst_66 : f32 to vector<16x1xf32>
    %161 = arith.addf %157, %160 : vector<16x1xf32>
    %162 = math.rsqrt %161 : vector<16x1xf32>
    %163 = vector.broadcast %162 : vector<16x1xf32> to vector<16x128xf32>
    %164 = arith.mulf %159, %163 : vector<16x128xf32>
    %165 = vector.broadcast %144 : vector<1x128xf32> to vector<16x128xf32>
    %166 = arith.mulf %164, %165 : vector<16x128xf32>
    %167 = vector.broadcast %146 : vector<1x128xf32> to vector<16x128xf32>
    %168 = arith.addf %166, %167 : vector<16x128xf32>
    %c0_67 = arith.constant 0 : index
    %c0_68 = arith.constant 0 : index
    %169 = vector.load %arg34[%c0_67, %c0_68] : memref<16x128xf32, #tpu.memory_space<vmem>>, vector<16x128xf32>
    tpu.vector_store %arg34[%c0_67, %c0_68], %168 {strides = array<i32>} : memref<16x128xf32, #tpu.memory_space<vmem>>, vector<16x128xf32>,
    %c1_i32 = arith.constant 1 : i32
    %170 = arith.cmpi eq, %arg1, %c1_i32 : i32
    %171 = arith.extui %170 : i1 to i32
    %c0_i32_69 = arith.constant 0 : i32
    %172 = arith.cmpi ne, %171, %c0_i32_69 : i32
    scf.if %172 {
      %c0_70 = arith.constant 0 : index
      %c0_71 = arith.constant 0 : index
      %173 = vector.load %arg34[%c0_70, %c0_71] : memref<16x128xf32, #tpu.memory_space<vmem>>, vector<16x128xf32>
      %c0_72 = arith.constant 0 : index
      %c0_73 = arith.constant 0 : index
      %174 = vector.load %arg23[%c0_72, %c0_73] : memref<1x128xf32, #tpu.memory_space<vmem>>, vector<1x128xf32>
      %c0_74 = arith.constant 0 : index
      %c0_75 = arith.constant 0 : index
      %175 = vector.load %arg24[%c0_74, %c0_75] : memref<1x128xf32, #tpu.memory_space<vmem>>, vector<1x128xf32>
      %cst_76 = arith.constant dense<0.000000e+00> : vector<16xf32>
      %176 = vector.multi_reduction <add>, %173, %cst_76 [1] : vector<16x128xf32> to vector<16xf32>
      %177 = vector.shape_cast %176 : vector<16xf32> to vector<16x1xf32>
      %cst_77 = arith.constant 1.280000e+02 : f32
      %178 = vector.broadcast %cst_77 : f32 to vector<16x1xf32>
      %179 = arith.divf %177, %178 : vector<16x1xf32>
      %180 = vector.broadcast %179 : vector<16x1xf32> to vector<16x128xf32>
      %181 = arith.subf %173, %180 : vector<16x128xf32>
      %182 = arith.mulf %181, %181 : vector<16x128xf32>
      %cst_78 = arith.constant dense<0.000000e+00> : vector<16xf32>
      %183 = vector.multi_reduction <add>, %182, %cst_78 [1] : vector<16x128xf32> to vector<16xf32>
      %184 = vector.shape_cast %183 : vector<16xf32> to vector<16x1xf32>
      %cst_79 = arith.constant 1.280000e+02 : f32
      %185 = vector.broadcast %cst_79 : f32 to vector<16x1xf32>
      %186 = arith.divf %184, %185 : vector<16x1xf32>
      %187 = vector.broadcast %179 : vector<16x1xf32> to vector<16x128xf32>
      %188 = arith.subf %173, %187 : vector<16x128xf32>
      %cst_80 = arith.constant 9.99999974E-6 : f32
      %189 = vector.broadcast %cst_80 : f32 to vector<16x1xf32>
      %190 = arith.addf %186, %189 : vector<16x1xf32>
      %191 = math.rsqrt %190 : vector<16x1xf32>
      %192 = vector.broadcast %191 : vector<16x1xf32> to vector<16x128xf32>
      %193 = arith.mulf %188, %192 : vector<16x128xf32>
      %194 = vector.broadcast %174 : vector<1x128xf32> to vector<16x128xf32>
      %195 = arith.mulf %193, %194 : vector<16x128xf32>
      %196 = vector.broadcast %175 : vector<1x128xf32> to vector<16x128xf32>
      %197 = arith.addf %195, %196 : vector<16x128xf32>
      %c0_81 = arith.constant 0 : index
      %c0_82 = arith.constant 0 : index
      %198 = vector.load %arg25[%c0_81, %c0_82] : memref<128x128xbf16, #tpu.memory_space<vmem>>, vector<128x128xbf16>
      %199 = arith.truncf %197 : vector<16x128xf32> to vector<16x128xbf16>
      %cst_83 = arith.constant dense<0.000000e+00> : vector<16x128xf32>
      %200 = tpu.matmul %199, %198, %cst_83 {dimension_numbers = #tpu.dot_dimension_numbers<[1], [0], [0], [1], [0, 0, 1, 1], [], []>} : vector<16x128xbf16>, vector<128x128xbf16>, vector<16x128xf32> -> vector<16x128xf32>
      %c0_84 = arith.constant 0 : index
      %c0_85 = arith.constant 0 : index
      %201 = vector.load %arg26[%c0_84, %c0_85] : memref<1x128xf32, #tpu.memory_space<vmem>>, vector<1x128xf32>
      %202 = vector.broadcast %201 : vector<1x128xf32> to vector<16x128xf32>
      %203 = arith.addf %200, %202 : vector<16x128xf32>
      %cst_86 = arith.constant 5.000000e-01 : f32
      %204 = vector.broadcast %cst_86 : f32 to vector<16x128xf32>
      %205 = arith.mulf %204, %203 : vector<16x128xf32>
      %cst_87 = arith.constant 0.707106769 : f32
      %206 = vector.broadcast %cst_87 : f32 to vector<16x128xf32>
      %207 = arith.mulf %203, %206 : vector<16x128xf32>
      %208 = math.erf %207 : vector<16x128xf32>
      %cst_88 = arith.constant 1.000000e+00 : f32
      %209 = vector.broadcast %cst_88 : f32 to vector<16x128xf32>
      %210 = arith.addf %209, %208 : vector<16x128xf32>
      %211 = arith.mulf %205, %210 : vector<16x128xf32>
      %c0_89 = arith.constant 0 : index
      %c0_90 = arith.constant 0 : index
      %212 = vector.load %arg27[%c0_89, %c0_90] : memref<128x128xbf16, #tpu.memory_space<vmem>>, vector<128x128xbf16>
      %213 = arith.truncf %211 : vector<16x128xf32> to vector<16x128xbf16>
      %cst_91 = arith.constant dense<0.000000e+00> : vector<16x128xf32>
      %214 = tpu.matmul %213, %212, %cst_91 {dimension_numbers = #tpu.dot_dimension_numbers<[1], [0], [0], [1], [0, 0, 1, 1], [], []>} : vector<16x128xbf16>, vector<128x128xbf16>, vector<16x128xf32> -> vector<16x128xf32>
      %c0_92 = arith.constant 0 : index
      %c0_93 = arith.constant 0 : index
      %215 = vector.load %arg28[%c0_92, %c0_93] : memref<1x128xf32, #tpu.memory_space<vmem>>, vector<1x128xf32>
      %216 = vector.broadcast %215 : vector<1x128xf32> to vector<16x128xf32>
      %217 = arith.addf %214, %216 : vector<16x128xf32>
      %218 = arith.addf %217, %203 : vector<16x128xf32>
      %c0_94 = arith.constant 0 : index
      %c0_95 = arith.constant 0 : index
      %219 = vector.load %arg29[%c0_94, %c0_95] : memref<128x128xbf16, #tpu.memory_space<vmem>>, vector<128x128xbf16>
      %220 = arith.truncf %218 : vector<16x128xf32> to vector<16x128xbf16>
      %cst_96 = arith.constant dense<0.000000e+00> : vector<16x128xf32>
      %221 = tpu.matmul %220, %219, %cst_96 {dimension_numbers = #tpu.dot_dimension_numbers<[1], [0], [0], [1], [0, 0, 1, 1], [], []>} : vector<16x128xbf16>, vector<128x128xbf16>, vector<16x128xf32> -> vector<16x128xf32>
      %c0_97 = arith.constant 0 : index
      %c0_98 = arith.constant 0 : index
      %222 = vector.load %arg30[%c0_97, %c0_98] : memref<1x128xf32, #tpu.memory_space<vmem>>, vector<1x128xf32>
      %223 = vector.broadcast %222 : vector<1x128xf32> to vector<16x128xf32>
      %224 = arith.addf %221, %223 : vector<16x128xf32>
      %c0_99 = arith.constant 0 : index
      %c0_100 = arith.constant 0 : index
      %225 = vector.load %arg31[%c0_99, %c0_100] : memref<1x128xf32, #tpu.memory_space<vmem>>, vector<1x128xf32>
      %c0_101 = arith.constant 0 : index
      %c0_102 = arith.constant 0 : index
      %226 = vector.load %arg32[%c0_101, %c0_102] : memref<1x128xf32, #tpu.memory_space<vmem>>, vector<1x128xf32>
      %cst_103 = arith.constant dense<0.000000e+00> : vector<16xf32>
      %227 = vector.multi_reduction <add>, %224, %cst_103 [1] : vector<16x128xf32> to vector<16xf32>
      %228 = vector.shape_cast %227 : vector<16xf32> to vector<16x1xf32>
      %cst_104 = arith.constant 1.280000e+02 : f32
      %229 = vector.broadcast %cst_104 : f32 to vector<16x1xf32>
      %230 = arith.divf %228, %229 : vector<16x1xf32>
      %231 = vector.broadcast %230 : vector<16x1xf32> to vector<16x128xf32>
      %232 = arith.subf %224, %231 : vector<16x128xf32>
      %233 = arith.mulf %232, %232 : vector<16x128xf32>
      %cst_105 = arith.constant dense<0.000000e+00> : vector<16xf32>
      %234 = vector.multi_reduction <add>, %233, %cst_105 [1] : vector<16x128xf32> to vector<16xf32>
      %235 = vector.shape_cast %234 : vector<16xf32> to vector<16x1xf32>
      %cst_106 = arith.constant 1.280000e+02 : f32
      %236 = vector.broadcast %cst_106 : f32 to vector<16x1xf32>
      %237 = arith.divf %235, %236 : vector<16x1xf32>
      %238 = vector.broadcast %230 : vector<16x1xf32> to vector<16x128xf32>
      %239 = arith.subf %224, %238 : vector<16x128xf32>
      %cst_107 = arith.constant 9.99999974E-6 : f32
      %240 = vector.broadcast %cst_107 : f32 to vector<16x1xf32>
      %241 = arith.addf %237, %240 : vector<16x1xf32>
      %242 = math.rsqrt %241 : vector<16x1xf32>
      %243 = vector.broadcast %242 : vector<16x1xf32> to vector<16x128xf32>
      %244 = arith.mulf %239, %243 : vector<16x128xf32>
      %245 = vector.broadcast %225 : vector<1x128xf32> to vector<16x128xf32>
      %246 = arith.mulf %244, %245 : vector<16x128xf32>
      %247 = vector.broadcast %226 : vector<1x128xf32> to vector<16x128xf32>
      %248 = arith.addf %246, %247 : vector<16x128xf32>
      %cst_108 = arith.constant 5.000000e-01 : f32
      %249 = vector.broadcast %cst_108 : f32 to vector<16x128xf32>
      %250 = arith.mulf %249, %248 : vector<16x128xf32>
      %cst_109 = arith.constant 0.707106769 : f32
      %251 = vector.broadcast %cst_109 : f32 to vector<16x128xf32>
      %252 = arith.mulf %248, %251 : vector<16x128xf32>
      %253 = math.erf %252 : vector<16x128xf32>
      %cst_110 = arith.constant 1.000000e+00 : f32
      %254 = vector.broadcast %cst_110 : f32 to vector<16x128xf32>
      %255 = arith.addf %254, %253 : vector<16x128xf32>
      %256 = arith.mulf %250, %255 : vector<16x128xf32>
      %c0_111 = arith.constant 0 : index
      %c0_112 = arith.constant 0 : index
      %257 = vector.load %arg33[%c0_111, %c0_112] : memref<16x128xf32, #tpu.memory_space<vmem>>, vector<16x128xf32>
      tpu.vector_store %arg33[%c0_111, %c0_112], %256 {strides = array<i32>} : memref<16x128xf32, #tpu.memory_space<vmem>>, vector<16x128xf32>,
    } else {
    }
    return
  }
  func.func @transform_0(%arg0: i32, %arg1: i32) -> (i32, i32) {
    %c0_i32 = arith.constant 0 : i32
    %c0_i32_0 = arith.constant 0 : i32
    return %arg0, %c0_i32 : i32, i32
  }
  func.func @transform_1(%arg0: i32, %arg1: i32) -> (i32, i32, i32) {
    %c0_i32 = arith.constant 0 : i32
    %c0_i32_0 = arith.constant 0 : i32
    %c0_i32_1 = arith.constant 0 : i32
    return %arg0, %c0_i32, %c0_i32_0 : i32, i32, i32
  }
  func.func @transform_2(%arg0: i32, %arg1: i32) -> (i32, i32) {
    %c0_i32 = arith.constant 0 : i32
    %c0_i32_0 = arith.constant 0 : i32
    return %arg0, %c0_i32 : i32, i32
  }
  func.func @transform_3(%arg0: i32, %arg1: i32) -> (i32, i32) {
    %c0_i32 = arith.constant 0 : i32
    %c0_i32_0 = arith.constant 0 : i32
    return %arg0, %c0_i32 : i32, i32
  }
  func.func @transform_4(%arg0: i32, %arg1: i32) -> (i32, i32) {
    %c0_i32 = arith.constant 0 : i32
    %c0_i32_0 = arith.constant 0 : i32
    return %arg0, %c0_i32 : i32, i32
  }
  func.func @transform_5(%arg0: i32, %arg1: i32) -> (i32, i32) {
    %c0_i32 = arith.constant 0 : i32
    %c0_i32_0 = arith.constant 0 : i32
    %c0_i32_1 = arith.constant 0 : i32
    return %c0_i32, %c0_i32_0 : i32, i32
  }
  func.func @transform_6(%arg0: i32, %arg1: i32) -> (i32, i32) {
    %c0_i32 = arith.constant 0 : i32
    %c0_i32_0 = arith.constant 0 : i32
    %c0_i32_1 = arith.constant 0 : i32
    return %c0_i32, %c0_i32_0 : i32, i32
  }
  func.func @transform_7(%arg0: i32, %arg1: i32) -> (i32, i32) {
    %c0_i32 = arith.constant 0 : i32
    %c0_i32_0 = arith.constant 0 : i32
    %c0_i32_1 = arith.constant 0 : i32
    return %c0_i32, %c0_i32_0 : i32, i32
  }
  func.func @transform_8(%arg0: i32, %arg1: i32) -> (i32, i32) {
    %c0_i32 = arith.constant 0 : i32
    %c0_i32_0 = arith.constant 0 : i32
    %c0_i32_1 = arith.constant 0 : i32
    return %c0_i32, %c0_i32_0 : i32, i32
  }
  func.func @transform_9(%arg0: i32, %arg1: i32) -> (i32, i32, i32) {
    %c0_i32 = arith.constant 0 : i32
    %c0_i32_0 = arith.constant 0 : i32
    %c0_i32_1 = arith.constant 0 : i32
    return %arg1, %c0_i32, %c0_i32_0 : i32, i32, i32
  }
  func.func @transform_10(%arg0: i32, %arg1: i32) -> (i32, i32, i32) {
    %c0_i32 = arith.constant 0 : i32
    %c0_i32_0 = arith.constant 0 : i32
    %c0_i32_1 = arith.constant 0 : i32
    return %arg1, %c0_i32, %c0_i32_0 : i32, i32, i32
  }
  func.func @transform_11(%arg0: i32, %arg1: i32) -> (i32, i32, i32) {
    %c0_i32 = arith.constant 0 : i32
    %c0_i32_0 = arith.constant 0 : i32
    %c0_i32_1 = arith.constant 0 : i32
    return %arg1, %c0_i32, %c0_i32_0 : i32, i32, i32
  }
  func.func @transform_12(%arg0: i32, %arg1: i32) -> (i32, i32, i32) {
    %c0_i32 = arith.constant 0 : i32
    %c0_i32_0 = arith.constant 0 : i32
    %c0_i32_1 = arith.constant 0 : i32
    return %arg1, %c0_i32, %c0_i32_0 : i32, i32, i32
  }
  func.func @transform_13(%arg0: i32, %arg1: i32) -> (i32, i32, i32) {
    %c0_i32 = arith.constant 0 : i32
    %c0_i32_0 = arith.constant 0 : i32
    %c0_i32_1 = arith.constant 0 : i32
    return %arg1, %c0_i32, %c0_i32_0 : i32, i32, i32
  }
  func.func @transform_14(%arg0: i32, %arg1: i32) -> (i32, i32, i32) {
    %c0_i32 = arith.constant 0 : i32
    %c0_i32_0 = arith.constant 0 : i32
    %c0_i32_1 = arith.constant 0 : i32
    return %arg1, %c0_i32, %c0_i32_0 : i32, i32, i32
  }
  func.func @transform_15(%arg0: i32, %arg1: i32) -> (i32, i32, i32) {
    %c0_i32 = arith.constant 0 : i32
    %c0_i32_0 = arith.constant 0 : i32
    %c0_i32_1 = arith.constant 0 : i32
    return %arg1, %c0_i32, %c0_i32_0 : i32, i32, i32
  }
  func.func @transform_16(%arg0: i32, %arg1: i32) -> (i32, i32, i32) {
    %c0_i32 = arith.constant 0 : i32
    %c0_i32_0 = arith.constant 0 : i32
    %c0_i32_1 = arith.constant 0 : i32
    return %arg1, %c0_i32, %c0_i32_0 : i32, i32, i32
  }
  func.func @transform_17(%arg0: i32, %arg1: i32) -> (i32, i32, i32) {
    %c0_i32 = arith.constant 0 : i32
    %c0_i32_0 = arith.constant 0 : i32
    %c0_i32_1 = arith.constant 0 : i32
    return %arg1, %c0_i32, %c0_i32_0 : i32, i32, i32
  }
  func.func @transform_18(%arg0: i32, %arg1: i32) -> (i32, i32, i32) {
    %c0_i32 = arith.constant 0 : i32
    %c0_i32_0 = arith.constant 0 : i32
    %c0_i32_1 = arith.constant 0 : i32
    return %arg1, %c0_i32, %c0_i32_0 : i32, i32, i32
  }
  func.func @transform_19(%arg0: i32, %arg1: i32) -> (i32, i32, i32) {
    %c0_i32 = arith.constant 0 : i32
    %c0_i32_0 = arith.constant 0 : i32
    %c0_i32_1 = arith.constant 0 : i32
    return %arg1, %c0_i32, %c0_i32_0 : i32, i32, i32
  }
  func.func @transform_20(%arg0: i32, %arg1: i32) -> (i32, i32, i32) {
    %c0_i32 = arith.constant 0 : i32
    %c0_i32_0 = arith.constant 0 : i32
    %c0_i32_1 = arith.constant 0 : i32
    return %arg1, %c0_i32, %c0_i32_0 : i32, i32, i32
  }
  func.func @transform_21(%arg0: i32, %arg1: i32) -> (i32, i32) {
    %c0_i32 = arith.constant 0 : i32
    %c0_i32_0 = arith.constant 0 : i32
    %c0_i32_1 = arith.constant 0 : i32
    return %c0_i32, %c0_i32_0 : i32, i32
  }
  func.func @transform_22(%arg0: i32, %arg1: i32) -> (i32, i32) {
    %c0_i32 = arith.constant 0 : i32
    %c0_i32_0 = arith.constant 0 : i32
    %c0_i32_1 = arith.constant 0 : i32
    return %c0_i32, %c0_i32_0 : i32, i32
  }
  func.func @transform_23(%arg0: i32, %arg1: i32) -> (i32, i32) {
    %c0_i32 = arith.constant 0 : i32
    %c0_i32_0 = arith.constant 0 : i32
    %c0_i32_1 = arith.constant 0 : i32
    return %c0_i32, %c0_i32_0 : i32, i32
  }
  func.func @transform_24(%arg0: i32, %arg1: i32) -> (i32, i32) {
    %c0_i32 = arith.constant 0 : i32
    %c0_i32_0 = arith.constant 0 : i32
    %c0_i32_1 = arith.constant 0 : i32
    return %c0_i32, %c0_i32_0 : i32, i32
  }
  func.func @transform_25(%arg0: i32, %arg1: i32) -> (i32, i32) {
    %c0_i32 = arith.constant 0 : i32
    %c0_i32_0 = arith.constant 0 : i32
    %c0_i32_1 = arith.constant 0 : i32
    return %c0_i32, %c0_i32_0 : i32, i32
  }
  func.func @transform_26(%arg0: i32, %arg1: i32) -> (i32, i32) {
    %c0_i32 = arith.constant 0 : i32
    %c0_i32_0 = arith.constant 0 : i32
    %c0_i32_1 = arith.constant 0 : i32
    return %c0_i32, %c0_i32_0 : i32, i32
  }
  func.func @transform_27(%arg0: i32, %arg1: i32) -> (i32, i32) {
    %c0_i32 = arith.constant 0 : i32
    %c0_i32_0 = arith.constant 0 : i32
    %c0_i32_1 = arith.constant 0 : i32
    return %c0_i32, %c0_i32_0 : i32, i32
  }
  func.func @transform_28(%arg0: i32, %arg1: i32) -> (i32, i32) {
    %c0_i32 = arith.constant 0 : i32
    %c0_i32_0 = arith.constant 0 : i32
    %c0_i32_1 = arith.constant 0 : i32
    return %c0_i32, %c0_i32_0 : i32, i32
  }
  func.func @transform_29(%arg0: i32, %arg1: i32) -> (i32, i32) {
    %c0_i32 = arith.constant 0 : i32
    %c0_i32_0 = arith.constant 0 : i32
    %c0_i32_1 = arith.constant 0 : i32
    return %c0_i32, %c0_i32_0 : i32, i32
  }
  func.func @transform_30(%arg0: i32, %arg1: i32) -> (i32, i32) {
    %c0_i32 = arith.constant 0 : i32
    %c0_i32_0 = arith.constant 0 : i32
    %c0_i32_1 = arith.constant 0 : i32
    return %c0_i32, %c0_i32_0 : i32, i32
  }
  func.func @transform_31(%arg0: i32, %arg1: i32) -> (i32, i32) {
    %c0_i32 = arith.constant 0 : i32
    %c0_i32_0 = arith.constant 0 : i32
    return %arg0, %c0_i32 : i32, i32
  }
}

</mosaic_0001>

<llo_original>
// kernel: custom-call.9
$region0: #{custom-call.9}
  %s0 = inlined_call_operand.vmem [shape: f32[16,64], index: 0, kind: output, shape index: {}]

// kernel: brain_translator_forward.1
$region0: #{brain_translator_forward.1}
  #allocation0 [shape = 'u32[]', space=smem, size = 0x4, offset = 0x4, fixed_abs, tag = 'smem constant byte address 0x4 - core index']
  #allocation1 [shape = 'u32[144,128]{1,0:T(1,128)}', space=vmem, size = 0x12000, scoped, tag = 'internal scratch']
  #allocation2 [shape = 'f32[16,128]{1,0:T(8,128)}', space=vmem, size = 0x2000, scoped, tag = 'scratch operand']
  %s0 = inlined_call_operand.smem [shape: u32[32], index: -1, kind: input, shape index: {}]
  %s1 = sld [smem:[%s0]]
  %s2 = scalar_lea.smem %s0, 1
  %s3 = sld [smem:[%s2]]
  %s4 = scalar_lea.smem %s0, 2
  %s5 = sld [smem:[%s4]]
  %s6 = scalar_lea.smem %s0, 3
  %s7 = sld [smem:[%s6]]
  %s8 = scalar_lea.smem %s0, 4
  %s9 = sld [smem:[%s8]]
  %s10 = scalar_lea.smem %s0, 5
  %s11 = sld [smem:[%s10]]
  %s12 = scalar_lea.smem %s0, 6
  %s13 = sld [smem:[%s12]]
  %s14 = scalar_lea.smem %s0, 7
  %s15 = sld [smem:[%s14]]
  %s16 = scalar_lea.smem %s0, 8
  %s17 = sld [smem:[%s16]]
  %s18 = scalar_lea.smem %s0, 9
  %s19 = sld [smem:[%s18]]
  %s20 = scalar_lea.smem %s0, 10
  %s21 = sld [smem:[%s20]]
  %s22 = scalar_lea.smem %s0, 11
  %s23 = sld [smem:[%s22]]
  %s24 = scalar_lea.smem %s0, 12
  %s25 = sld [smem:[%s24]]
  %s26 = scalar_lea.smem %s0, 13
  %s27 = sld [smem:[%s26]]
  %s28 = scalar_lea.smem %s0, 14
  %s29 = sld [smem:[%s28]]
  %s30 = scalar_lea.smem %s0, 15
  %s31 = sld [smem:[%s30]]
  %s32 = scalar_lea.smem %s0, 16
  %s33 = sld [smem:[%s32]]
  %s34 = scalar_lea.smem %s0, 17
  %s35 = sld [smem:[%s34]]
  %s36 = scalar_lea.smem %s0, 18
  %s37 = sld [smem:[%s36]]
  %s38 = scalar_lea.smem %s0, 19
  %s39 = sld [smem:[%s38]]
  %s40 = scalar_lea.smem %s0, 20
  %s41 = sld [smem:[%s40]]
  %s42 = scalar_lea.smem %s0, 21
  %s43 = sld [smem:[%s42]]
  %s44 = scalar_lea.smem %s0, 22
  %s45 = sld [smem:[%s44]]
  %s46 = scalar_lea.smem %s0, 23
  %s47 = sld [smem:[%s46]]
  %s48 = scalar_lea.smem %s0, 24
  %s49 = sld [smem:[%s48]]
  %s50 = scalar_lea.smem %s0, 25
  %s51 = sld [smem:[%s50]]
  %s52 = scalar_lea.smem %s0, 26
  %s53 = sld [smem:[%s52]]
  %s54 = scalar_lea.smem %s0, 27
  %s55 = sld [smem:[%s54]]
  %s56 = scalar_lea.smem %s0, 28
  %s57 = sld [smem:[%s56]]
  %s58 = scalar_lea.smem %s0, 29
  %s59 = sld [smem:[%s58]]
  %s60 = scalar_lea.smem %s0, 30
  %s61 = sld [smem:[%s60]]
  %s62 = scalar_lea.smem %s0, 31
  %s63 = sld [smem:[%s62]]
  %s64 = sld [smem:[#allocation0]]
  $region165: #{brain_translator_forward.1} parent=0
    _
  %s66 = ssub.s32 1, %s64
  %s67 = scalar_select 0, %s66, %s64
  loop: start=0, step=1, limit=4
  $region2: #{brain_translator_forward.1} parent=0 // loop_pre_header
    _
  $region3: #{brain_translator_forward.1} parent=0 // loop_header
    %s69 = sphi 0, %s73
    %p70 = scmp.ge.s32.totalorder %s69, 4
    %s76 = sphi 0, %s88
    %s77 = sphi 0, %s84
    %s78 = sphi 0, %s76
    %s79 = sphi 0, %s77
    %s80 = sphi 0, %s78
    %s81 = sphi 0, %s79
    %s91 = sphi 0, %s93
    %s94 = sphi 0, %s91
    %s95 = sphi 0, %s94
    %s111 = sphi 0, %s95
    %s117 = sphi 0, %s119
    %s120 = sphi 0, %s117
    %s121 = sphi 0, %s120
    %s137 = sphi 0, %s121
    %s143 = sphi 0, %s145
    %s146 = sphi 0, %s143
    %s147 = sphi 0, %s146
    %s163 = sphi 0, %s147
    %s169 = sphi 0, %s171
    %s172 = sphi 0, %s169
    %s173 = sphi 0, %s172
    %s189 = sphi 0, %s173
    %s195 = sphi 0, %s197
    %s198 = sphi 0, %s195
    %s199 = sphi 0, %s198
    %s215 = sphi 0, %s199
    %s219 = sphi 0, %s219
    %s221 = sphi 0, %s219
    %s222 = sphi 0, %s221
    %s236 = sphi 0, %s222
    %s240 = sphi 0, %s240
    %s242 = sphi 0, %s240
    %s243 = sphi 0, %s242
    %s257 = sphi 0, %s243
    %s261 = sphi 0, %s261
    %s263 = sphi 0, %s261
    %s264 = sphi 0, %s263
    %s278 = sphi 0, %s264
    %s282 = sphi 0, %s282
    %s284 = sphi 0, %s282
    %s285 = sphi 0, %s284
    %s299 = sphi 0, %s285
    %s305 = sphi 0, %s307
    %s308 = sphi 0, %s305
    %s309 = sphi 0, %s308
    %s325 = sphi 0, %s309
    %s331 = sphi 0, %s333
    %s334 = sphi 0, %s331
    %s335 = sphi 0, %s334
    %s351 = sphi 0, %s335
    %s357 = sphi 0, %s359
    %s360 = sphi 0, %s357
    %s361 = sphi 0, %s360
    %s377 = sphi 0, %s361
    %s383 = sphi 0, %s385
    %s386 = sphi 0, %s383
    %s387 = sphi 0, %s386
    %s403 = sphi 0, %s387
    %s409 = sphi 0, %s411
    %s412 = sphi 0, %s409
    %s413 = sphi 0, %s412
    %s429 = sphi 0, %s413
    %s435 = sphi 0, %s437
    %s438 = sphi 0, %s435
    %s439 = sphi 0, %s438
    %s455 = sphi 0, %s439
    %s461 = sphi 0, %s463
    %s464 = sphi 0, %s461
    %s465 = sphi 0, %s464
    %s481 = sphi 0, %s465
    %s487 = sphi 0, %s489
    %s490 = sphi 0, %s487
    %s491 = sphi 0, %s490
    %s507 = sphi 0, %s491
    %s513 = sphi 0, %s515
    %s516 = sphi 0, %s513
    %s517 = sphi 0, %s516
    %s533 = sphi 0, %s517
    %s539 = sphi 0, %s541
    %s542 = sphi 0, %s539
    %s543 = sphi 0, %s542
    %s559 = sphi 0, %s543
    %s565 = sphi 0, %s567
    %s568 = sphi 0, %s565
    %s569 = sphi 0, %s568
    %s585 = sphi 0, %s569
    %s591 = sphi 0, %s593
    %s594 = sphi 0, %s591
    %s595 = sphi 0, %s594
    %s611 = sphi 0, %s595
    %s615 = sphi 0, %s615
    %s617 = sphi 0, %s615
    %s618 = sphi 0, %s617
    %s632 = sphi 0, %s618
    %s636 = sphi 0, %s636
    %s638 = sphi 0, %s636
    %s639 = sphi 0, %s638
    %s653 = sphi 0, %s639
    %s657 = sphi 0, %s657
    %s659 = sphi 0, %s657
    %s660 = sphi 0, %s659
    %s674 = sphi 0, %s660
    %s678 = sphi 0, %s678
    %s680 = sphi 0, %s678
    %s681 = sphi 0, %s680
    %s695 = sphi 0, %s681
    %s699 = sphi 0, %s699
    %s701 = sphi 0, %s699
    %s702 = sphi 0, %s701
    %s716 = sphi 0, %s702
    %s720 = sphi 0, %s720
    %s722 = sphi 0, %s720
    %s723 = sphi 0, %s722
    %s737 = sphi 0, %s723
    %s741 = sphi 0, %s741
    %s743 = sphi 0, %s741
    %s744 = sphi 0, %s743
    %s758 = sphi 0, %s744
    %s762 = sphi 0, %s762
    %s764 = sphi 0, %s762
    %s765 = sphi 0, %s764
    %s779 = sphi 0, %s765
    %s783 = sphi 0, %s783
    %s785 = sphi 0, %s783
    %s786 = sphi 0, %s785
    %s800 = sphi 0, %s786
    %s804 = sphi 0, %s804
    %s806 = sphi 0, %s804
    %s807 = sphi 0, %s806
    %s821 = sphi 0, %s807
    %s827 = sphi 0, %s829
    %s830 = sphi 0, %s827
    %s831 = sphi 0, %s830
    %s847 = sphi 0, %s831
  $region4: #{brain_translator_forward.1} parent=0 // loop_header_branch
    %72 = sbr.rel (%p70) target = $region8
  $region5: #{brain_translator_forward.1} parent=0 // loop_body
    %s74 = ssub.s32 %s69, 1
    %s75 = ssub.s32 %s69, 2
    %s82 = sadd.s32 1, %s77
    %p83 = scmp.ge.s32.totalorder %s82, 2
    %s84 = scalar_select %p83, 0, %s82
    %s85 = sadd.s32 1, %s76
    %s86 = scalar_select %p83, %s85, %s76
    %p87 = scmp.ge.s32.totalorder %s86, 1
    %s88 = scalar_select %p87, 0, %s86
    %s89 = ssub.s32 %s76, %s88
    %p90 = scmp.eq.s32.totalorder %s89, 0
    %s92 = sadd.s32 %s91, 1
    %s93 = scalar_select %p90, %s91, %s92
    %p96 = pneg %p90
    %p97 = scmp.eq.s32.totalorder %s69, 1
    %p98 = por %p96, %p97
    %p99 = scmp.ne.s32.totalorder %s91, %s94
    %p100 = scmp.eq.s32.totalorder %s69, 0
    %p101 = por %p99, %p100
    %p102 = scmp.ne.s32.totalorder %s91, %s94
    %p103 = scmp.eq.s32.totalorder %s74, 1
    %p104 = por %p102, %p103
    %p105 = scmp.ne.s32.totalorder %s94, %s95
    %p106 = scmp.eq.s32.totalorder %s74, 0
    %p107 = por %p105, %p106
    %p108 = scmp.ne.s32.totalorder %s94, %s95
    %p109 = scmp.eq.s32.totalorder %s75, 1
    %p110 = por %p108, %p109
    %p112 = scmp.ne.s32.totalorder %s95, %s111
    %p113 = scmp.eq.s32.totalorder %s75, 0
    %p114 = por %p112, %p113
    %s115 = ssub.s32 %s76, %s88
    %p116 = scmp.eq.s32.totalorder %s115, 0
    %s118 = sadd.s32 %s117, 1
    %s119 = scalar_select %p116, %s117, %s118
    %p122 = pneg %p116
    %p123 = scmp.eq.s32.totalorder %s69, 1
    %p124 = por %p122, %p123
    %p125 = scmp.ne.s32.totalorder %s117, %s120
    %p126 = scmp.eq.s32.totalorder %s69, 0
    %p127 = por %p125, %p126
    %p128 = scmp.ne.s32.totalorder %s117, %s120
    %p129 = scmp.eq.s32.totalorder %s74, 1
    %p130 = por %p128, %p129
    %p131 = scmp.ne.s32.totalorder %s120, %s121
    %p132 = scmp.eq.s32.totalorder %s74, 0
    %p133 = por %p131, %p132
    %p134 = scmp.ne.s32.totalorder %s120, %s121
    %p135 = scmp.eq.s32.totalorder %s75, 1
    %p136 = por %p134, %p135
    %p138 = scmp.ne.s32.totalorder %s121, %s137
    %p139 = scmp.eq.s32.totalorder %s75, 0
    %p140 = por %p138, %p139
    %s141 = ssub.s32 %s76, %s88
    %p142 = scmp.eq.s32.totalorder %s141, 0
    %s144 = sadd.s32 %s143, 1
    %s145 = scalar_select %p142, %s143, %s144
    %p148 = pneg %p142
    %p149 = scmp.eq.s32.totalorder %s69, 1
    %p150 = por %p148, %p149
    %p151 = scmp.ne.s32.totalorder %s143, %s146
    %p152 = scmp.eq.s32.totalorder %s69, 0
    %p153 = por %p151, %p152
    %p154 = scmp.ne.s32.totalorder %s143, %s146
    %p155 = scmp.eq.s32.totalorder %s74, 1
    %p156 = por %p154, %p155
    %p157 = scmp.ne.s32.totalorder %s146, %s147
    %p158 = scmp.eq.s32.totalorder %s74, 0
    %p159 = por %p157, %p158
    %p160 = scmp.ne.s32.totalorder %s146, %s147
    %p161 = scmp.eq.s32.totalorder %s75, 1
    %p162 = por %p160, %p161
    %p164 = scmp.ne.s32.totalorder %s147, %s163
    %p165 = scmp.eq.s32.totalorder %s75, 0
    %p166 = por %p164, %p165
    %s167 = ssub.s32 %s76, %s88
    %p168 = scmp.eq.s32.totalorder %s167, 0
    %s170 = sadd.s32 %s169, 1
    %s171 = scalar_select %p168, %s169, %s170
    %p174 = pneg %p168
    %p175 = scmp.eq.s32.totalorder %s69, 1
    %p176 = por %p174, %p175
    %p177 = scmp.ne.s32.totalorder %s169, %s172
    %p178 = scmp.eq.s32.totalorder %s69, 0
    %p179 = por %p177, %p178
    %p180 = scmp.ne.s32.totalorder %s169, %s172
    %p181 = scmp.eq.s32.totalorder %s74, 1
    %p182 = por %p180, %p181
    %p183 = scmp.ne.s32.totalorder %s172, %s173
    %p184 = scmp.eq.s32.totalorder %s74, 0
    %p185 = por %p183, %p184
    %p186 = scmp.ne.s32.totalorder %s172, %s173
    %p187 = scmp.eq.s32.totalorder %s75, 1
    %p188 = por %p186, %p187
    %p190 = scmp.ne.s32.totalorder %s173, %s189
    %p191 = scmp.eq.s32.totalorder %s75, 0
    %p192 = por %p190, %p191
    %s193 = ssub.s32 %s76, %s88
    %p194 = scmp.eq.s32.totalorder %s193, 0
    %s196 = sadd.s32 %s195, 1
    %s197 = scalar_select %p194, %s195, %s196
    %p200 = pneg %p194
    %p201 = scmp.eq.s32.totalorder %s69, 1
    %p202 = por %p200, %p201
    %p203 = scmp.ne.s32.totalorder %s195, %s198
    %p204 = scmp.eq.s32.totalorder %s69, 0
    %p205 = por %p203, %p204
    %p206 = scmp.ne.s32.totalorder %s195, %s198
    %p207 = scmp.eq.s32.totalorder %s74, 1
    %p208 = por %p206, %p207
    %p209 = scmp.ne.s32.totalorder %s198, %s199
    %p210 = scmp.eq.s32.totalorder %s74, 0
    %p211 = por %p209, %p210
    %p212 = scmp.ne.s32.totalorder %s198, %s199
    %p213 = scmp.eq.s32.totalorder %s75, 1
    %p214 = por %p212, %p213
    %p216 = scmp.ne.s32.totalorder %s199, %s215
    %p217 = scmp.eq.s32.totalorder %s75, 0
    %p218 = por %p216, %p217
    %s220 = sadd.s32 %s219, 1
    %p223 = scmp.eq.s32.totalorder %s69, 1
    %p224 = scmp.ne.s32.totalorder %s219, %s221
    %p225 = scmp.eq.s32.totalorder %s69, 0
    %p226 = por %p224, %p225
    %p227 = scmp.ne.s32.totalorder %s219, %s221
    %p228 = scmp.eq.s32.totalorder %s74, 1
    %p229 = por %p227, %p228
    %p230 = scmp.ne.s32.totalorder %s221, %s222
    %p231 = scmp.eq.s32.totalorder %s74, 0
    %p232 = por %p230, %p231
    %p233 = scmp.ne.s32.totalorder %s221, %s222
    %p234 = scmp.eq.s32.totalorder %s75, 1
    %p235 = por %p233, %p234
    %p237 = scmp.ne.s32.totalorder %s222, %s236
    %p238 = scmp.eq.s32.totalorder %s75, 0
    %p239 = por %p237, %p238
    %s241 = sadd.s32 %s240, 1
    %p244 = scmp.eq.s32.totalorder %s69, 1
    %p245 = scmp.ne.s32.totalorder %s240, %s242
    %p246 = scmp.eq.s32.totalorder %s69, 0
    %p247 = por %p245, %p246
    %p248 = scmp.ne.s32.totalorder %s240, %s242
    %p249 = scmp.eq.s32.totalorder %s74, 1
    %p250 = por %p248, %p249
    %p251 = scmp.ne.s32.totalorder %s242, %s243
    %p252 = scmp.eq.s32.totalorder %s74, 0
    %p253 = por %p251, %p252
    %p254 = scmp.ne.s32.totalorder %s242, %s243
    %p255 = scmp.eq.s32.totalorder %s75, 1
    %p256 = por %p254, %p255
    %p258 = scmp.ne.s32.totalorder %s243, %s257
    %p259 = scmp.eq.s32.totalorder %s75, 0
    %p260 = por %p258, %p259
    %s262 = sadd.s32 %s261, 1
    %p265 = scmp.eq.s32.totalorder %s69, 1
    %p266 = scmp.ne.s32.totalorder %s261, %s263
    %p267 = scmp.eq.s32.totalorder %s69, 0
    %p268 = por %p266, %p267
    %p269 = scmp.ne.s32.totalorder %s261, %s263
    %p270 = scmp.eq.s32.totalorder %s74, 1
    %p271 = por %p269, %p270
    %p272 = scmp.ne.s32.totalorder %s263, %s264
    %p273 = scmp.eq.s32.totalorder %s74, 0
    %p274 = por %p272, %p273
    %p275 = scmp.ne.s32.totalorder %s263, %s264
    %p276 = scmp.eq.s32.totalorder %s75, 1
    %p277 = por %p275, %p276
    %p279 = scmp.ne.s32.totalorder %s264, %s278
    %p280 = scmp.eq.s32.totalorder %s75, 0
    %p281 = por %p279, %p280
    %s283 = sadd.s32 %s282, 1
    %p286 = scmp.eq.s32.totalorder %s69, 1
    %p287 = scmp.ne.s32.totalorder %s282, %s284
    %p288 = scmp.eq.s32.totalorder %s69, 0
    %p289 = por %p287, %p288
    %p290 = scmp.ne.s32.totalorder %s282, %s284
    %p291 = scmp.eq.s32.totalorder %s74, 1
    %p292 = por %p290, %p291
    %p293 = scmp.ne.s32.totalorder %s284, %s285
    %p294 = scmp.eq.s32.totalorder %s74, 0
    %p295 = por %p293, %p294
    %p296 = scmp.ne.s32.totalorder %s284, %s285
    %p297 = scmp.eq.s32.totalorder %s75, 1
    %p298 = por %p296, %p297
    %p300 = scmp.ne.s32.totalorder %s285, %s299
    %p301 = scmp.eq.s32.totalorder %s75, 0
    %p302 = por %p300, %p301
    %s303 = ssub.s32 %s77, %s84
    %p304 = scmp.eq.s32.totalorder %s303, 0
    %s306 = sadd.s32 %s305, 1
    %s307 = scalar_select %p304, %s305, %s306
    %p310 = pneg %p304
    %p311 = scmp.eq.s32.totalorder %s69, 1
    %p312 = por %p310, %p311
    %p313 = scmp.ne.s32.totalorder %s305, %s308
    %p314 = scmp.eq.s32.totalorder %s69, 0
    %p315 = por %p313, %p314
    %p316 = scmp.ne.s32.totalorder %s305, %s308
    %p317 = scmp.eq.s32.totalorder %s74, 1
    %p318 = por %p316, %p317
    %p319 = scmp.ne.s32.totalorder %s308, %s309
    %p320 = scmp.eq.s32.totalorder %s74, 0
    %p321 = por %p319, %p320
    %p322 = scmp.ne.s32.totalorder %s308, %s309
    %p323 = scmp.eq.s32.totalorder %s75, 1
    %p324 = por %p322, %p323
    %p326 = scmp.ne.s32.totalorder %s309, %s325
    %p327 = scmp.eq.s32.totalorder %s75, 0
    %p328 = por %p326, %p327
    %s329 = ssub.s32 %s77, %s84
    %p330 = scmp.eq.s32.totalorder %s329, 0
    %s332 = sadd.s32 %s331, 1
    %s333 = scalar_select %p330, %s331, %s332
    %p336 = pneg %p330
    %p337 = scmp.eq.s32.totalorder %s69, 1
    %p338 = por %p336, %p337
    %p339 = scmp.ne.s32.totalorder %s331, %s334
    %p340 = scmp.eq.s32.totalorder %s69, 0
    %p341 = por %p339, %p340
    %p342 = scmp.ne.s32.totalorder %s331, %s334
    %p343 = scmp.eq.s32.totalorder %s74, 1
    %p344 = por %p342, %p343
    %p345 = scmp.ne.s32.totalorder %s334, %s335
    %p346 = scmp.eq.s32.totalorder %s74, 0
    %p347 = por %p345, %p346
    %p348 = scmp.ne.s32.totalorder %s334, %s335
    %p349 = scmp.eq.s32.totalorder %s75, 1
    %p350 = por %p348, %p349
    %p352 = scmp.ne.s32.totalorder %s335, %s351
    %p353 = scmp.eq.s32.totalorder %s75, 0
    %p354 = por %p352, %p353
    %s355 = ssub.s32 %s77, %s84
    %p356 = scmp.eq.s32.totalorder %s355, 0
    %s358 = sadd.s32 %s357, 1
    %s359 = scalar_select %p356, %s357, %s358
    %p362 = pneg %p356
    %p363 = scmp.eq.s32.totalorder %s69, 1
    %p364 = por %p362, %p363
    %p365 = scmp.ne.s32.totalorder %s357, %s360
    %p366 = scmp.eq.s32.totalorder %s69, 0
    %p367 = por %p365, %p366
    %p368 = scmp.ne.s32.totalorder %s357, %s360
    %p369 = scmp.eq.s32.totalorder %s74, 1
    %p370 = por %p368, %p369
    %p371 = scmp.ne.s32.totalorder %s360, %s361
    %p372 = scmp.eq.s32.totalorder %s74, 0
    %p373 = por %p371, %p372
    %p374 = scmp.ne.s32.totalorder %s360, %s361
    %p375 = scmp.eq.s32.totalorder %s75, 1
    %p376 = por %p374, %p375
    %p378 = scmp.ne.s32.totalorder %s361, %s377
    %p379 = scmp.eq.s32.totalorder %s75, 0
    %p380 = por %p378, %p379
    %s381 = ssub.s32 %s77, %s84
    %p382 = scmp.eq.s32.totalorder %s381, 0
    %s384 = sadd.s32 %s383, 1
    %s385 = scalar_select %p382, %s383, %s384
    %p388 = pneg %p382
    %p389 = scmp.eq.s32.totalorder %s69, 1
    %p390 = por %p388, %p389
    %p391 = scmp.ne.s32.totalorder %s383, %s386
    %p392 = scmp.eq.s32.totalorder %s69, 0
    %p393 = por %p391, %p392
    %p394 = scmp.ne.s32.totalorder %s383, %s386
    %p395 = scmp.eq.s32.totalorder %s74, 1
    %p396 = por %p394, %p395
    %p397 = scmp.ne.s32.totalorder %s386, %s387
    %p398 = scmp.eq.s32.totalorder %s74, 0
    %p399 = por %p397, %p398
    %p400 = scmp.ne.s32.totalorder %s386, %s387
    %p401 = scmp.eq.s32.totalorder %s75, 1
    %p402 = por %p400, %p401
    %p404 = scmp.ne.s32.totalorder %s387, %s403
    %p405 = scmp.eq.s32.totalorder %s75, 0
    %p406 = por %p404, %p405
    %s407 = ssub.s32 %s77, %s84
    %p408 = scmp.eq.s32.totalorder %s407, 0
    %s410 = sadd.s32 %s409, 1
    %s411 = scalar_select %p408, %s409, %s410
    %p414 = pneg %p408
    %p415 = scmp.eq.s32.totalorder %s69, 1
    %p416 = por %p414, %p415
    %p417 = scmp.ne.s32.totalorder %s409, %s412
    %p418 = scmp.eq.s32.totalorder %s69, 0
    %p419 = por %p417, %p418
    %p420 = scmp.ne.s32.totalorder %s409, %s412
    %p421 = scmp.eq.s32.totalorder %s74, 1
    %p422 = por %p420, %p421
    %p423 = scmp.ne.s32.totalorder %s412, %s413
    %p424 = scmp.eq.s32.totalorder %s74, 0
    %p425 = por %p423, %p424
    %p426 = scmp.ne.s32.totalorder %s412, %s413
    %p427 = scmp.eq.s32.totalorder %s75, 1
    %p428 = por %p426, %p427
    %p430 = scmp.ne.s32.totalorder %s413, %s429
    %p431 = scmp.eq.s32.totalorder %s75, 0
    %p432 = por %p430, %p431
    %s433 = ssub.s32 %s77, %s84
    %p434 = scmp.eq.s32.totalorder %s433, 0
    %s436 = sadd.s32 %s435, 1
    %s437 = scalar_select %p434, %s435, %s436
    %p440 = pneg %p434
    %p441 = scmp.eq.s32.totalorder %s69, 1
    %p442 = por %p440, %p441
    %p443 = scmp.ne.s32.totalorder %s435, %s438
    %p444 = scmp.eq.s32.totalorder %s69, 0
    %p445 = por %p443, %p444
    %p446 = scmp.ne.s32.totalorder %s435, %s438
    %p447 = scmp.eq.s32.totalorder %s74, 1
    %p448 = por %p446, %p447
    %p449 = scmp.ne.s32.totalorder %s438, %s439
    %p450 = scmp.eq.s32.totalorder %s74, 0
    %p451 = por %p449, %p450
    %p452 = scmp.ne.s32.totalorder %s438, %s439
    %p453 = scmp.eq.s32.totalorder %s75, 1
    %p454 = por %p452, %p453
    %p456 = scmp.ne.s32.totalorder %s439, %s455
    %p457 = scmp.eq.s32.totalorder %s75, 0
    %p458 = por %p456, %p457
    %s459 = ssub.s32 %s77, %s84
    %p460 = scmp.eq.s32.totalorder %s459, 0
    %s462 = sadd.s32 %s461, 1
    %s463 = scalar_select %p460, %s461, %s462
    %p466 = pneg %p460
    %p467 = scmp.eq.s32.totalorder %s69, 1
    %p468 = por %p466, %p467
    %p469 = scmp.ne.s32.totalorder %s461, %s464
    %p470 = scmp.eq.s32.totalorder %s69, 0
    %p471 = por %p469, %p470
    %p472 = scmp.ne.s32.totalorder %s461, %s464
    %p473 = scmp.eq.s32.totalorder %s74, 1
    %p474 = por %p472, %p473
    %p475 = scmp.ne.s32.totalorder %s464, %s465
    %p476 = scmp.eq.s32.totalorder %s74, 0
    %p477 = por %p475, %p476
    %p478 = scmp.ne.s32.totalorder %s464, %s465
    %p479 = scmp.eq.s32.totalorder %s75, 1
    %p480 = por %p478, %p479
    %p482 = scmp.ne.s32.totalorder %s465, %s481
    %p483 = scmp.eq.s32.totalorder %s75, 0
    %p484 = por %p482, %p483
    %s485 = ssub.s32 %s77, %s84
    %p486 = scmp.eq.s32.totalorder %s485, 0
    %s488 = sadd.s32 %s487, 1
    %s489 = scalar_select %p486, %s487, %s488
    %p492 = pneg %p486
    %p493 = scmp.eq.s32.totalorder %s69, 1
    %p494 = por %p492, %p493
    %p495 = scmp.ne.s32.totalorder %s487, %s490
    %p496 = scmp.eq.s32.totalorder %s69, 0
    %p497 = por %p495, %p496
    %p498 = scmp.ne.s32.totalorder %s487, %s490
    %p499 = scmp.eq.s32.totalorder %s74, 1
    %p500 = por %p498, %p499
    %p501 = scmp.ne.s32.totalorder %s490, %s491
    %p502 = scmp.eq.s32.totalorder %s74, 0
    %p503 = por %p501, %p502
    %p504 = scmp.ne.s32.totalorder %s490, %s491
    %p505 = scmp.eq.s32.totalorder %s75, 1
    %p506 = por %p504, %p505
    %p508 = scmp.ne.s32.totalorder %s491, %s507
    %p509 = scmp.eq.s32.totalorder %s75, 0
    %p510 = por %p508, %p509
    %s511 = ssub.s32 %s77, %s84
    %p512 = scmp.eq.s32.totalorder %s511, 0
    %s514 = sadd.s32 %s513, 1
    %s515 = scalar_select %p512, %s513, %s514
    %p518 = pneg %p512
    %p519 = scmp.eq.s32.totalorder %s69, 1
    %p520 = por %p518, %p519
    %p521 = scmp.ne.s32.totalorder %s513, %s516
    %p522 = scmp.eq.s32.totalorder %s69, 0
    %p523 = por %p521, %p522
    %p524 = scmp.ne.s32.totalorder %s513, %s516
    %p525 = scmp.eq.s32.totalorder %s74, 1
    %p526 = por %p524, %p525
    %p527 = scmp.ne.s32.totalorder %s516, %s517
    %p528 = scmp.eq.s32.totalorder %s74, 0
    %p529 = por %p527, %p528
    %p530 = scmp.ne.s32.totalorder %s516, %s517
    %p531 = scmp.eq.s32.totalorder %s75, 1
    %p532 = por %p530, %p531
    %p534 = scmp.ne.s32.totalorder %s517, %s533
    %p535 = scmp.eq.s32.totalorder %s75, 0
    %p536 = por %p534, %p535
    %s537 = ssub.s32 %s77, %s84
    %p538 = scmp.eq.s32.totalorder %s537, 0
    %s540 = sadd.s32 %s539, 1
    %s541 = scalar_select %p538, %s539, %s540
    %p544 = pneg %p538
    %p545 = scmp.eq.s32.totalorder %s69, 1
    %p546 = por %p544, %p545
    %p547 = scmp.ne.s32.totalorder %s539, %s542
    %p548 = scmp.eq.s32.totalorder %s69, 0
    %p549 = por %p547, %p548
    %p550 = scmp.ne.s32.totalorder %s539, %s542
    %p551 = scmp.eq.s32.totalorder %s74, 1
    %p552 = por %p550, %p551
    %p553 = scmp.ne.s32.totalorder %s542, %s543
    %p554 = scmp.eq.s32.totalorder %s74, 0
    %p555 = por %p553, %p554
    %p556 = scmp.ne.s32.totalorder %s542, %s543
    %p557 = scmp.eq.s32.totalorder %s75, 1
    %p558 = por %p556, %p557
    %p560 = scmp.ne.s32.totalorder %s543, %s559
    %p561 = scmp.eq.s32.totalorder %s75, 0
    %p562 = por %p560, %p561
    %s563 = ssub.s32 %s77, %s84
    %p564 = scmp.eq.s32.totalorder %s563, 0
    %s566 = sadd.s32 %s565, 1
    %s567 = scalar_select %p564, %s565, %s566
    %p570 = pneg %p564
    %p571 = scmp.eq.s32.totalorder %s69, 1
    %p572 = por %p570, %p571
    %p573 = scmp.ne.s32.totalorder %s565, %s568
    %p574 = scmp.eq.s32.totalorder %s69, 0
    %p575 = por %p573, %p574
    %p576 = scmp.ne.s32.totalorder %s565, %s568
    %p577 = scmp.eq.s32.totalorder %s74, 1
    %p578 = por %p576, %p577
    %p579 = scmp.ne.s32.totalorder %s568, %s569
    %p580 = scmp.eq.s32.totalorder %s74, 0
    %p581 = por %p579, %p580
    %p582 = scmp.ne.s32.totalorder %s568, %s569
    %p583 = scmp.eq.s32.totalorder %s75, 1
    %p584 = por %p582, %p583
    %p586 = scmp.ne.s32.totalorder %s569, %s585
    %p587 = scmp.eq.s32.totalorder %s75, 0
    %p588 = por %p586, %p587
    %s589 = ssub.s32 %s77, %s84
    %p590 = scmp.eq.s32.totalorder %s589, 0
    %s592 = sadd.s32 %s591, 1
    %s593 = scalar_select %p590, %s591, %s592
    %p596 = pneg %p590
    %p597 = scmp.eq.s32.totalorder %s69, 1
    %p598 = por %p596, %p597
    %p599 = scmp.ne.s32.totalorder %s591, %s594
    %p600 = scmp.eq.s32.totalorder %s69, 0
    %p601 = por %p599, %p600
    %p602 = scmp.ne.s32.totalorder %s591, %s594
    %p603 = scmp.eq.s32.totalorder %s74, 1
    %p604 = por %p602, %p603
    %p605 = scmp.ne.s32.totalorder %s594, %s595
    %p606 = scmp.eq.s32.totalorder %s74, 0
    %p607 = por %p605, %p606
    %p608 = scmp.ne.s32.totalorder %s594, %s595
    %p609 = scmp.eq.s32.totalorder %s75, 1
    %p610 = por %p608, %p609
    %p612 = scmp.ne.s32.totalorder %s595, %s611
    %p613 = scmp.eq.s32.totalorder %s75, 0
    %p614 = por %p612, %p613
    %s616 = sadd.s32 %s615, 1
    %p619 = scmp.eq.s32.totalorder %s69, 1
    %p620 = scmp.ne.s32.totalorder %s615, %s617
    %p621 = scmp.eq.s32.totalorder %s69, 0
    %p622 = por %p620, %p621
    %p623 = scmp.ne.s32.totalorder %s615, %s617
    %p624 = scmp.eq.s32.totalorder %s74, 1
    %p625 = por %p623, %p624
    %p626 = scmp.ne.s32.totalorder %s617, %s618
    %p627 = scmp.eq.s32.totalorder %s74, 0
    %p628 = por %p626, %p627
    %p629 = scmp.ne.s32.totalorder %s617, %s618
    %p630 = scmp.eq.s32.totalorder %s75, 1
    %p631 = por %p629, %p630
    %p633 = scmp.ne.s32.totalorder %s618, %s632
    %p634 = scmp.eq.s32.totalorder %s75, 0
    %p635 = por %p633, %p634
    %s637 = sadd.s32 %s636, 1
    %p640 = scmp.eq.s32.totalorder %s69, 1
    %p641 = scmp.ne.s32.totalorder %s636, %s638
    %p642 = scmp.eq.s32.totalorder %s69, 0
    %p643 = por %p641, %p642
    %p644 = scmp.ne.s32.totalorder %s636, %s638
    %p645 = scmp.eq.s32.totalorder %s74, 1
    %p646 = por %p644, %p645
    %p647 = scmp.ne.s32.totalorder %s638, %s639
    %p648 = scmp.eq.s32.totalorder %s74, 0
    %p649 = por %p647, %p648
    %p650 = scmp.ne.s32.totalorder %s638, %s639
    %p651 = scmp.eq.s32.totalorder %s75, 1
    %p652 = por %p650, %p651
    %p654 = scmp.ne.s32.totalorder %s639, %s653
    %p655 = scmp.eq.s32.totalorder %s75, 0
    %p656 = por %p654, %p655
    %s658 = sadd.s32 %s657, 1
    %p661 = scmp.eq.s32.totalorder %s69, 1
    %p662 = scmp.ne.s32.totalorder %s657, %s659
    %p663 = scmp.eq.s32.totalorder %s69, 0
    %p664 = por %p662, %p663
    %p665 = scmp.ne.s32.totalorder %s657, %s659
    %p666 = scmp.eq.s32.totalorder %s74, 1
    %p667 = por %p665, %p666
    %p668 = scmp.ne.s32.totalorder %s659, %s660
    %p669 = scmp.eq.s32.totalorder %s74, 0
    %p670 = por %p668, %p669
    %p671 = scmp.ne.s32.totalorder %s659, %s660
    %p672 = scmp.eq.s32.totalorder %s75, 1
    %p673 = por %p671, %p672
    %p675 = scmp.ne.s32.totalorder %s660, %s674
    %p676 = scmp.eq.s32.totalorder %s75, 0
    %p677 = por %p675, %p676
    %s679 = sadd.s32 %s678, 1
    %p682 = scmp.eq.s32.totalorder %s69, 1
    %p683 = scmp.ne.s32.totalorder %s678, %s680
    %p684 = scmp.eq.s32.totalorder %s69, 0
    %p685 = por %p683, %p684
    %p686 = scmp.ne.s32.totalorder %s678, %s680
    %p687 = scmp.eq.s32.totalorder %s74, 1
    %p688 = por %p686, %p687
    %p689 = scmp.ne.s32.totalorder %s680, %s681
    %p690 = scmp.eq.s32.totalorder %s74, 0
    %p691 = por %p689, %p690
    %p692 = scmp.ne.s32.totalorder %s680, %s681
    %p693 = scmp.eq.s32.totalorder %s75, 1
    %p694 = por %p692, %p693
    %p696 = scmp.ne.s32.totalorder %s681, %s695
    %p697 = scmp.eq.s32.totalorder %s75, 0
    %p698 = por %p696, %p697
    %s700 = sadd.s32 %s699, 1
    %p703 = scmp.eq.s32.totalorder %s69, 1
    %p704 = scmp.ne.s32.totalorder %s699, %s701
    %p705 = scmp.eq.s32.totalorder %s69, 0
    %p706 = por %p704, %p705
    %p707 = scmp.ne.s32.totalorder %s699, %s701
    %p708 = scmp.eq.s32.totalorder %s74, 1
    %p709 = por %p707, %p708
    %p710 = scmp.ne.s32.totalorder %s701, %s702
    %p711 = scmp.eq.s32.totalorder %s74, 0
    %p712 = por %p710, %p711
    %p713 = scmp.ne.s32.totalorder %s701, %s702
    %p714 = scmp.eq.s32.totalorder %s75, 1
    %p715 = por %p713, %p714
    %p717 = scmp.ne.s32.totalorder %s702, %s716
    %p718 = scmp.eq.s32.totalorder %s75, 0
    %p719 = por %p717, %p718
    %s721 = sadd.s32 %s720, 1
    %p724 = scmp.eq.s32.totalorder %s69, 1
    %p725 = scmp.ne.s32.totalorder %s720, %s722
    %p726 = scmp.eq.s32.totalorder %s69, 0
    %p727 = por %p725, %p726
    %p728 = scmp.ne.s32.totalorder %s720, %s722
    %p729 = scmp.eq.s32.totalorder %s74, 1
    %p730 = por %p728, %p729
    %p731 = scmp.ne.s32.totalorder %s722, %s723
    %p732 = scmp.eq.s32.totalorder %s74, 0
    %p733 = por %p731, %p732
    %p734 = scmp.ne.s32.totalorder %s722, %s723
    %p735 = scmp.eq.s32.totalorder %s75, 1
    %p736 = por %p734, %p735
    %p738 = scmp.ne.s32.totalorder %s723, %s737
    %p739 = scmp.eq.s32.totalorder %s75, 0
    %p740 = por %p738, %p739
    %s742 = sadd.s32 %s741, 1
    %p745 = scmp.eq.s32.totalorder %s69, 1
    %p746 = scmp.ne.s32.totalorder %s741, %s743
    %p747 = scmp.eq.s32.totalorder %s69, 0
    %p748 = por %p746, %p747
    %p749 = scmp.ne.s32.totalorder %s741, %s743
    %p750 = scmp.eq.s32.totalorder %s74, 1
    %p751 = por %p749, %p750
    %p752 = scmp.ne.s32.totalorder %s743, %s744
    %p753 = scmp.eq.s32.totalorder %s74, 0
    %p754 = por %p752, %p753
    %p755 = scmp.ne.s32.totalorder %s743, %s744
    %p756 = scmp.eq.s32.totalorder %s75, 1
    %p757 = por %p755, %p756
    %p759 = scmp.ne.s32.totalorder %s744, %s758
    %p760 = scmp.eq.s32.totalorder %s75, 0
    %p761 = por %p759, %p760
    %s763 = sadd.s32 %s762, 1
    %p766 = scmp.eq.s32.totalorder %s69, 1
    %p767 = scmp.ne.s32.totalorder %s762, %s764
    %p768 = scmp.eq.s32.totalorder %s69, 0
    %p769 = por %p767, %p768
    %p770 = scmp.ne.s32.totalorder %s762, %s764
    %p771 = scmp.eq.s32.totalorder %s74, 1
    %p772 = por %p770, %p771
    %p773 = scmp.ne.s32.totalorder %s764, %s765
    %p774 = scmp.eq.s32.totalorder %s74, 0
    %p775 = por %p773, %p774
    %p776 = scmp.ne.s32.totalorder %s764, %s765
    %p777 = scmp.eq.s32.totalorder %s75, 1
    %p778 = por %p776, %p777
    %p780 = scmp.ne.s32.totalorder %s765, %s779
    %p781 = scmp.eq.s32.totalorder %s75, 0
    %p782 = por %p780, %p781
    %s784 = sadd.s32 %s783, 1
    %p787 = scmp.eq.s32.totalorder %s69, 1
    %p788 = scmp.ne.s32.totalorder %s783, %s785
    %p789 = scmp.eq.s32.totalorder %s69, 0
    %p790 = por %p788, %p789
    %p791 = scmp.ne.s32.totalorder %s783, %s785
    %p792 = scmp.eq.s32.totalorder %s74, 1
    %p793 = por %p791, %p792
    %p794 = scmp.ne.s32.totalorder %s785, %s786
    %p795 = scmp.eq.s32.totalorder %s74, 0
    %p796 = por %p794, %p795
    %p797 = scmp.ne.s32.totalorder %s785, %s786
    %p798 = scmp.eq.s32.totalorder %s75, 1
    %p799 = por %p797, %p798
    %p801 = scmp.ne.s32.totalorder %s786, %s800
    %p802 = scmp.eq.s32.totalorder %s75, 0
    %p803 = por %p801, %p802
    %s805 = sadd.s32 %s804, 1
    %p808 = scmp.eq.s32.totalorder %s69, 1
    %p809 = scmp.ne.s32.totalorder %s804, %s806
    %p810 = scmp.eq.s32.totalorder %s69, 0
    %p811 = por %p809, %p810
    %p812 = scmp.ne.s32.totalorder %s804, %s806
    %p813 = scmp.eq.s32.totalorder %s74, 1
    %p814 = por %p812, %p813
    %p815 = scmp.ne.s32.totalorder %s806, %s807
    %p816 = scmp.eq.s32.totalorder %s74, 0
    %p817 = por %p815, %p816
    %p818 = scmp.ne.s32.totalorder %s806, %s807
    %p819 = scmp.eq.s32.totalorder %s75, 1
    %p820 = por %p818, %p819
    %p822 = scmp.ne.s32.totalorder %s807, %s821
    %p823 = scmp.eq.s32.totalorder %s75, 0
    %p824 = por %p822, %p823
    %s825 = ssub.s32 %s76, %s88
    %p826 = scmp.eq.s32.totalorder %s825, 0
    %s828 = sadd.s32 %s827, 1
    %s829 = scalar_select %p826, %s827, %s828
    %p832 = pneg %p826
    %p833 = scmp.eq.s32.totalorder %s69, 1
    %p834 = por %p832, %p833
    %p835 = scmp.ne.s32.totalorder %s827, %s830
    %p836 = scmp.eq.s32.totalorder %s69, 0
    %p837 = por %p835, %p836
    %p838 = scmp.ne.s32.totalorder %s827, %s830
    %p839 = scmp.eq.s32.totalorder %s74, 1
    %p840 = por %p838, %p839
    %p841 = scmp.ne.s32.totalorder %s830, %s831
    %p842 = scmp.eq.s32.totalorder %s74, 0
    %p843 = por %p841, %p842
    %p844 = scmp.ne.s32.totalorder %s830, %s831
    %p845 = scmp.eq.s32.totalorder %s75, 1
    %p846 = por %p844, %p845
    %p848 = scmp.ne.s32.totalorder %s831, %s847
    %p849 = scmp.eq.s32.totalorder %s75, 0
    %p850 = por %p848, %p849
    %p851 = scmp.le.s32.totalorder 1, %s69
    %p852 = scmp.lt.s32.totalorder %s69, 3
    %p853 = pnand %p851, %p852
    %p854 = pneg %p853
    // Predicated region
    $region9: #{brain_translator_forward.1} parent=5 // pred_check
      _
    $region10: #{brain_translator_forward.1} parent=5 // pred_check_branch
      %856 = sbr.rel (%p853) target = $region12
    $region11: #{brain_translator_forward.1} parent=5 // pred_region
      %s857 = ssub.s32 %s69, 1
      // Predicated region
      $region13: #{brain_translator_forward.1} parent=11 // pred_check
        %p858 = pneg %p107
      $region14: #{brain_translator_forward.1} parent=11 // pred_check_branch
        %860 = sbr.rel (%p858) target = $region16
      $region15: #{brain_translator_forward.1} parent=11 // pred_region
        %s861 = smul.u32 2, %s78
        %p862 = scmp.lt.s32.totalorder %s861, 1
        %s863 = scalar_select %p862, %s861, 1
        %s864 = smul.addr %s863, 8
        %s865 = scalar_lea.vmem %s1, %s864
        %s866 = smul.u32 2, %s78
      $region16: #{brain_translator_forward.1} parent=11 // pred_fallthru
        _
      // Predicated region
      $region17: #{brain_translator_forward.1} parent=11 // pred_check
        %p867 = pneg %p133
      $region18: #{brain_translator_forward.1} parent=11 // pred_check_branch
        %869 = sbr.rel (%p867) target = $region20
      $region19: #{brain_translator_forward.1} parent=11 // pred_region
        %s870 = smul.u32 2, %s78
        %p871 = scmp.lt.s32.totalorder %s870, 1
        %s872 = scalar_select %p871, %s870, 1
        %s873 = scalar_lea.vmem %s3, %s872
        %s874 = smul.u32 2, %s78
      $region20: #{brain_translator_forward.1} parent=11 // pred_fallthru
        _
      // Predicated region
      $region21: #{brain_translator_forward.1} parent=11 // pred_check
        %p875 = pneg %p159
      $region22: #{brain_translator_forward.1} parent=11 // pred_check_branch
        %877 = sbr.rel (%p875) target = $region24
      $region23: #{brain_translator_forward.1} parent=11 // pred_region
        %s878 = smul.u32 2, %s78
        %p879 = scmp.lt.s32.totalorder %s878, 1
        %s880 = scalar_select %p879, %s878, 1
        %s881 = smul.addr %s880, 8
        %s882 = scalar_lea.vmem %s5, %s881
        %s883 = smul.u32 2, %s78
      $region24: #{brain_translator_forward.1} parent=11 // pred_fallthru
        _
      // Predicated region
      $region25: #{brain_translator_forward.1} parent=11 // pred_check
        %p884 = pneg %p185
      $region26: #{brain_translator_forward.1} parent=11 // pred_check_branch
        %886 = sbr.rel (%p884) target = $region28
      $region27: #{brain_translator_forward.1} parent=11 // pred_region
        %s887 = smul.u32 2, %s78
        %p888 = scmp.lt.s32.totalorder %s887, 1
        %s889 = scalar_select %p888, %s887, 1
        %s890 = smul.addr %s889, 8
        %s891 = scalar_lea.vmem %s7, %s890
        %s892 = smul.u32 2, %s78
      $region28: #{brain_translator_forward.1} parent=11 // pred_fallthru
        _
      // Predicated region
      $region29: #{brain_translator_forward.1} parent=11 // pred_check
        %p893 = pneg %p211
      $region30: #{brain_translator_forward.1} parent=11 // pred_check_branch
        %895 = sbr.rel (%p893) target = $region32
      $region31: #{brain_translator_forward.1} parent=11 // pred_region
        %s896 = smul.u32 2, %s78
        %p897 = scmp.lt.s32.totalorder %s896, 1
        %s898 = scalar_select %p897, %s896, 1
        %s899 = smul.addr %s898, 8
        %s900 = scalar_lea.vmem %s9, %s899
        %s901 = smul.u32 2, %s78
      $region32: #{brain_translator_forward.1} parent=11 // pred_fallthru
        _
      // Predicated region
      $region33: #{brain_translator_forward.1} parent=11 // pred_check
        %p902 = pneg %p232
      $region34: #{brain_translator_forward.1} parent=11 // pred_check_branch
        %904 = sbr.rel (%p902) target = $region36
      $region35: #{brain_translator_forward.1} parent=11 // pred_region
        _
      $region36: #{brain_translator_forward.1} parent=11 // pred_fallthru
        _
      // Predicated region
      $region37: #{brain_translator_forward.1} parent=11 // pred_check
        %p905 = pneg %p253
      $region38: #{brain_translator_forward.1} parent=11 // pred_check_branch
        %907 = sbr.rel (%p905) target = $region40
      $region39: #{brain_translator_forward.1} parent=11 // pred_region
        _
      $region40: #{brain_translator_forward.1} parent=11 // pred_fallthru
        _
      // Predicated region
      $region41: #{brain_translator_forward.1} parent=11 // pred_check
        %p908 = pneg %p274
      $region42: #{brain_translator_forward.1} parent=11 // pred_check_branch
        %910 = sbr.rel (%p908) target = $region44
      $region43: #{brain_translator_forward.1} parent=11 // pred_region
        _
      $region44: #{brain_translator_forward.1} parent=11 // pred_fallthru
        _
      // Predicated region
      $region45: #{brain_translator_forward.1} parent=11 // pred_check
        %p911 = pneg %p295
      $region46: #{brain_translator_forward.1} parent=11 // pred_check_branch
        %913 = sbr.rel (%p911) target = $region48
      $region47: #{brain_translator_forward.1} parent=11 // pred_region
        _
      $region48: #{brain_translator_forward.1} parent=11 // pred_fallthru
        _
      // Predicated region
      $region49: #{brain_translator_forward.1} parent=11 // pred_check
        %p914 = pneg %p628
      $region50: #{brain_translator_forward.1} parent=11 // pred_check_branch
        %916 = sbr.rel (%p914) target = $region52
      $region51: #{brain_translator_forward.1} parent=11 // pred_region
        _
      $region52: #{brain_translator_forward.1} parent=11 // pred_fallthru
        _
      // Predicated region
      $region53: #{brain_translator_forward.1} parent=11 // pred_check
        %p917 = pneg %p649
      $region54: #{brain_translator_forward.1} parent=11 // pred_check_branch
        %919 = sbr.rel (%p917) target = $region56
      $region55: #{brain_translator_forward.1} parent=11 // pred_region
        _
      $region56: #{brain_translator_forward.1} parent=11 // pred_fallthru
        _
      // Predicated region
      $region57: #{brain_translator_forward.1} parent=11 // pred_check
        %p920 = pneg %p670
      $region58: #{brain_translator_forward.1} parent=11 // pred_check_branch
        %922 = sbr.rel (%p920) target = $region60
      $region59: #{brain_translator_forward.1} parent=11 // pred_region
        _
      $region60: #{brain_translator_forward.1} parent=11 // pred_fallthru
        _
      // Predicated region
      $region61: #{brain_translator_forward.1} parent=11 // pred_check
        %p923 = pneg %p691
      $region62: #{brain_translator_forward.1} parent=11 // pred_check_branch
        %925 = sbr.rel (%p923) target = $region64
      $region63: #{brain_translator_forward.1} parent=11 // pred_region
        _
      $region64: #{brain_translator_forward.1} parent=11 // pred_fallthru
        _
      // Predicated region
      $region65: #{brain_translator_forward.1} parent=11 // pred_check
        %p926 = pneg %p712
      $region66: #{brain_translator_forward.1} parent=11 // pred_check_branch
        %928 = sbr.rel (%p926) target = $region68
      $region67: #{brain_translator_forward.1} parent=11 // pred_region
        _
      $region68: #{brain_translator_forward.1} parent=11 // pred_fallthru
        _
      // Predicated region
      $region69: #{brain_translator_forward.1} parent=11 // pred_check
        %p929 = pneg %p733
      $region70: #{brain_translator_forward.1} parent=11 // pred_check_branch
        %931 = sbr.rel (%p929) target = $region72
      $region71: #{brain_translator_forward.1} parent=11 // pred_region
        _
      $region72: #{brain_translator_forward.1} parent=11 // pred_fallthru
        _
      // Predicated region
      $region73: #{brain_translator_forward.1} parent=11 // pred_check
        %p932 = pneg %p754
      $region74: #{brain_translator_forward.1} parent=11 // pred_check_branch
        %934 = sbr.rel (%p932) target = $region76
      $region75: #{brain_translator_forward.1} parent=11 // pred_region
        _
      $region76: #{brain_translator_forward.1} parent=11 // pred_fallthru
        _
      // Predicated region
      $region77: #{brain_translator_forward.1} parent=11 // pred_check
        %p935 = pneg %p775
      $region78: #{brain_translator_forward.1} parent=11 // pred_check_branch
        %937 = sbr.rel (%p935) target = $region80
      $region79: #{brain_translator_forward.1} parent=11 // pred_region
        _
      $region80: #{brain_translator_forward.1} parent=11 // pred_fallthru
        _
      // Predicated region
      $region81: #{brain_translator_forward.1} parent=11 // pred_check
        %p938 = pneg %p796
      $region82: #{brain_translator_forward.1} parent=11 // pred_check_branch
        %940 = sbr.rel (%p938) target = $region84
      $region83: #{brain_translator_forward.1} parent=11 // pred_region
        _
      $region84: #{brain_translator_forward.1} parent=11 // pred_fallthru
        _
      // Predicated region
      $region85: #{brain_translator_forward.1} parent=11 // pred_check
        %p941 = pneg %p817
      $region86: #{brain_translator_forward.1} parent=11 // pred_check_branch
        %943 = sbr.rel (%p941) target = $region88
      $region87: #{brain_translator_forward.1} parent=11 // pred_region
        _
      $region88: #{brain_translator_forward.1} parent=11 // pred_fallthru
        _
    $region12: #{brain_translator_forward.1} parent=5 // pred_fallthru
      _
    %p944 = scmp.lt.s32.totalorder %s69, 2
    // Predicated region
    $region89: #{brain_translator_forward.1} parent=5 // pred_check
      %p945 = pneg %p944
    $region90: #{brain_translator_forward.1} parent=5 // pred_check_branch
      %947 = sbr.rel (%p945) target = $region92
    $region91: #{brain_translator_forward.1} parent=5 // pred_region
      // Predicated region
      $region93: #{brain_translator_forward.1} parent=91 // pred_check
        %p948 = pneg %p315
      $region94: #{brain_translator_forward.1} parent=91 // pred_check_branch
        %950 = sbr.rel (%p948) target = $region96
      $region95: #{brain_translator_forward.1} parent=91 // pred_region
        %p951 = scmp.lt.s32.totalorder %s77, 1
        %s952 = scalar_select %p951, %s77, 1
        %s953 = smul.addr %s952, 48
        %s954 = smul.addr %s953, 4
        %s955 = scalar_lea.vmem %s19, %s954
      $region96: #{brain_translator_forward.1} parent=91 // pred_fallthru
        _
      // Predicated region
      $region97: #{brain_translator_forward.1} parent=91 // pred_check
        %p956 = pneg %p341
      $region98: #{brain_translator_forward.1} parent=91 // pred_check_branch
        %958 = sbr.rel (%p956) target = $region100
      $region99: #{brain_translator_forward.1} parent=91 // pred_region
        %p959 = scmp.lt.s32.totalorder %s77, 1
        %s960 = scalar_select %p959, %s77, 1
        %s961 = smul.addr %s960, 3
        %s962 = scalar_lea.vmem %s21, %s961
      $region100: #{brain_translator_forward.1} parent=91 // pred_fallthru
        _
      // Predicated region
      $region101: #{brain_translator_forward.1} parent=91 // pred_check
        %p963 = pneg %p367
      $region102: #{brain_translator_forward.1} parent=91 // pred_check_branch
        %965 = sbr.rel (%p963) target = $region104
      $region103: #{brain_translator_forward.1} parent=91 // pred_region
        %p966 = scmp.lt.s32.totalorder %s77, 1
        %s967 = scalar_select %p966, %s77, 1
        %s968 = smul.addr %s967, 16
        %s969 = smul.addr %s968, 4
        %s970 = scalar_lea.vmem %s23, %s969
      $region104: #{brain_translator_forward.1} parent=91 // pred_fallthru
        _
      // Predicated region
      $region105: #{brain_translator_forward.1} parent=91 // pred_check
        %p971 = pneg %p393
      $region106: #{brain_translator_forward.1} parent=91 // pred_check_branch
        %973 = sbr.rel (%p971) target = $region108
      $region107: #{brain_translator_forward.1} parent=91 // pred_region
        %p974 = scmp.lt.s32.totalorder %s77, 1
        %s975 = scalar_select %p974, %s77, 1
        %s976 = scalar_lea.vmem %s25, %s975
      $region108: #{brain_translator_forward.1} parent=91 // pred_fallthru
        _
      // Predicated region
      $region109: #{brain_translator_forward.1} parent=91 // pred_check
        %p977 = pneg %p419
      $region110: #{brain_translator_forward.1} parent=91 // pred_check_branch
        %979 = sbr.rel (%p977) target = $region112
      $region111: #{brain_translator_forward.1} parent=91 // pred_region
        %p980 = scmp.lt.s32.totalorder %s77, 1
        %s981 = scalar_select %p980, %s77, 1
        %s982 = scalar_lea.vmem %s27, %s981
      $region112: #{brain_translator_forward.1} parent=91 // pred_fallthru
        _
      // Predicated region
      $region113: #{brain_translator_forward.1} parent=91 // pred_check
        %p983 = pneg %p445
      $region114: #{brain_translator_forward.1} parent=91 // pred_check_branch
        %985 = sbr.rel (%p983) target = $region116
      $region115: #{brain_translator_forward.1} parent=91 // pred_region
        %p986 = scmp.lt.s32.totalorder %s77, 1
        %s987 = scalar_select %p986, %s77, 1
        %s988 = scalar_lea.vmem %s29, %s987
      $region116: #{brain_translator_forward.1} parent=91 // pred_fallthru
        _
      // Predicated region
      $region117: #{brain_translator_forward.1} parent=91 // pred_check
        %p989 = pneg %p471
      $region118: #{brain_translator_forward.1} parent=91 // pred_check_branch
        %991 = sbr.rel (%p989) target = $region120
      $region119: #{brain_translator_forward.1} parent=91 // pred_region
        %p992 = scmp.lt.s32.totalorder %s77, 1
        %s993 = scalar_select %p992, %s77, 1
        %s994 = smul.addr %s993, 32
        %s995 = smul.addr %s994, 4
        %s996 = scalar_lea.vmem %s31, %s995
      $region120: #{brain_translator_forward.1} parent=91 // pred_fallthru
        _
      // Predicated region
      $region121: #{brain_translator_forward.1} parent=91 // pred_check
        %p997 = pneg %p497
      $region122: #{brain_translator_forward.1} parent=91 // pred_check_branch
        %999 = sbr.rel (%p997) target = $region124
      $region123: #{brain_translator_forward.1} parent=91 // pred_region
        %p1000 = scmp.lt.s32.totalorder %s77, 1
        %s1001 = scalar_select %p1000, %s77, 1
        %s1002 = smul.addr %s1001, 2
        %s1003 = scalar_lea.vmem %s33, %s1002
      $region124: #{brain_translator_forward.1} parent=91 // pred_fallthru
        _
      // Predicated region
      $region125: #{brain_translator_forward.1} parent=91 // pred_check
        %p1004 = pneg %p523
      $region126: #{brain_translator_forward.1} parent=91 // pred_check_branch
        %1006 = sbr.rel (%p1004) target = $region128
      $region127: #{brain_translator_forward.1} parent=91 // pred_region
        %p1007 = scmp.lt.s32.totalorder %s77, 1
        %s1008 = scalar_select %p1007, %s77, 1
        %s1009 = smul.addr %s1008, 32
        %s1010 = smul.addr %s1009, 4
        %s1011 = scalar_lea.vmem %s35, %s1010
      $region128: #{brain_translator_forward.1} parent=91 // pred_fallthru
        _
      // Predicated region
      $region129: #{brain_translator_forward.1} parent=91 // pred_check
        %p1012 = pneg %p549
      $region130: #{brain_translator_forward.1} parent=91 // pred_check_branch
        %1014 = sbr.rel (%p1012) target = $region132
      $region131: #{brain_translator_forward.1} parent=91 // pred_region
        %p1015 = scmp.lt.s32.totalorder %s77, 1
        %s1016 = scalar_select %p1015, %s77, 1
        %s1017 = scalar_lea.vmem %s37, %s1016
      $region132: #{brain_translator_forward.1} parent=91 // pred_fallthru
        _
      // Predicated region
      $region133: #{brain_translator_forward.1} parent=91 // pred_check
        %p1018 = pneg %p575
      $region134: #{brain_translator_forward.1} parent=91 // pred_check_branch
        %1020 = sbr.rel (%p1018) target = $region136
      $region135: #{brain_translator_forward.1} parent=91 // pred_region
        %p1021 = scmp.lt.s32.totalorder %s77, 1
        %s1022 = scalar_select %p1021, %s77, 1
        %s1023 = scalar_lea.vmem %s39, %s1022
      $region136: #{brain_translator_forward.1} parent=91 // pred_fallthru
        _
      // Predicated region
      $region137: #{brain_translator_forward.1} parent=91 // pred_check
        %p1024 = pneg %p601
      $region138: #{brain_translator_forward.1} parent=91 // pred_check_branch
        %1026 = sbr.rel (%p1024) target = $region140
      $region139: #{brain_translator_forward.1} parent=91 // pred_region
        %p1027 = scmp.lt.s32.totalorder %s77, 1
        %s1028 = scalar_select %p1027, %s77, 1
        %s1029 = scalar_lea.vmem %s41, %s1028
      $region140: #{brain_translator_forward.1} parent=91 // pred_fallthru
        _
    $region92: #{brain_translator_forward.1} parent=5 // pred_fallthru
      _
    %p1030 = scmp.le.s32.totalorder 1, %s69
    %p1031 = scmp.lt.s32.totalorder %s69, 3
    %p1032 = pnand %p1030, %p1031
    %p1033 = pneg %p1032
    // Predicated region
    $region141: #{brain_translator_forward.1} parent=5 // pred_check
      _
    $region142: #{brain_translator_forward.1} parent=5 // pred_check_branch
      %1035 = sbr.rel (%p1032) target = $region144
    $region143: #{brain_translator_forward.1} parent=5 // pred_region
      %s1036 = ssub.s32 %s69, 1
      %s1037 = smul.u32 2, %s78
      %p1038 = scmp.lt.s32.totalorder %s1037, 1
      %s1039 = scalar_select %p1038, %s1037, 1
      %s1040 = smul.addr %s1039, 8
      %s1041 = scalar_lea.vmem %s1, %s1040
      %p1042 = pneg %p107
      %p1043 = pneg %p104
      %s1044 = smul.u32 2, %s78
      %p1045 = scmp.lt.s32.totalorder %s1044, 1
      %s1046 = scalar_select %p1045, %s1044, 1
      %s1047 = scalar_lea.vmem %s3, %s1046
      %p1048 = pneg %p133
      %p1049 = pneg %p130
      %s1050 = smul.u32 2, %s78
      %p1051 = scmp.lt.s32.totalorder %s1050, 1
      %s1052 = scalar_select %p1051, %s1050, 1
      %s1053 = smul.addr %s1052, 8
      %s1054 = scalar_lea.vmem %s5, %s1053
      %p1055 = pneg %p159
      %p1056 = pneg %p156
      %s1057 = smul.u32 2, %s78
      %p1058 = scmp.lt.s32.totalorder %s1057, 1
      %s1059 = scalar_select %p1058, %s1057, 1
      %s1060 = smul.addr %s1059, 8
      %s1061 = scalar_lea.vmem %s7, %s1060
      %p1062 = pneg %p185
      %p1063 = pneg %p182
      %s1064 = smul.u32 2, %s78
      %p1065 = scmp.lt.s32.totalorder %s1064, 1
      %s1066 = scalar_select %p1065, %s1064, 1
      %s1067 = smul.addr %s1066, 8
      %s1068 = scalar_lea.vmem %s9, %s1067
      %p1069 = pneg %p211
      %p1070 = pneg %p208
      %p1071 = pneg %p232
      %p1072 = pneg %p229
      %p1073 = pneg %p253
      %p1074 = pneg %p250
      %p1075 = pneg %p274
      %p1076 = pneg %p271
      %p1077 = pneg %p295
      %p1078 = pneg %p292
      %p1079 = scmp.lt.s32.totalorder %s79, 1
      %s1080 = scalar_select %p1079, %s79, 1
      %s1081 = smul.addr %s1080, 48
      %s1082 = smul.addr %s1081, 4
      %s1083 = scalar_lea.vmem %s19, %s1082
      %p1084 = pneg %p321
      %p1085 = pneg %p318
      %p1086 = scmp.lt.s32.totalorder %s79, 1
      %s1087 = scalar_select %p1086, %s79, 1
      %s1088 = smul.addr %s1087, 3
      %s1089 = scalar_lea.vmem %s21, %s1088
      %p1090 = pneg %p347
      %p1091 = pneg %p344
      %p1092 = scmp.lt.s32.totalorder %s79, 1
      %s1093 = scalar_select %p1092, %s79, 1
      %s1094 = smul.addr %s1093, 16
      %s1095 = smul.addr %s1094, 4
      %s1096 = scalar_lea.vmem %s23, %s1095
      %p1097 = pneg %p373
      %p1098 = pneg %p370
      %p1099 = scmp.lt.s32.totalorder %s79, 1
      %s1100 = scalar_select %p1099, %s79, 1
      %s1101 = scalar_lea.vmem %s25, %s1100
      %p1102 = pneg %p399
      %p1103 = pneg %p396
      %p1104 = scmp.lt.s32.totalorder %s79, 1
      %s1105 = scalar_select %p1104, %s79, 1
      %s1106 = scalar_lea.vmem %s27, %s1105
      %p1107 = pneg %p425
      %p1108 = pneg %p422
      %p1109 = scmp.lt.s32.totalorder %s79, 1
      %s1110 = scalar_select %p1109, %s79, 1
      %s1111 = scalar_lea.vmem %s29, %s1110
      %p1112 = pneg %p451
      %p1113 = pneg %p448
      %p1114 = scmp.lt.s32.totalorder %s79, 1
      %s1115 = scalar_select %p1114, %s79, 1
      %s1116 = smul.addr %s1115, 32
      %s1117 = smul.addr %s1116, 4
      %s1118 = scalar_lea.vmem %s31, %s1117
      %p1119 = pneg %p477
      %p1120 = pneg %p474
      %p1121 = scmp.lt.s32.totalorder %s79, 1
      %s1122 = scalar_select %p1121, %s79, 1
      %s1123 = smul.addr %s1122, 2
      %s1124 = scalar_lea.vmem %s33, %s1123
      %p1125 = pneg %p503
      %p1126 = pneg %p500
      %p1127 = scmp.lt.s32.totalorder %s79, 1
      %s1128 = scalar_select %p1127, %s79, 1
      %s1129 = smul.addr %s1128, 32
      %s1130 = smul.addr %s1129, 4
      %s1131 = scalar_lea.vmem %s35, %s1130
      %p1132 = pneg %p529
      %p1133 = pneg %p526
      %p1134 = scmp.lt.s32.totalorder %s79, 1
      %s1135 = scalar_select %p1134, %s79, 1
      %s1136 = scalar_lea.vmem %s37, %s1135
      %p1137 = pneg %p555
      %p1138 = pneg %p552
      %p1139 = scmp.lt.s32.totalorder %s79, 1
      %s1140 = scalar_select %p1139, %s79, 1
      %s1141 = scalar_lea.vmem %s39, %s1140
      %p1142 = pneg %p581
      %p1143 = pneg %p578
      %p1144 = scmp.lt.s32.totalorder %s79, 1
      %s1145 = scalar_select %p1144, %s79, 1
      %s1146 = scalar_lea.vmem %s41, %s1145
      %p1147 = pneg %p607
      %p1148 = pneg %p604
      %p1149 = pneg %p628
      %p1150 = pneg %p625
      %p1151 = pneg %p649
      %p1152 = pneg %p646
      %p1153 = pneg %p670
      %p1154 = pneg %p667
      %p1155 = pneg %p691
      %p1156 = pneg %p688
      %p1157 = pneg %p712
      %p1158 = pneg %p709
      %p1159 = pneg %p733
      %p1160 = pneg %p730
      %p1161 = pneg %p754
      %p1162 = pneg %p751
      %p1163 = pneg %p775
      %p1164 = pneg %p772
      %p1165 = pneg %p796
      %p1166 = pneg %p793
      %p1167 = pneg %p817
      %p1168 = pneg %p814
      %p1169 = pneg %p843
      %p1170 = pneg %p840
      %s1171 = smul.u32 2, %s78
      %p1172 = scmp.lt.s32.totalorder %s1171, 1
      %s1173 = scalar_select %p1172, %s1171, 1
      %s1174 = smul.addr %s1173, 8
      %s1175 = scalar_lea.vmem %s63, %s1174
      %s1176 = smul.u32 2, %s78
      %p1177 = scmp.lt.s32.totalorder %s1176, 1
      %s1178 = scalar_select %p1177, %s1176, 1
      %s1179 = smul.addr %s1178, 8
      %s1180 = scalar_lea.vmem %s1, %s1179
      %s1181 = smul.u32 2, %s78
      %s1182 = smul.u32 2, %s78
      %p1183 = scmp.lt.s32.totalorder %s1182, 1
      %s1184 = scalar_select %p1183, %s1182, 1
      %s1185 = scalar_lea.vmem %s3, %s1184
      %s1186 = smul.u32 2, %s78
      %s1187 = smul.u32 2, %s78
      %p1188 = scmp.lt.s32.totalorder %s1187, 1
      %s1189 = scalar_select %p1188, %s1187, 1
      %s1190 = smul.addr %s1189, 8
      %s1191 = scalar_lea.vmem %s5, %s1190
      %s1192 = smul.u32 2, %s78
      %s1193 = smul.u32 2, %s78
      %p1194 = scmp.lt.s32.totalorder %s1193, 1
      %s1195 = scalar_select %p1194, %s1193, 1
      %s1196 = smul.addr %s1195, 8
      %s1197 = scalar_lea.vmem %s7, %s1196
      %s1198 = smul.u32 2, %s78
      %s1199 = smul.u32 2, %s78
      %p1200 = scmp.lt.s32.totalorder %s1199, 1
      %s1201 = scalar_select %p1200, %s1199, 1
      %s1202 = smul.addr %s1201, 8
      %s1203 = scalar_lea.vmem %s9, %s1202
      %s1204 = smul.u32 2, %s78
      %p1205 = scmp.lt.s32.totalorder %s79, 1
      %s1206 = scalar_select %p1205, %s79, 1
      %s1207 = smul.addr %s1206, 48
      %s1208 = smul.addr %s1207, 4
      %s1209 = scalar_lea.vmem %s19, %s1208
      %p1210 = scmp.lt.s32.totalorder %s79, 1
      %s1211 = scalar_select %p1210, %s79, 1
      %s1212 = smul.addr %s1211, 3
      %s1213 = scalar_lea.vmem %s21, %s1212
      %p1214 = scmp.lt.s32.totalorder %s79, 1
      %s1215 = scalar_select %p1214, %s79, 1
      %s1216 = smul.addr %s1215, 16
      %s1217 = smul.addr %s1216, 4
      %s1218 = scalar_lea.vmem %s23, %s1217
      %p1219 = scmp.lt.s32.totalorder %s79, 1
      %s1220 = scalar_select %p1219, %s79, 1
      %s1221 = scalar_lea.vmem %s25, %s1220
      %p1222 = scmp.lt.s32.totalorder %s79, 1
      %s1223 = scalar_select %p1222, %s79, 1
      %s1224 = scalar_lea.vmem %s27, %s1223
      %p1225 = scmp.lt.s32.totalorder %s79, 1
      %s1226 = scalar_select %p1225, %s79, 1
      %s1227 = scalar_lea.vmem %s29, %s1226
      %p1228 = scmp.lt.s32.totalorder %s79, 1
      %s1229 = scalar_select %p1228, %s79, 1
      %s1230 = smul.addr %s1229, 32
      %s1231 = smul.addr %s1230, 4
      %s1232 = scalar_lea.vmem %s31, %s1231
      %p1233 = scmp.lt.s32.totalorder %s79, 1
      %s1234 = scalar_select %p1233, %s79, 1
      %s1235 = smul.addr %s1234, 2
      %s1236 = scalar_lea.vmem %s33, %s1235
      %p1237 = scmp.lt.s32.totalorder %s79, 1
      %s1238 = scalar_select %p1237, %s79, 1
      %s1239 = smul.addr %s1238, 32
      %s1240 = smul.addr %s1239, 4
      %s1241 = scalar_lea.vmem %s35, %s1240
      %p1242 = scmp.lt.s32.totalorder %s79, 1
      %s1243 = scalar_select %p1242, %s79, 1
      %s1244 = scalar_lea.vmem %s37, %s1243
      %p1245 = scmp.lt.s32.totalorder %s79, 1
      %s1246 = scalar_select %p1245, %s79, 1
      %s1247 = scalar_lea.vmem %s39, %s1246
      %p1248 = scmp.lt.s32.totalorder %s79, 1
      %s1249 = scalar_select %p1248, %s79, 1
      %s1250 = scalar_lea.vmem %s41, %s1249
      %s1251 = smul.u32 2, %s78
      %p1252 = scmp.lt.s32.totalorder %s1251, 1
      %s1253 = scalar_select %p1252, %s1251, 1
      %s1254 = smul.addr %s1253, 8
      %s1255 = scalar_lea.vmem %s63, %s1254
      %s1256 = smul.u32 2, %s78
      %p1258 = scmp.eq.s32.totalorder %s79, 0
      // Predicated region
      $region145: #{brain_translator_forward.1} parent=143 // pred_check
        %p1259 = pneg %p1258
      $region146: #{brain_translator_forward.1} parent=143 // pred_check_branch
        %1261 = sbr.rel (%p1259) target = $region148
      $region147: #{brain_translator_forward.1} parent=143 // pred_region
        %v1262 = vld [vmem:[%s1180] sm:$0xff]
        %v1263 = vld [vmem:[%s1180 + $0x8] sm:$0xff]
        %v1264 = vld [vmem:[%s11] sm:$0xf]
        %v1265 = vld [vmem:[%s11 + $0x4] sm:$0xf]
        %v1266 = vld [vmem:[%s11 + $0x8] sm:$0xf]
        %v1267 = vld [vmem:[%s11 + $0xc] sm:$0xf]
        %v1268 = vld [vmem:[%s11 + $0x10] sm:$0xf]
        %v1269 = vld [vmem:[%s11 + $0x14] sm:$0xf]
        %v1270 = vld [vmem:[%s11 + $0x18] sm:$0xf]
        %v1271 = vld [vmem:[%s11 + $0x1c] sm:$0xf]
        %v1272 = vld [vmem:[%s11 + $0x20] sm:$0xf]
        %v1273 = vld [vmem:[%s11 + $0x24] sm:$0xf]
        %v1274 = vld [vmem:[%s11 + $0x28] sm:$0xf]
        %v1275 = vld [vmem:[%s11 + $0x2c] sm:$0xf]
        %v1276 = vld [vmem:[%s11 + $0x30] sm:$0xf]
        %v1277 = vld [vmem:[%s11 + $0x34] sm:$0xf]
        %v1278 = vld [vmem:[%s11 + $0x38] sm:$0xf]
        %v1279 = vld [vmem:[%s11 + $0x3c] sm:$0xf]
        %v1280 = vpack.c.bf16 %v1263, %v1262
        %v1281 = vld [vmem:[%s13] sm:$0x1]
        %v1283 = vlaneseq
        %v1284 = vshrl.u32 %v1283, 7
        %v1285 = vsub.s32 0, %v1284
        %v1286 = vrot.slane %v1281, %v1285
        %v1304 = vunpack.c.l.b16 %v1264
        %v1305 = vunpack.c.l.b16 %v1265
        %v1306 = vunpack.c.l.b16 %v1266
        %v1307 = vunpack.c.l.b16 %v1267
        %v1308 = vunpack.c.l.b16 %v1268
        %v1309 = vunpack.c.l.b16 %v1269
        %v1310 = vunpack.c.l.b16 %v1270
        %v1311 = vunpack.c.l.b16 %v1271
        %v1312 = vunpack.c.l.b16 %v1272
        %v1313 = vunpack.c.l.b16 %v1273
        %v1314 = vunpack.c.l.b16 %v1274
        %v1315 = vunpack.c.l.b16 %v1275
        %v1316 = vunpack.c.l.b16 %v1276
        %v1317 = vunpack.c.l.b16 %v1277
        %v1318 = vunpack.c.l.b16 %v1278
        %v1319 = vunpack.c.l.b16 %v1279
        %v1320 = vpack.c.b16 %v1305, %v1304
        %v1321 = vpack.c.b16 %v1307, %v1306
        %v1322 = vpack.c.b16 %v1309, %v1308
        %v1323 = vpack.c.b16 %v1311, %v1310
        %v1324 = vpack.c.b16 %v1313, %v1312
        %v1325 = vpack.c.b16 %v1315, %v1314
        %v1326 = vpack.c.b16 %v1317, %v1316
        %v1327 = vpack.c.b16 %v1319, %v1318
        %1336 = vmatprep.subr.bf16.mxu0 0
        %1337 = vmatpush1.bf16.msra.mxu0 %v1320
        %1338 = vmatprep.subr.bf16.mxu0 0
        %1339 = vmatpush1.bf16.msra.mxu0 %v1321
        %1340 = vmatprep.subr.bf16.mxu0 0
        %1341 = vmatpush1.bf16.msra.mxu0 %v1322
        %1342 = vmatprep.subr.bf16.mxu0 0
        %1343 = vmatpush1.bf16.msra.mxu0 %v1323
        %1344 = vmatprep.subr.bf16.mxu0 0
        %1345 = vmatpush1.bf16.msra.mxu0 %v1324
        %1346 = vmatprep.subr.bf16.mxu0 0
        %1347 = vmatpush1.bf16.msra.mxu0 %v1325
        %1348 = vmatprep.subr.bf16.mxu0 0
        %1349 = vmatpush1.bf16.msra.mxu0 %v1326
        %1350 = vmatprep.subr.bf16.mxu0 0
        %1351 = vmatpush1.bf16.msra.mxu0 %v1327
        %1352 = vmatprep.subr.bf16.mxu0 0
        %1353 = vmatpush1.bf16.msra.mxu0 0
        %1354 = vmatprep.subr.bf16.mxu0 0
        %1355 = vmatpush1.bf16.msra.mxu0 0
        %1356 = vmatprep.subr.bf16.mxu0 0
        %1357 = vmatpush1.bf16.msra.mxu0 0
        %1358 = vmatprep.subr.bf16.mxu0 0
        %1359 = vmatpush1.bf16.msra.mxu0 0
        %1360 = vmatprep.subr.bf16.mxu0 0
        %1361 = vmatpush1.bf16.msra.mxu0 0
        %1362 = vmatprep.subr.bf16.mxu0 0
        %1363 = vmatpush1.bf16.msra.mxu0 0
        %1364 = vmatprep.subr.bf16.mxu0 0
        %1365 = vmatpush1.bf16.msra.mxu0 0
        %1366 = vmatprep.subr.bf16.mxu0 0
        %1367 = vmatpush1.bf16.msra.mxu0 0
        %1368 = vmatprep.mubr.bf16.mxu0 0
        %1369 = vmatmul.mubr.bf16.gmra.mrb[0].mxu0 %v1280
        %v1370 = vpop.f32.mrb[0].mxu0
        %v1371 = vadd.f32 %v1286, %v1370
        %v1372 = vpop.f32.mrb[0].mxu0
        %v1373 = vpop.f32.mrb[0].mxu0
        %v1374 = vadd.f32 %v1286, %v1373
        %v1375 = vpop.f32.mrb[0].mxu0
        %1376 = vdwg.mxu0
        %v1377 = vmul.f32 %v1371, 0.5
        %v1378 = vmul.f32 %v1374, 0.5
        %v1379 = vmul.f32 %v1371, 0.70710677
        %v1380 = vmul.f32 %v1374, 0.70710677
        %v1381 = verf.f32.pop %v1379
        %v1382 = verf.f32.pop %v1380
        %v1383 = vadd.f32 %v1381, 1.0
        %v1384 = vadd.f32 %v1382, 1.0
        %v1385 = vmul.f32 %v1377, %v1383
        %v1386 = vmul.f32 %v1378, %v1384
        %v1387 = vld [vmem:[%s15] sm:$0xf]
        %v1388 = vld [vmem:[%s15 + $0x4] sm:$0xf]
        %v1389 = vld [vmem:[%s15 + $0x8] sm:$0xf]
        %v1390 = vld [vmem:[%s15 + $0xc] sm:$0xf]
        %v1391 = vld [vmem:[%s15 + $0x10] sm:$0xf]
        %v1392 = vld [vmem:[%s15 + $0x14] sm:$0xf]
        %v1393 = vld [vmem:[%s15 + $0x18] sm:$0xf]
        %v1394 = vld [vmem:[%s15 + $0x1c] sm:$0xf]
        %v1395 = vld [vmem:[%s15 + $0x20] sm:$0xf]
        %v1396 = vld [vmem:[%s15 + $0x24] sm:$0xf]
        %v1397 = vld [vmem:[%s15 + $0x28] sm:$0xf]
        %v1398 = vld [vmem:[%s15 + $0x2c] sm:$0xf]
        %v1399 = vld [vmem:[%s15 + $0x30] sm:$0xf]
        %v1400 = vld [vmem:[%s15 + $0x34] sm:$0xf]
        %v1401 = vld [vmem:[%s15 + $0x38] sm:$0xf]
        %v1402 = vld [vmem:[%s15 + $0x3c] sm:$0xf]
        %v1403 = vpack.c.bf16 %v1386, %v1385
        %v1404 = vld [vmem:[%s17] sm:$0x1]
        %v1406 = vlaneseq
        %v1407 = vshrl.u32 %v1406, 7
        %v1408 = vsub.s32 0, %v1407
        %v1409 = vrot.slane %v1404, %v1408
        %v1427 = vunpack.c.l.b16 %v1387
        %v1428 = vunpack.c.l.b16 %v1388
        %v1429 = vunpack.c.l.b16 %v1389
        %v1430 = vunpack.c.l.b16 %v1390
        %v1431 = vunpack.c.l.b16 %v1391
        %v1432 = vunpack.c.l.b16 %v1392
        %v1433 = vunpack.c.l.b16 %v1393
        %v1434 = vunpack.c.l.b16 %v1394
        %v1435 = vunpack.c.l.b16 %v1395
        %v1436 = vunpack.c.l.b16 %v1396
        %v1437 = vunpack.c.l.b16 %v1397
        %v1438 = vunpack.c.l.b16 %v1398
        %v1439 = vunpack.c.l.b16 %v1399
        %v1440 = vunpack.c.l.b16 %v1400
        %v1441 = vunpack.c.l.b16 %v1401
        %v1442 = vunpack.c.l.b16 %v1402
        %v1443 = vpack.c.b16 %v1428, %v1427
        %v1444 = vpack.c.b16 %v1430, %v1429
        %v1445 = vpack.c.b16 %v1432, %v1431
        %v1446 = vpack.c.b16 %v1434, %v1433
        %v1447 = vpack.c.b16 %v1436, %v1435
        %v1448 = vpack.c.b16 %v1438, %v1437
        %v1449 = vpack.c.b16 %v1440, %v1439
        %v1450 = vpack.c.b16 %v1442, %v1441
        %1459 = vmatprep.subr.bf16.mxu0 0
        %1460 = vmatpush1.bf16.msra.mxu0 %v1443
        %1461 = vmatprep.subr.bf16.mxu0 0
        %1462 = vmatpush1.bf16.msra.mxu0 %v1444
        %1463 = vmatprep.subr.bf16.mxu0 0
        %1464 = vmatpush1.bf16.msra.mxu0 %v1445
        %1465 = vmatprep.subr.bf16.mxu0 0
        %1466 = vmatpush1.bf16.msra.mxu0 %v1446
        %1467 = vmatprep.subr.bf16.mxu0 0
        %1468 = vmatpush1.bf16.msra.mxu0 %v1447
        %1469 = vmatprep.subr.bf16.mxu0 0
        %1470 = vmatpush1.bf16.msra.mxu0 %v1448
        %1471 = vmatprep.subr.bf16.mxu0 0
        %1472 = vmatpush1.bf16.msra.mxu0 %v1449
        %1473 = vmatprep.subr.bf16.mxu0 0
        %1474 = vmatpush1.bf16.msra.mxu0 %v1450
        %1475 = vmatprep.subr.bf16.mxu0 0
        %1476 = vmatpush1.bf16.msra.mxu0 0
        %1477 = vmatprep.subr.bf16.mxu0 0
        %1478 = vmatpush1.bf16.msra.mxu0 0
        %1479 = vmatprep.subr.bf16.mxu0 0
        %1480 = vmatpush1.bf16.msra.mxu0 0
        %1481 = vmatprep.subr.bf16.mxu0 0
        %1482 = vmatpush1.bf16.msra.mxu0 0
        %1483 = vmatprep.subr.bf16.mxu0 0
        %1484 = vmatpush1.bf16.msra.mxu0 0
        %1485 = vmatprep.subr.bf16.mxu0 0
        %1486 = vmatpush1.bf16.msra.mxu0 0
        %1487 = vmatprep.subr.bf16.mxu0 0
        %1488 = vmatpush1.bf16.msra.mxu0 0
        %1489 = vmatprep.subr.bf16.mxu0 0
        %1490 = vmatpush1.bf16.msra.mxu0 0
        %1491 = vmatprep.mubr.bf16.mxu0 0
        %1492 = vmatmul.mubr.bf16.gmra.mrb[0].mxu0 %v1403
        %v1493 = vpop.f32.mrb[0].mxu0
        %v1494 = vadd.f32 %v1409, %v1493
        %v1495 = vpop.f32.mrb[0].mxu0
        %v1496 = vpop.f32.mrb[0].mxu0
        %v1497 = vadd.f32 %v1409, %v1496
        %v1498 = vpop.f32.mrb[0].mxu0
        %1499 = vdwg.mxu0
        %v1500 = vadd.f32 %v1494, %v1371
        %v1501 = vadd.f32 %v1497, %v1374
        %v1502 = vld [vmem:[%s1191] sm:$0xff]
        %v1503 = vld [vmem:[%s1191 + $0x8] sm:$0xff]
        %1505 = vset.pattern.permute.xlu0 0
        %1506 = vperm.xlu0 %1505, %v1502
        %v1507 = vpop.permute.xlu0 %1506
        %1510 = vset.pattern.permute.xlu0 0
        %1511 = vperm.xlu0 %1510, %v1503
        %v1512 = vpop.permute.xlu0 %1511
        %v1514 = vmul.f32 %v1500, %v1507
        %v1515 = vmul.f32 %v1501, %v1512
        %v1516 = vld [vmem:[%s1197] sm:$0xff]
        %v1517 = vld [vmem:[%s1197 + $0x8] sm:$0xff]
        %1519 = vset.pattern.permute.xlu0 0
        %1520 = vperm.xlu0 %1519, %v1516
        %v1521 = vpop.permute.xlu0 %1520
        %1524 = vset.pattern.permute.xlu0 0
        %1525 = vperm.xlu0 %1524, %v1517
        %v1526 = vpop.permute.xlu0 %1525
        %v1528 = vadd.f32 %v1514, %v1521
        %v1529 = vadd.f32 %v1515, %v1526
        %v1530 = vld [vmem:[%s1203] sm:$0xff]
        %v1531 = vld [vmem:[%s1203 + $0x8] sm:$0xff]
        %v1532 = vadd.f32 %v1528, %v1530
        %v1533 = vadd.f32 %v1529, %v1531
        %1534 = vst [vmem:[#allocation2] sm:$0xff] %v1532
        %1535 = vst [vmem:[#allocation2 + $0x8] sm:$0xff] %v1533
      $region148: #{brain_translator_forward.1} parent=143 // pred_fallthru
        _
      %v1536 = vld [vmem:[#allocation2] sm:$0xff]
      %v1537 = vld [vmem:[#allocation2 + $0x8] sm:$0xff]
      %v1538 = vld [vmem:[%s1209] sm:$0xff]
      %v1539 = vld [vmem:[%s1209 + $0x8] sm:$0xf]
      %v1540 = vld [vmem:[%s1209 + $0xc] sm:$0xff]
      %v1541 = vld [vmem:[%s1209 + $0x14] sm:$0xf]
      %v1542 = vld [vmem:[%s1209 + $0x18] sm:$0xff]
      %v1543 = vld [vmem:[%s1209 + $0x20] sm:$0xf]
      %v1544 = vld [vmem:[%s1209 + $0x24] sm:$0xff]
      %v1545 = vld [vmem:[%s1209 + $0x2c] sm:$0xf]
      %v1546 = vld [vmem:[%s1209 + $0x30] sm:$0xff]
      %v1547 = vld [vmem:[%s1209 + $0x38] sm:$0xf]
      %v1548 = vld [vmem:[%s1209 + $0x3c] sm:$0xff]
      %v1549 = vld [vmem:[%s1209 + $0x44] sm:$0xf]
      %v1550 = vld [vmem:[%s1209 + $0x48] sm:$0xff]
      %v1551 = vld [vmem:[%s1209 + $0x50] sm:$0xf]
      %v1552 = vld [vmem:[%s1209 + $0x54] sm:$0xff]
      %v1553 = vld [vmem:[%s1209 + $0x5c] sm:$0xf]
      %v1554 = vld [vmem:[%s1209 + $0x60] sm:$0xff]
      %v1555 = vld [vmem:[%s1209 + $0x68] sm:$0xf]
      %v1556 = vld [vmem:[%s1209 + $0x6c] sm:$0xff]
      %v1557 = vld [vmem:[%s1209 + $0x74] sm:$0xf]
      %v1558 = vld [vmem:[%s1209 + $0x78] sm:$0xff]
      %v1559 = vld [vmem:[%s1209 + $0x80] sm:$0xf]
      %v1560 = vld [vmem:[%s1209 + $0x84] sm:$0xff]
      %v1561 = vld [vmem:[%s1209 + $0x8c] sm:$0xf]
      %v1562 = vld [vmem:[%s1209 + $0x90] sm:$0xff]
      %v1563 = vld [vmem:[%s1209 + $0x98] sm:$0xf]
      %v1564 = vld [vmem:[%s1209 + $0x9c] sm:$0xff]
      %v1565 = vld [vmem:[%s1209 + $0xa4] sm:$0xf]
      %v1566 = vld [vmem:[%s1209 + $0xa8] sm:$0xff]
      %v1567 = vld [vmem:[%s1209 + $0xb0] sm:$0xf]
      %v1568 = vld [vmem:[%s1209 + $0xb4] sm:$0xff]
      %v1569 = vld [vmem:[%s1209 + $0xbc] sm:$0xf]
      %v1570 = vpack.c.bf16 %v1537, %v1536
      %v1571 = vld [vmem:[%s1213] sm:$0x7]
      %v1573 = vlaneseq
      %v1574 = vshrl.u32 %v1573, 7
      %v1575 = vsub.s32 0, %v1574
      %v1576 = vrot.slane %v1571, %v1575
      %v1577 = vlaneseq
      %v1578 = vshrl.u32 %v1577, 7
      %v1579 = vsub.s32 1, %v1578
      %v1580 = vrot.slane %v1571, %v1579
      %v1581 = vlaneseq
      %v1582 = vshrl.u32 %v1581, 7
      %v1583 = vsub.s32 2, %v1582
      %v1584 = vrot.slane %v1571, %v1583
      %v1620 = vunpack.c.l.b16 %v1538
      %v1621 = vunpack.c.h.b16 %v1538
      %v1622 = vunpack.c.l.b16 %v1539
      %v1623 = vunpack.c.l.b16 %v1540
      %v1624 = vunpack.c.h.b16 %v1540
      %v1625 = vunpack.c.l.b16 %v1541
      %v1626 = vunpack.c.l.b16 %v1542
      %v1627 = vunpack.c.h.b16 %v1542
      %v1628 = vunpack.c.l.b16 %v1543
      %v1629 = vunpack.c.l.b16 %v1544
      %v1630 = vunpack.c.h.b16 %v1544
      %v1631 = vunpack.c.l.b16 %v1545
      %v1632 = vunpack.c.l.b16 %v1546
      %v1633 = vunpack.c.h.b16 %v1546
      %v1634 = vunpack.c.l.b16 %v1547
      %v1635 = vunpack.c.l.b16 %v1548
      %v1636 = vunpack.c.h.b16 %v1548
      %v1637 = vunpack.c.l.b16 %v1549
      %v1638 = vunpack.c.l.b16 %v1550
      %v1639 = vunpack.c.h.b16 %v1550
      %v1640 = vunpack.c.l.b16 %v1551
      %v1641 = vunpack.c.l.b16 %v1552
      %v1642 = vunpack.c.h.b16 %v1552
      %v1643 = vunpack.c.l.b16 %v1553
      %v1644 = vunpack.c.l.b16 %v1554
      %v1645 = vunpack.c.h.b16 %v1554
      %v1646 = vunpack.c.l.b16 %v1555
      %v1647 = vunpack.c.l.b16 %v1556
      %v1648 = vunpack.c.h.b16 %v1556
      %v1649 = vunpack.c.l.b16 %v1557
      %v1650 = vunpack.c.l.b16 %v1558
      %v1651 = vunpack.c.h.b16 %v1558
      %v1652 = vunpack.c.l.b16 %v1559
      %v1653 = vunpack.c.l.b16 %v1560
      %v1654 = vunpack.c.h.b16 %v1560
      %v1655 = vunpack.c.l.b16 %v1561
      %v1656 = vunpack.c.l.b16 %v1562
      %v1657 = vunpack.c.h.b16 %v1562
      %v1658 = vunpack.c.l.b16 %v1563
      %v1659 = vunpack.c.l.b16 %v1564
      %v1660 = vunpack.c.h.b16 %v1564
      %v1661 = vunpack.c.l.b16 %v1565
      %v1662 = vunpack.c.l.b16 %v1566
      %v1663 = vunpack.c.h.b16 %v1566
      %v1664 = vunpack.c.l.b16 %v1567
      %v1665 = vunpack.c.l.b16 %v1568
      %v1666 = vunpack.c.h.b16 %v1568
      %v1667 = vunpack.c.l.b16 %v1569
      %v1668 = vpack.c.b16 %v1623, %v1620
      %v1669 = vpack.c.b16 %v1624, %v1621
      %v1670 = vpack.c.b16 %v1625, %v1622
      %v1671 = vpack.c.b16 %v1629, %v1626
      %v1672 = vpack.c.b16 %v1630, %v1627
      %v1673 = vpack.c.b16 %v1631, %v1628
      %v1674 = vpack.c.b16 %v1635, %v1632
      %v1675 = vpack.c.b16 %v1636, %v1633
      %v1676 = vpack.c.b16 %v1637, %v1634
      %v1677 = vpack.c.b16 %v1641, %v1638
      %v1678 = vpack.c.b16 %v1642, %v1639
      %v1679 = vpack.c.b16 %v1643, %v1640
      %v1680 = vpack.c.b16 %v1647, %v1644
      %v1681 = vpack.c.b16 %v1648, %v1645
      %v1682 = vpack.c.b16 %v1649, %v1646
      %v1683 = vpack.c.b16 %v1653, %v1650
      %v1684 = vpack.c.b16 %v1654, %v1651
      %v1685 = vpack.c.b16 %v1655, %v1652
      %v1686 = vpack.c.b16 %v1659, %v1656
      %v1687 = vpack.c.b16 %v1660, %v1657
      %v1688 = vpack.c.b16 %v1661, %v1658
      %v1689 = vpack.c.b16 %v1665, %v1662
      %v1690 = vpack.c.b16 %v1666, %v1663
      %v1691 = vpack.c.b16 %v1667, %v1664
      %1716 = vmatprep.subr.bf16.mxu0 %v1669
      %1717 = vmatpush1.bf16.msra.mxu0 %v1668
      %1718 = vmatprep.subr.bf16.mxu0 %v1672
      %1719 = vmatpush1.bf16.msra.mxu0 %v1671
      %1720 = vmatprep.subr.bf16.mxu0 %v1675
      %1721 = vmatpush1.bf16.msra.mxu0 %v1674
      %1722 = vmatprep.subr.bf16.mxu0 %v1678
      %1723 = vmatpush1.bf16.msra.mxu0 %v1677
      %1724 = vmatprep.subr.bf16.mxu0 %v1681
      %1725 = vmatpush1.bf16.msra.mxu0 %v1680
      %1726 = vmatprep.subr.bf16.mxu0 %v1684
      %1727 = vmatpush1.bf16.msra.mxu0 %v1683
      %1728 = vmatprep.subr.bf16.mxu0 %v1687
      %1729 = vmatpush1.bf16.msra.mxu0 %v1686
      %1730 = vmatprep.subr.bf16.mxu0 %v1690
      %1731 = vmatpush1.bf16.msra.mxu0 %v1689
      %1732 = vmatprep.subr.bf16.mxu0 0
      %1733 = vmatpush1.bf16.msra.mxu0 0
      %1734 = vmatprep.subr.bf16.mxu0 0
      %1735 = vmatpush1.bf16.msra.mxu0 0
      %1736 = vmatprep.subr.bf16.mxu0 0
      %1737 = vmatpush1.bf16.msra.mxu0 0
      %1738 = vmatprep.subr.bf16.mxu0 0
      %1739 = vmatpush1.bf16.msra.mxu0 0
      %1740 = vmatprep.subr.bf16.mxu0 0
      %1741 = vmatpush1.bf16.msra.mxu0 0
      %1742 = vmatprep.subr.bf16.mxu0 0
      %1743 = vmatpush1.bf16.msra.mxu0 0
      %1744 = vmatprep.subr.bf16.mxu0 0
      %1745 = vmatpush1.bf16.msra.mxu0 0
      %1746 = vmatprep.subr.bf16.mxu0 0
      %1747 = vmatpush1.bf16.msra.mxu0 0
      %1748 = vmatprep.mubr.bf16.mxu0 0
      %1749 = vmatmul.mubr.bf16.gmra.mrb[0].mxu0 %v1570
      %v1750 = vpop.f32.mrb[0].mxu0
      %v1751 = vadd.f32 %v1576, %v1750
      %v1752 = vpop.f32.mrb[0].mxu0
      %v1753 = vadd.f32 %v1580, %v1752
      %v1754 = vpop.f32.mrb[0].mxu0
      %v1755 = vadd.f32 %v1576, %v1754
      %v1756 = vpop.f32.mrb[0].mxu0
      %v1757 = vadd.f32 %v1580, %v1756
      %1758 = vdwg.mxu0
      %1759 = vmatprep.subr.bf16.mxu0 0
      %1760 = vmatpush1.bf16.msra.mxu0 %v1670
      %1761 = vmatprep.subr.bf16.mxu0 0
      %1762 = vmatpush1.bf16.msra.mxu0 %v1673
      %1763 = vmatprep.subr.bf16.mxu0 0
      %1764 = vmatpush1.bf16.msra.mxu0 %v1676
      %1765 = vmatprep.subr.bf16.mxu0 0
      %1766 = vmatpush1.bf16.msra.mxu0 %v1679
      %1767 = vmatprep.subr.bf16.mxu0 0
      %1768 = vmatpush1.bf16.msra.mxu0 %v1682
      %1769 = vmatprep.subr.bf16.mxu0 0
      %1770 = vmatpush1.bf16.msra.mxu0 %v1685
      %1771 = vmatprep.subr.bf16.mxu0 0
      %1772 = vmatpush1.bf16.msra.mxu0 %v1688
      %1773 = vmatprep.subr.bf16.mxu0 0
      %1774 = vmatpush1.bf16.msra.mxu0 %v1691
      %1775 = vmatprep.subr.bf16.mxu0 0
      %1776 = vmatpush1.bf16.msra.mxu0 0
      %1777 = vmatprep.subr.bf16.mxu0 0
      %1778 = vmatpush1.bf16.msra.mxu0 0
      %1779 = vmatprep.subr.bf16.mxu0 0
      %1780 = vmatpush1.bf16.msra.mxu0 0
      %1781 = vmatprep.subr.bf16.mxu0 0
      %1782 = vmatpush1.bf16.msra.mxu0 0
      %1783 = vmatprep.subr.bf16.mxu0 0
      %1784 = vmatpush1.bf16.msra.mxu0 0
      %1785 = vmatprep.subr.bf16.mxu0 0
      %1786 = vmatpush1.bf16.msra.mxu0 0
      %1787 = vmatprep.subr.bf16.mxu0 0
      %1788 = vmatpush1.bf16.msra.mxu0 0
      %1789 = vmatprep.subr.bf16.mxu0 0
      %1790 = vmatpush1.bf16.msra.mxu0 0
      %1791 = vmatprep.mubr.bf16.mxu0 0
      %1792 = vmatmul.mubr.bf16.gmra.mrb[0].mxu0 %v1570
      %v1793 = vpop.f32.mrb[0].mxu0
      %v1794 = vadd.f32 %v1584, %v1793
      %v1795 = vpop.f32.mrb[0].mxu0
      %v1796 = vpop.f32.mrb[0].mxu0
      %v1797 = vadd.f32 %v1584, %v1796
      %v1798 = vpop.f32.mrb[0].mxu0
      %1799 = vdwg.mxu0
      %v1800 = vpack.c.bf16 %v1751, %v1751
      %v1801 = vpack.c.bf16 %v1755, %v1755
      %v1802 = vpack.c.bf16 %v1753, %v1753
      %v1803 = vpack.c.bf16 %v1757, %v1757
      %vm1804 = vcmask 261120
      %v1806 = vsel %vm1804, %v1800, 0
      %v1809 = vsel %vm1804, %v1802, 0
      %1811 = vmatprep.subr.bf16.mxu0 0
      %1812 = vmatpush1.bf16.xpose.msra.mxu0 %v1809
      %1813 = vmatprep.subr.bf16.mxu0 0
      %1814 = vmatpush1.bf16.xpose.msra.mxu0 0
      %1815 = vmatprep.subr.bf16.mxu0 0
      %1816 = vmatpush1.bf16.xpose.msra.mxu0 0
      %1817 = vmatprep.subr.bf16.mxu0 0
      %1818 = vmatpush1.bf16.xpose.msra.mxu0 0
      %1819 = vmatprep.subr.bf16.mxu0 0
      %1820 = vmatpush1.bf16.xpose.msra.mxu0 0
      %1821 = vmatprep.subr.bf16.mxu0 0
      %1822 = vmatpush1.bf16.xpose.msra.mxu0 0
      %1823 = vmatprep.subr.bf16.mxu0 0
      %1824 = vmatpush1.bf16.xpose.msra.mxu0 0
      %1825 = vmatprep.subr.bf16.mxu0 0
      %1826 = vmatpush1.bf16.xpose.msra.mxu0 0
      %1827 = vmatprep.subr.bf16.mxu0 0
      %1828 = vmatpush1.bf16.xpose.msra.mxu0 0
      %1829 = vmatprep.subr.bf16.mxu0 0
      %1830 = vmatpush1.bf16.xpose.msra.mxu0 0
      %1831 = vmatprep.subr.bf16.mxu0 0
      %1832 = vmatpush1.bf16.xpose.msra.mxu0 0
      %1833 = vmatprep.subr.bf16.mxu0 0
      %1834 = vmatpush1.bf16.xpose.msra.mxu0 0
      %1835 = vmatprep.subr.bf16.mxu0 0
      %1836 = vmatpush1.bf16.xpose.msra.mxu0 0
      %1837 = vmatprep.subr.bf16.mxu0 0
      %1838 = vmatpush1.bf16.xpose.msra.mxu0 0
      %1839 = vmatprep.subr.bf16.mxu0 0
      %1840 = vmatpush1.bf16.xpose.msra.mxu0 0
      %1841 = vmatprep.subr.bf16.mxu0 0
      %1842 = vmatpush1.bf16.xpose.msra.mxu0 0
      %1843 = vmatprep.mubr.bf16.mxu0 0
      %1844 = vmatmul.mubr.bf16.gmra.mrb[0].mxu0 %v1806
      %v1845 = vpop.f32.mrb[0].mxu0
      %v1846 = vadd.f32 0.0, %v1845
      %v1847 = vpop.f32.mrb[0].mxu0
      %v1848 = vpop.f32.mrb[0].mxu0
      %v1849 = vpop.f32.mrb[0].mxu0
      %1850 = vdwg.mxu0
      %v1852 = vsel %vm1804, %v1801, 0
      %v1855 = vsel %vm1804, %v1803, 0
      %1857 = vmatprep.subr.bf16.mxu0 0
      %1858 = vmatpush1.bf16.xpose.msra.mxu0 %v1855
      %1859 = vmatprep.subr.bf16.mxu0 0
      %1860 = vmatpush1.bf16.xpose.msra.mxu0 0
      %1861 = vmatprep.subr.bf16.mxu0 0
      %1862 = vmatpush1.bf16.xpose.msra.mxu0 0
      %1863 = vmatprep.subr.bf16.mxu0 0
      %1864 = vmatpush1.bf16.xpose.msra.mxu0 0
      %1865 = vmatprep.subr.bf16.mxu0 0
      %1866 = vmatpush1.bf16.xpose.msra.mxu0 0
      %1867 = vmatprep.subr.bf16.mxu0 0
      %1868 = vmatpush1.bf16.xpose.msra.mxu0 0
      %1869 = vmatprep.subr.bf16.mxu0 0
      %1870 = vmatpush1.bf16.xpose.msra.mxu0 0
      %1871 = vmatprep.subr.bf16.mxu0 0
      %1872 = vmatpush1.bf16.xpose.msra.mxu0 0
      %1873 = vmatprep.subr.bf16.mxu0 0
      %1874 = vmatpush1.bf16.xpose.msra.mxu0 0
      %1875 = vmatprep.subr.bf16.mxu0 0
      %1876 = vmatpush1.bf16.xpose.msra.mxu0 0
      %1877 = vmatprep.subr.bf16.mxu0 0
      %1878 = vmatpush1.bf16.xpose.msra.mxu0 0
      %1879 = vmatprep.subr.bf16.mxu0 0
      %1880 = vmatpush1.bf16.xpose.msra.mxu0 0
      %1881 = vmatprep.subr.bf16.mxu0 0
      %1882 = vmatpush1.bf16.xpose.msra.mxu0 0
      %1883 = vmatprep.subr.bf16.mxu0 0
      %1884 = vmatpush1.bf16.xpose.msra.mxu0 0
      %1885 = vmatprep.subr.bf16.mxu0 0
      %1886 = vmatpush1.bf16.xpose.msra.mxu0 0
      %1887 = vmatprep.subr.bf16.mxu0 0
      %1888 = vmatpush1.bf16.xpose.msra.mxu0 0
      %1889 = vmatprep.mubr.bf16.mxu0 0
      %1890 = vmatmul.mubr.bf16.gmra.mrb[0].mxu0 %v1852
      %v1891 = vpop.f32.mrb[0].mxu0
      %v1892 = vadd.f32 0.0, %v1891
      %v1893 = vpop.f32.mrb[0].mxu0
      %v1894 = vpop.f32.mrb[0].mxu0
      %v1895 = vpop.f32.mrb[0].mxu0
      %1896 = vdwg.mxu0
      %1898 = vrot.lane.b32.xlu0 %v1800, 96
      %v1899 = vpop.permute.xlu0 %1898
      %1901 = vrot.lane.b32.xlu0 %v1802, 96
      %v1902 = vpop.permute.xlu0 %1901
      %v1904 = vsel %vm1804, %v1899, 0
      %v1907 = vsel %vm1804, %v1902, 0
      %1909 = vmatprep.subr.bf16.mxu0 0
      %1910 = vmatpush1.bf16.xpose.msra.mxu0 %v1907
      %1911 = vmatprep.subr.bf16.mxu0 0
      %1912 = vmatpush1.bf16.xpose.msra.mxu0 0
      %1913 = vmatprep.subr.bf16.mxu0 0
      %1914 = vmatpush1.bf16.xpose.msra.mxu0 0
      %1915 = vmatprep.subr.bf16.mxu0 0
      %1916 = vmatpush1.bf16.xpose.msra.mxu0 0
      %1917 = vmatprep.subr.bf16.mxu0 0
      %1918 = vmatpush1.bf16.xpose.msra.mxu0 0
      %1919 = vmatprep.subr.bf16.mxu0 0
      %1920 = vmatpush1.bf16.xpose.msra.mxu0 0
      %1921 = vmatprep.subr.bf16.mxu0 0
      %1922 = vmatpush1.bf16.xpose.msra.mxu0 0
      %1923 = vmatprep.subr.bf16.mxu0 0
      %1924 = vmatpush1.bf16.xpose.msra.mxu0 0
      %1925 = vmatprep.subr.bf16.mxu0 0
      %1926 = vmatpush1.bf16.xpose.msra.mxu0 0
      %1927 = vmatprep.subr.bf16.mxu0 0
      %1928 = vmatpush1.bf16.xpose.msra.mxu0 0
      %1929 = vmatprep.subr.bf16.mxu0 0
      %1930 = vmatpush1.bf16.xpose.msra.mxu0 0
      %1931 = vmatprep.subr.bf16.mxu0 0
      %1932 = vmatpush1.bf16.xpose.msra.mxu0 0
      %1933 = vmatprep.subr.bf16.mxu0 0
      %1934 = vmatpush1.bf16.xpose.msra.mxu0 0
      %1935 = vmatprep.subr.bf16.mxu0 0
      %1936 = vmatpush1.bf16.xpose.msra.mxu0 0
      %1937 = vmatprep.subr.bf16.mxu0 0
      %1938 = vmatpush1.bf16.xpose.msra.mxu0 0
      %1939 = vmatprep.subr.bf16.mxu0 0
      %1940 = vmatpush1.bf16.xpose.msra.mxu0 0
      %1941 = vmatprep.mubr.bf16.mxu0 0
      %1942 = vmatmul.mubr.bf16.gmra.mrb[0].mxu0 %v1904
      %v1943 = vpop.f32.mrb[0].mxu0
      %v1944 = vadd.f32 0.0, %v1943
      %v1945 = vpop.f32.mrb[0].mxu0
      %v1946 = vpop.f32.mrb[0].mxu0
      %v1947 = vpop.f32.mrb[0].mxu0
      %1948 = vdwg.mxu0
      %1950 = vrot.lane.b32.xlu0 %v1801, 96
      %v1951 = vpop.permute.xlu0 %1950
      %1953 = vrot.lane.b32.xlu0 %v1803, 96
      %v1954 = vpop.permute.xlu0 %1953
      %v1956 = vsel %vm1804, %v1951, 0
      %v1959 = vsel %vm1804, %v1954, 0
      %1961 = vmatprep.subr.bf16.mxu0 0
      %1962 = vmatpush1.bf16.xpose.msra.mxu0 %v1959
      %1963 = vmatprep.subr.bf16.mxu0 0
      %1964 = vmatpush1.bf16.xpose.msra.mxu0 0
      %1965 = vmatprep.subr.bf16.mxu0 0
      %1966 = vmatpush1.bf16.xpose.msra.mxu0 0
      %1967 = vmatprep.subr.bf16.mxu0 0
      %1968 = vmatpush1.bf16.xpose.msra.mxu0 0
      %1969 = vmatprep.subr.bf16.mxu0 0
      %1970 = vmatpush1.bf16.xpose.msra.mxu0 0
      %1971 = vmatprep.subr.bf16.mxu0 0
      %1972 = vmatpush1.bf16.xpose.msra.mxu0 0
      %1973 = vmatprep.subr.bf16.mxu0 0
      %1974 = vmatpush1.bf16.xpose.msra.mxu0 0
      %1975 = vmatprep.subr.bf16.mxu0 0
      %1976 = vmatpush1.bf16.xpose.msra.mxu0 0
      %1977 = vmatprep.subr.bf16.mxu0 0
      %1978 = vmatpush1.bf16.xpose.msra.mxu0 0
      %1979 = vmatprep.subr.bf16.mxu0 0
      %1980 = vmatpush1.bf16.xpose.msra.mxu0 0
      %1981 = vmatprep.subr.bf16.mxu0 0
      %1982 = vmatpush1.bf16.xpose.msra.mxu0 0
      %1983 = vmatprep.subr.bf16.mxu0 0
      %1984 = vmatpush1.bf16.xpose.msra.mxu0 0
      %1985 = vmatprep.subr.bf16.mxu0 0
      %1986 = vmatpush1.bf16.xpose.msra.mxu0 0
      %1987 = vmatprep.subr.bf16.mxu0 0
      %1988 = vmatpush1.bf16.xpose.msra.mxu0 0
      %1989 = vmatprep.subr.bf16.mxu0 0
      %1990 = vmatpush1.bf16.xpose.msra.mxu0 0
      %1991 = vmatprep.subr.bf16.mxu0 0
      %1992 = vmatpush1.bf16.xpose.msra.mxu0 0
      %1993 = vmatprep.mubr.bf16.mxu0 0
      %1994 = vmatmul.mubr.bf16.gmra.mrb[0].mxu0 %v1956
      %v1995 = vpop.f32.mrb[0].mxu0
      %v1996 = vadd.f32 0.0, %v1995
      %v1997 = vpop.f32.mrb[0].mxu0
      %v1998 = vpop.f32.mrb[0].mxu0
      %v1999 = vpop.f32.mrb[0].mxu0
      %2000 = vdwg.mxu0
      %2001 = vrot.lane.b32.xlu0 %v1800, 64
      %v2002 = vpop.permute.xlu0 %2001
      %2003 = vrot.lane.b32.xlu0 %v1802, 64
      %v2004 = vpop.permute.xlu0 %2003
      %v2006 = vsel %vm1804, %v2002, 0
      %v2009 = vsel %vm1804, %v2004, 0
      %2011 = vmatprep.subr.bf16.mxu0 0
      %2012 = vmatpush1.bf16.xpose.msra.mxu0 %v2009
      %2013 = vmatprep.subr.bf16.mxu0 0
      %2014 = vmatpush1.bf16.xpose.msra.mxu0 0
      %2015 = vmatprep.subr.bf16.mxu0 0
      %2016 = vmatpush1.bf16.xpose.msra.mxu0 0
      %2017 = vmatprep.subr.bf16.mxu0 0
      %2018 = vmatpush1.bf16.xpose.msra.mxu0 0
      %2019 = vmatprep.subr.bf16.mxu0 0
      %2020 = vmatpush1.bf16.xpose.msra.mxu0 0
      %2021 = vmatprep.subr.bf16.mxu0 0
      %2022 = vmatpush1.bf16.xpose.msra.mxu0 0
      %2023 = vmatprep.subr.bf16.mxu0 0
      %2024 = vmatpush1.bf16.xpose.msra.mxu0 0
      %2025 = vmatprep.subr.bf16.mxu0 0
      %2026 = vmatpush1.bf16.xpose.msra.mxu0 0
      %2027 = vmatprep.subr.bf16.mxu0 0
      %2028 = vmatpush1.bf16.xpose.msra.mxu0 0
      %2029 = vmatprep.subr.bf16.mxu0 0
      %2030 = vmatpush1.bf16.xpose.msra.mxu0 0
      %2031 = vmatprep.subr.bf16.mxu0 0
      %2032 = vmatpush1.bf16.xpose.msra.mxu0 0
      %2033 = vmatprep.subr.bf16.mxu0 0
      %2034 = vmatpush1.bf16.xpose.msra.mxu0 0
      %2035 = vmatprep.subr.bf16.mxu0 0
      %2036 = vmatpush1.bf16.xpose.msra.mxu0 0
      %2037 = vmatprep.subr.bf16.mxu0 0
      %2038 = vmatpush1.bf16.xpose.msra.mxu0 0
      %2039 = vmatprep.subr.bf16.mxu0 0
      %2040 = vmatpush1.bf16.xpose.msra.mxu0 0
      %2041 = vmatprep.subr.bf16.mxu0 0
      %2042 = vmatpush1.bf16.xpose.msra.mxu0 0
      %2043 = vmatprep.mubr.bf16.mxu0 0
      %2044 = vmatmul.mubr.bf16.gmra.mrb[0].mxu0 %v2006
      %v2045 = vpop.f32.mrb[0].mxu0
      %v2046 = vadd.f32 0.0, %v2045
      %v2047 = vpop.f32.mrb[0].mxu0
      %v2048 = vpop.f32.mrb[0].mxu0
      %v2049 = vpop.f32.mrb[0].mxu0
      %2050 = vdwg.mxu0
      %2051 = vrot.lane.b32.xlu0 %v1801, 64
      %v2052 = vpop.permute.xlu0 %2051
      %2053 = vrot.lane.b32.xlu0 %v1803, 64
      %v2054 = vpop.permute.xlu0 %2053
      %v2056 = vsel %vm1804, %v2052, 0
      %v2059 = vsel %vm1804, %v2054, 0
      %2061 = vmatprep.subr.bf16.mxu0 0
      %2062 = vmatpush1.bf16.xpose.msra.mxu0 %v2059
      %2063 = vmatprep.subr.bf16.mxu0 0
      %2064 = vmatpush1.bf16.xpose.msra.mxu0 0
      %2065 = vmatprep.subr.bf16.mxu0 0
      %2066 = vmatpush1.bf16.xpose.msra.mxu0 0
      %2067 = vmatprep.subr.bf16.mxu0 0
      %2068 = vmatpush1.bf16.xpose.msra.mxu0 0
      %2069 = vmatprep.subr.bf16.mxu0 0
      %2070 = vmatpush1.bf16.xpose.msra.mxu0 0
      %2071 = vmatprep.subr.bf16.mxu0 0
      %2072 = vmatpush1.bf16.xpose.msra.mxu0 0
      %2073 = vmatprep.subr.bf16.mxu0 0
      %2074 = vmatpush1.bf16.xpose.msra.mxu0 0
      %2075 = vmatprep.subr.bf16.mxu0 0
      %2076 = vmatpush1.bf16.xpose.msra.mxu0 0
      %2077 = vmatprep.subr.bf16.mxu0 0
      %2078 = vmatpush1.bf16.xpose.msra.mxu0 0
      %2079 = vmatprep.subr.bf16.mxu0 0
      %2080 = vmatpush1.bf16.xpose.msra.mxu0 0
      %2081 = vmatprep.subr.bf16.mxu0 0
      %2082 = vmatpush1.bf16.xpose.msra.mxu0 0
      %2083 = vmatprep.subr.bf16.mxu0 0
      %2084 = vmatpush1.bf16.xpose.msra.mxu0 0
      %2085 = vmatprep.subr.bf16.mxu0 0
      %2086 = vmatpush1.bf16.xpose.msra.mxu0 0
      %2087 = vmatprep.subr.bf16.mxu0 0
      %2088 = vmatpush1.bf16.xpose.msra.mxu0 0
      %2089 = vmatprep.subr.bf16.mxu0 0
      %2090 = vmatpush1.bf16.xpose.msra.mxu0 0
      %2091 = vmatprep.subr.bf16.mxu0 0
      %2092 = vmatpush1.bf16.xpose.msra.mxu0 0
      %2093 = vmatprep.mubr.bf16.mxu0 0
      %2094 = vmatmul.mubr.bf16.gmra.mrb[0].mxu0 %v2056
      %v2095 = vpop.f32.mrb[0].mxu0
      %v2096 = vadd.f32 0.0, %v2095
      %v2097 = vpop.f32.mrb[0].mxu0
      %v2098 = vpop.f32.mrb[0].mxu0
      %v2099 = vpop.f32.mrb[0].mxu0
      %2100 = vdwg.mxu0
      %2101 = vrot.lane.b32.xlu0 %v1800, 32
      %v2102 = vpop.permute.xlu0 %2101
      %2103 = vrot.lane.b32.xlu0 %v1802, 32
      %v2104 = vpop.permute.xlu0 %2103
      %v2106 = vsel %vm1804, %v2102, 0
      %v2109 = vsel %vm1804, %v2104, 0
      %2111 = vmatprep.subr.bf16.mxu0 0
      %2112 = vmatpush1.bf16.xpose.msra.mxu0 %v2109
      %2113 = vmatprep.subr.bf16.mxu0 0
      %2114 = vmatpush1.bf16.xpose.msra.mxu0 0
      %2115 = vmatprep.subr.bf16.mxu0 0
      %2116 = vmatpush1.bf16.xpose.msra.mxu0 0
      %2117 = vmatprep.subr.bf16.mxu0 0
      %2118 = vmatpush1.bf16.xpose.msra.mxu0 0
      %2119 = vmatprep.subr.bf16.mxu0 0
      %2120 = vmatpush1.bf16.xpose.msra.mxu0 0
      %2121 = vmatprep.subr.bf16.mxu0 0
      %2122 = vmatpush1.bf16.xpose.msra.mxu0 0
      %2123 = vmatprep.subr.bf16.mxu0 0
      %2124 = vmatpush1.bf16.xpose.msra.mxu0 0
      %2125 = vmatprep.subr.bf16.mxu0 0
      %2126 = vmatpush1.bf16.xpose.msra.mxu0 0
      %2127 = vmatprep.subr.bf16.mxu0 0
      %2128 = vmatpush1.bf16.xpose.msra.mxu0 0
      %2129 = vmatprep.subr.bf16.mxu0 0
      %2130 = vmatpush1.bf16.xpose.msra.mxu0 0
      %2131 = vmatprep.subr.bf16.mxu0 0
      %2132 = vmatpush1.bf16.xpose.msra.mxu0 0
      %2133 = vmatprep.subr.bf16.mxu0 0
      %2134 = vmatpush1.bf16.xpose.msra.mxu0 0
      %2135 = vmatprep.subr.bf16.mxu0 0
      %2136 = vmatpush1.bf16.xpose.msra.mxu0 0
      %2137 = vmatprep.subr.bf16.mxu0 0
      %2138 = vmatpush1.bf16.xpose.msra.mxu0 0
      %2139 = vmatprep.subr.bf16.mxu0 0
      %2140 = vmatpush1.bf16.xpose.msra.mxu0 0
      %2141 = vmatprep.subr.bf16.mxu0 0
      %2142 = vmatpush1.bf16.xpose.msra.mxu0 0
      %2143 = vmatprep.mubr.bf16.mxu0 0
      %2144 = vmatmul.mubr.bf16.gmra.mrb[0].mxu0 %v2106
      %v2145 = vpop.f32.mrb[0].mxu0
      %v2146 = vadd.f32 0.0, %v2145
      %v2147 = vpop.f32.mrb[0].mxu0
      %v2148 = vpop.f32.mrb[0].mxu0
      %v2149 = vpop.f32.mrb[0].mxu0
      %2150 = vdwg.mxu0
      %2151 = vrot.lane.b32.xlu0 %v1801, 32
      %v2152 = vpop.permute.xlu0 %2151
      %2153 = vrot.lane.b32.xlu0 %v1803, 32
      %v2154 = vpop.permute.xlu0 %2153
      %v2156 = vsel %vm1804, %v2152, 0
      %v2159 = vsel %vm1804, %v2154, 0
      %2161 = vmatprep.subr.bf16.mxu0 0
      %2162 = vmatpush1.bf16.xpose.msra.mxu0 %v2159
      %2163 = vmatprep.subr.bf16.mxu0 0
      %2164 = vmatpush1.bf16.xpose.msra.mxu0 0
      %2165 = vmatprep.subr.bf16.mxu0 0
      %2166 = vmatpush1.bf16.xpose.msra.mxu0 0
      %2167 = vmatprep.subr.bf16.mxu0 0
      %2168 = vmatpush1.bf16.xpose.msra.mxu0 0
      %2169 = vmatprep.subr.bf16.mxu0 0
      %2170 = vmatpush1.bf16.xpose.msra.mxu0 0
      %2171 = vmatprep.subr.bf16.mxu0 0
      %2172 = vmatpush1.bf16.xpose.msra.mxu0 0
      %2173 = vmatprep.subr.bf16.mxu0 0
      %2174 = vmatpush1.bf16.xpose.msra.mxu0 0
      %2175 = vmatprep.subr.bf16.mxu0 0
      %2176 = vmatpush1.bf16.xpose.msra.mxu0 0
      %2177 = vmatprep.subr.bf16.mxu0 0
      %2178 = vmatpush1.bf16.xpose.msra.mxu0 0
      %2179 = vmatprep.subr.bf16.mxu0 0
      %2180 = vmatpush1.bf16.xpose.msra.mxu0 0
      %2181 = vmatprep.subr.bf16.mxu0 0
      %2182 = vmatpush1.bf16.xpose.msra.mxu0 0
      %2183 = vmatprep.subr.bf16.mxu0 0
      %2184 = vmatpush1.bf16.xpose.msra.mxu0 0
      %2185 = vmatprep.subr.bf16.mxu0 0
      %2186 = vmatpush1.bf16.xpose.msra.mxu0 0
      %2187 = vmatprep.subr.bf16.mxu0 0
      %2188 = vmatpush1.bf16.xpose.msra.mxu0 0
      %2189 = vmatprep.subr.bf16.mxu0 0
      %2190 = vmatpush1.bf16.xpose.msra.mxu0 0
      %2191 = vmatprep.subr.bf16.mxu0 0
      %2192 = vmatpush1.bf16.xpose.msra.mxu0 0
      %2193 = vmatprep.mubr.bf16.mxu0 0
      %2194 = vmatmul.mubr.bf16.gmra.mrb[0].mxu0 %v2156
      %v2195 = vpop.f32.mrb[0].mxu0
      %v2196 = vadd.f32 0.0, %v2195
      %v2197 = vpop.f32.mrb[0].mxu0
      %v2198 = vpop.f32.mrb[0].mxu0
      %v2199 = vpop.f32.mrb[0].mxu0
      %2200 = vdwg.mxu0
      %v2201 = vld [vmem:[%s1185] sm:$0x1]
      %v2202 = vld [vmem:[%s1185 + $0x1] sm:$0x1]
      %v2205 = vlaneseq
      %v2206 = vshrl.u32 %v2205, 7
      %v2207 = vsub.s32 0, %v2206
      %v2208 = vrot.slane %v2201, %v2207
      %v2209 = vlaneseq
      %v2210 = vshrl.u32 %v2209, 7
      %v2211 = vsub.s32 0, %v2210
      %v2212 = vrot.slane %v2202, %v2211
      %v2215 = vadd.f32 %v1846, %v2208
      %v2216 = vadd.f32 %v1944, %v2208
      %v2217 = vadd.f32 %v2046, %v2208
      %v2218 = vadd.f32 %v2146, %v2208
      %v2219 = vadd.f32 %v1892, %v2212
      %v2220 = vadd.f32 %v1996, %v2212
      %v2221 = vadd.f32 %v2096, %v2212
      %v2222 = vadd.f32 %v2196, %v2212
      %vm2223 = vcmask 64512
      %v2224 = vsel %vm2223, %v2215, -inf
      %2225 = vmax.xlane.f32.xlu0 %v2224
      %v2226 = vpop.xlane.xlu0 %2225
      %v2227 = vsel %vm2223, %v2216, -inf
      %2228 = vmax.xlane.f32.xlu0 %v2227
      %v2229 = vpop.xlane.xlu0 %2228
      %v2230 = vsel %vm2223, %v2217, -inf
      %2231 = vmax.xlane.f32.xlu0 %v2230
      %v2232 = vpop.xlane.xlu0 %2231
      %v2233 = vsel %vm2223, %v2218, -inf
      %2234 = vmax.xlane.f32.xlu0 %v2233
      %v2235 = vpop.xlane.xlu0 %2234
      %v2236 = vsel %vm2223, %v2219, -inf
      %2237 = vmax.xlane.f32.xlu0 %v2236
      %v2238 = vpop.xlane.xlu0 %2237
      %v2239 = vsel %vm2223, %v2220, -inf
      %2240 = vmax.xlane.f32.xlu0 %v2239
      %v2241 = vpop.xlane.xlu0 %2240
      %v2242 = vsel %vm2223, %v2221, -inf
      %2243 = vmax.xlane.f32.xlu0 %v2242
      %v2244 = vpop.xlane.xlu0 %2243
      %v2245 = vsel %vm2223, %v2222, -inf
      %2246 = vmax.xlane.f32.xlu0 %v2245
      %v2247 = vpop.xlane.xlu0 %2246
      %v2248 = vsub.f32 %v2215, %v2226
      %v2249 = vsub.f32 %v2216, %v2229
      %v2250 = vsub.f32 %v2217, %v2232
      %v2251 = vsub.f32 %v2218, %v2235
      %v2252 = vsub.f32 %v2219, %v2238
      %v2253 = vsub.f32 %v2220, %v2241
      %v2254 = vsub.f32 %v2221, %v2244
      %v2255 = vsub.f32 %v2222, %v2247
      %v2256 = vmul.f32 %v2248, 1.442695
      %v2257 = vpow.pop %v2256
      %v2258 = vmul.f32 %v2249, 1.442695
      %v2259 = vpow.pop %v2258
      %v2260 = vmul.f32 %v2250, 1.442695
      %v2261 = vpow.pop %v2260
      %v2262 = vmul.f32 %v2251, 1.442695
      %v2263 = vpow.pop %v2262
      %v2264 = vmul.f32 %v2252, 1.442695
      %v2265 = vpow.pop %v2264
      %v2266 = vmul.f32 %v2253, 1.442695
      %v2267 = vpow.pop %v2266
      %v2268 = vmul.f32 %v2254, 1.442695
      %v2269 = vpow.pop %v2268
      %v2270 = vmul.f32 %v2255, 1.442695
      %v2271 = vpow.pop %v2270
      %v2272 = vsel %vm2223, %v2257, 0.0
      %2273 = vadd.xlane.f32.xlu0 %v2272
      %v2274 = vpop.xlane.xlu0 %2273
      %v2275 = vsel %vm2223, %v2259, 0.0
      %2276 = vadd.xlane.f32.xlu0 %v2275
      %v2277 = vpop.xlane.xlu0 %2276
      %v2278 = vsel %vm2223, %v2261, 0.0
      %2279 = vadd.xlane.f32.xlu0 %v2278
      %v2280 = vpop.xlane.xlu0 %2279
      %v2281 = vsel %vm2223, %v2263, 0.0
      %2282 = vadd.xlane.f32.xlu0 %v2281
      %v2283 = vpop.xlane.xlu0 %2282
      %v2284 = vsel %vm2223, %v2265, 0.0
      %2285 = vadd.xlane.f32.xlu0 %v2284
      %v2286 = vpop.xlane.xlu0 %2285
      %v2287 = vsel %vm2223, %v2267, 0.0
      %2288 = vadd.xlane.f32.xlu0 %v2287
      %v2289 = vpop.xlane.xlu0 %2288
      %v2290 = vsel %vm2223, %v2269, 0.0
      %2291 = vadd.xlane.f32.xlu0 %v2290
      %v2292 = vpop.xlane.xlu0 %2291
      %v2293 = vsel %vm2223, %v2271, 0.0
      %2294 = vadd.xlane.f32.xlu0 %v2293
      %v2295 = vpop.xlane.xlu0 %2294
      %v2296 = vrcp.pop %v2274
      %v2297 = vrcp.pop %v2277
      %v2298 = vrcp.pop %v2280
      %v2299 = vrcp.pop %v2283
      %v2300 = vrcp.pop %v2286
      %v2301 = vrcp.pop %v2289
      %v2302 = vrcp.pop %v2292
      %v2303 = vrcp.pop %v2295
      %v2304 = vmul.f32 %v2257, %v2296
      %v2305 = vmul.f32 %v2259, %v2297
      %v2306 = vmul.f32 %v2261, %v2298
      %v2307 = vmul.f32 %v2263, %v2299
      %v2308 = vmul.f32 %v2265, %v2300
      %v2309 = vmul.f32 %v2267, %v2301
      %v2310 = vmul.f32 %v2269, %v2302
      %v2311 = vmul.f32 %v2271, %v2303
      %v2312 = vpack.c.bf16 %v1794, %v1794
      %v2313 = vpack.c.bf16 %v1797, %v1797
      %v2314 = vpack.c.bf16 %v2304, %v2304
      %v2315 = vpack.c.bf16 %v2308, %v2308
      %v2317 = vsel %vm2223, %v2314, 0
      %vm2319 = vcmask 1043456
      %v2321 = vsel %vm2319, %v2312, 0
      %2323 = vmatprep.subr.bf16.mxu0 0
      %2324 = vmatpush1.bf16.msra.mxu0 %v2321
      %2325 = vmatprep.subr.bf16.mxu0 0
      %2326 = vmatpush1.bf16.msra.mxu0 0
      %2327 = vmatprep.subr.bf16.mxu0 0
      %2328 = vmatpush1.bf16.msra.mxu0 0
      %2329 = vmatprep.subr.bf16.mxu0 0
      %2330 = vmatpush1.bf16.msra.mxu0 0
      %2331 = vmatprep.subr.bf16.mxu0 0
      %2332 = vmatpush1.bf16.msra.mxu0 0
      %2333 = vmatprep.subr.bf16.mxu0 0
      %2334 = vmatpush1.bf16.msra.mxu0 0
      %2335 = vmatprep.subr.bf16.mxu0 0
      %2336 = vmatpush1.bf16.msra.mxu0 0
      %2337 = vmatprep.subr.bf16.mxu0 0
      %2338 = vmatpush1.bf16.msra.mxu0 0
      %2339 = vmatprep.subr.bf16.mxu0 0
      %2340 = vmatpush1.bf16.msra.mxu0 0
      %2341 = vmatprep.subr.bf16.mxu0 0
      %2342 = vmatpush1.bf16.msra.mxu0 0
      %2343 = vmatprep.subr.bf16.mxu0 0
      %2344 = vmatpush1.bf16.msra.mxu0 0
      %2345 = vmatprep.subr.bf16.mxu0 0
      %2346 = vmatpush1.bf16.msra.mxu0 0
      %2347 = vmatprep.subr.bf16.mxu0 0
      %2348 = vmatpush1.bf16.msra.mxu0 0
      %2349 = vmatprep.subr.bf16.mxu0 0
      %2350 = vmatpush1.bf16.msra.mxu0 0
      %2351 = vmatprep.subr.bf16.mxu0 0
      %2352 = vmatpush1.bf16.msra.mxu0 0
      %2353 = vmatprep.subr.bf16.mxu0 0
      %2354 = vmatpush1.bf16.msra.mxu0 0
      %2355 = vmatprep.mubr.bf16.mxu0 0
      %2356 = vmatmul.mubr.bf16.gmra.mrb[0].mxu0 %v2317
      %v2357 = vpop.f32.mrb[0].mxu0
      %v2358 = vadd.f32 0.0, %v2357
      %v2359 = vpop.f32.mrb[0].mxu0
      %v2360 = vpop.f32.mrb[0].mxu0
      %v2361 = vpop.f32.mrb[0].mxu0
      %2362 = vdwg.mxu0
      %v2364 = vsel %vm2223, %v2315, 0
      %v2367 = vsel %vm2319, %v2313, 0
      %2369 = vmatprep.subr.bf16.mxu0 0
      %2370 = vmatpush1.bf16.msra.mxu0 %v2367
      %2371 = vmatprep.subr.bf16.mxu0 0
      %2372 = vmatpush1.bf16.msra.mxu0 0
      %2373 = vmatprep.subr.bf16.mxu0 0
      %2374 = vmatpush1.bf16.msra.mxu0 0
      %2375 = vmatprep.subr.bf16.mxu0 0
      %2376 = vmatpush1.bf16.msra.mxu0 0
      %2377 = vmatprep.subr.bf16.mxu0 0
      %2378 = vmatpush1.bf16.msra.mxu0 0
      %2379 = vmatprep.subr.bf16.mxu0 0
      %2380 = vmatpush1.bf16.msra.mxu0 0
      %2381 = vmatprep.subr.bf16.mxu0 0
      %2382 = vmatpush1.bf16.msra.mxu0 0
      %2383 = vmatprep.subr.bf16.mxu0 0
      %2384 = vmatpush1.bf16.msra.mxu0 0
      %2385 = vmatprep.subr.bf16.mxu0 0
      %2386 = vmatpush1.bf16.msra.mxu0 0
      %2387 = vmatprep.subr.bf16.mxu0 0
      %2388 = vmatpush1.bf16.msra.mxu0 0
      %2389 = vmatprep.subr.bf16.mxu0 0
      %2390 = vmatpush1.bf16.msra.mxu0 0
      %2391 = vmatprep.subr.bf16.mxu0 0
      %2392 = vmatpush1.bf16.msra.mxu0 0
      %2393 = vmatprep.subr.bf16.mxu0 0
      %2394 = vmatpush1.bf16.msra.mxu0 0
      %2395 = vmatprep.subr.bf16.mxu0 0
      %2396 = vmatpush1.bf16.msra.mxu0 0
      %2397 = vmatprep.subr.bf16.mxu0 0
      %2398 = vmatpush1.bf16.msra.mxu0 0
      %2399 = vmatprep.subr.bf16.mxu0 0
      %2400 = vmatpush1.bf16.msra.mxu0 0
      %2401 = vmatprep.mubr.bf16.mxu0 0
      %2402 = vmatmul.mubr.bf16.gmra.mrb[0].mxu0 %v2364
      %v2403 = vpop.f32.mrb[0].mxu0
      %v2404 = vadd.f32 0.0, %v2403
      %v2405 = vpop.f32.mrb[0].mxu0
      %v2406 = vpop.f32.mrb[0].mxu0
      %v2407 = vpop.f32.mrb[0].mxu0
      %2408 = vdwg.mxu0
      %v2409 = vpack.c.bf16 %v2305, %v2305
      %v2410 = vpack.c.bf16 %v2309, %v2309
      %2412 = vrot.lane.b32.xlu0 %v2312, 96
      %v2413 = vpop.permute.xlu0 %2412
      %v2415 = vsel %vm2223, %v2409, 0
      %v2418 = vsel %vm2319, %v2413, 0
      %2420 = vmatprep.subr.bf16.mxu0 0
      %2421 = vmatpush1.bf16.msra.mxu0 %v2418
      %2422 = vmatprep.subr.bf16.mxu0 0
      %2423 = vmatpush1.bf16.msra.mxu0 0
      %2424 = vmatprep.subr.bf16.mxu0 0
      %2425 = vmatpush1.bf16.msra.mxu0 0
      %2426 = vmatprep.subr.bf16.mxu0 0
      %2427 = vmatpush1.bf16.msra.mxu0 0
      %2428 = vmatprep.subr.bf16.mxu0 0
      %2429 = vmatpush1.bf16.msra.mxu0 0
      %2430 = vmatprep.subr.bf16.mxu0 0
      %2431 = vmatpush1.bf16.msra.mxu0 0
      %2432 = vmatprep.subr.bf16.mxu0 0
      %2433 = vmatpush1.bf16.msra.mxu0 0
      %2434 = vmatprep.subr.bf16.mxu0 0
      %2435 = vmatpush1.bf16.msra.mxu0 0
      %2436 = vmatprep.subr.bf16.mxu0 0
      %2437 = vmatpush1.bf16.msra.mxu0 0
      %2438 = vmatprep.subr.bf16.mxu0 0
      %2439 = vmatpush1.bf16.msra.mxu0 0
      %2440 = vmatprep.subr.bf16.mxu0 0
      %2441 = vmatpush1.bf16.msra.mxu0 0
      %2442 = vmatprep.subr.bf16.mxu0 0
      %2443 = vmatpush1.bf16.msra.mxu0 0
      %2444 = vmatprep.subr.bf16.mxu0 0
      %2445 = vmatpush1.bf16.msra.mxu0 0
      %2446 = vmatprep.subr.bf16.mxu0 0
      %2447 = vmatpush1.bf16.msra.mxu0 0
      %2448 = vmatprep.subr.bf16.mxu0 0
      %2449 = vmatpush1.bf16.msra.mxu0 0
      %2450 = vmatprep.subr.bf16.mxu0 0
      %2451 = vmatpush1.bf16.msra.mxu0 0
      %2452 = vmatprep.mubr.bf16.mxu0 0
      %2453 = vmatmul.mubr.bf16.gmra.mrb[0].mxu0 %v2415
      %v2454 = vpop.f32.mrb[0].mxu0
      %v2455 = vadd.f32 0.0, %v2454
      %v2456 = vpop.f32.mrb[0].mxu0
      %v2457 = vpop.f32.mrb[0].mxu0
      %v2458 = vpop.f32.mrb[0].mxu0
      %2459 = vdwg.mxu0
      %2461 = vrot.lane.b32.xlu0 %v2313, 96
      %v2462 = vpop.permute.xlu0 %2461
      %v2464 = vsel %vm2223, %v2410, 0
      %v2467 = vsel %vm2319, %v2462, 0
      %2469 = vmatprep.subr.bf16.mxu0 0
      %2470 = vmatpush1.bf16.msra.mxu0 %v2467
      %2471 = vmatprep.subr.bf16.mxu0 0
      %2472 = vmatpush1.bf16.msra.mxu0 0
      %2473 = vmatprep.subr.bf16.mxu0 0
      %2474 = vmatpush1.bf16.msra.mxu0 0
      %2475 = vmatprep.subr.bf16.mxu0 0
      %2476 = vmatpush1.bf16.msra.mxu0 0
      %2477 = vmatprep.subr.bf16.mxu0 0
      %2478 = vmatpush1.bf16.msra.mxu0 0
      %2479 = vmatprep.subr.bf16.mxu0 0
      %2480 = vmatpush1.bf16.msra.mxu0 0
      %2481 = vmatprep.subr.bf16.mxu0 0
      %2482 = vmatpush1.bf16.msra.mxu0 0
      %2483 = vmatprep.subr.bf16.mxu0 0
      %2484 = vmatpush1.bf16.msra.mxu0 0
      %2485 = vmatprep.subr.bf16.mxu0 0
      %2486 = vmatpush1.bf16.msra.mxu0 0
      %2487 = vmatprep.subr.bf16.mxu0 0
      %2488 = vmatpush1.bf16.msra.mxu0 0
      %2489 = vmatprep.subr.bf16.mxu0 0
      %2490 = vmatpush1.bf16.msra.mxu0 0
      %2491 = vmatprep.subr.bf16.mxu0 0
      %2492 = vmatpush1.bf16.msra.mxu0 0
      %2493 = vmatprep.subr.bf16.mxu0 0
      %2494 = vmatpush1.bf16.msra.mxu0 0
      %2495 = vmatprep.subr.bf16.mxu0 0
      %2496 = vmatpush1.bf16.msra.mxu0 0
      %2497 = vmatprep.subr.bf16.mxu0 0
      %2498 = vmatpush1.bf16.msra.mxu0 0
      %2499 = vmatprep.subr.bf16.mxu0 0
      %2500 = vmatpush1.bf16.msra.mxu0 0
      %2501 = vmatprep.mubr.bf16.mxu0 0
      %2502 = vmatmul.mubr.bf16.gmra.mrb[0].mxu0 %v2464
      %v2503 = vpop.f32.mrb[0].mxu0
      %v2504 = vadd.f32 0.0, %v2503
      %v2505 = vpop.f32.mrb[0].mxu0
      %v2506 = vpop.f32.mrb[0].mxu0
      %v2507 = vpop.f32.mrb[0].mxu0
      %2508 = vdwg.mxu0
      %v2509 = vpack.c.bf16 %v2306, %v2306
      %v2510 = vpack.c.bf16 %v2310, %v2310
      %2511 = vrot.lane.b32.xlu0 %v2312, 64
      %v2512 = vpop.permute.xlu0 %2511
      %v2514 = vsel %vm2223, %v2509, 0
      %v2517 = vsel %vm2319, %v2512, 0
      %2519 = vmatprep.subr.bf16.mxu0 0
      %2520 = vmatpush1.bf16.msra.mxu0 %v2517
      %2521 = vmatprep.subr.bf16.mxu0 0
      %2522 = vmatpush1.bf16.msra.mxu0 0
      %2523 = vmatprep.subr.bf16.mxu0 0
      %2524 = vmatpush1.bf16.msra.mxu0 0
      %2525 = vmatprep.subr.bf16.mxu0 0
      %2526 = vmatpush1.bf16.msra.mxu0 0
      %2527 = vmatprep.subr.bf16.mxu0 0
      %2528 = vmatpush1.bf16.msra.mxu0 0
      %2529 = vmatprep.subr.bf16.mxu0 0
      %2530 = vmatpush1.bf16.msra.mxu0 0
      %2531 = vmatprep.subr.bf16.mxu0 0
      %2532 = vmatpush1.bf16.msra.mxu0 0
      %2533 = vmatprep.subr.bf16.mxu0 0
      %2534 = vmatpush1.bf16.msra.mxu0 0
      %2535 = vmatprep.subr.bf16.mxu0 0
      %2536 = vmatpush1.bf16.msra.mxu0 0
      %2537 = vmatprep.subr.bf16.mxu0 0
      %2538 = vmatpush1.bf16.msra.mxu0 0
      %2539 = vmatprep.subr.bf16.mxu0 0
      %2540 = vmatpush1.bf16.msra.mxu0 0
      %2541 = vmatprep.subr.bf16.mxu0 0
      %2542 = vmatpush1.bf16.msra.mxu0 0
      %2543 = vmatprep.subr.bf16.mxu0 0
      %2544 = vmatpush1.bf16.msra.mxu0 0
      %2545 = vmatprep.subr.bf16.mxu0 0
      %2546 = vmatpush1.bf16.msra.mxu0 0
      %2547 = vmatprep.subr.bf16.mxu0 0
      %2548 = vmatpush1.bf16.msra.mxu0 0
      %2549 = vmatprep.subr.bf16.mxu0 0
      %2550 = vmatpush1.bf16.msra.mxu0 0
      %2551 = vmatprep.mubr.bf16.mxu0 0
      %2552 = vmatmul.mubr.bf16.gmra.mrb[0].mxu0 %v2514
      %v2553 = vpop.f32.mrb[0].mxu0
      %v2554 = vadd.f32 0.0, %v2553
      %v2555 = vpop.f32.mrb[0].mxu0
      %v2556 = vpop.f32.mrb[0].mxu0
      %v2557 = vpop.f32.mrb[0].mxu0
      %2558 = vdwg.mxu0
      %2559 = vrot.lane.b32.xlu0 %v2313, 64
      %v2560 = vpop.permute.xlu0 %2559
      %v2562 = vsel %vm2223, %v2510, 0
      %v2565 = vsel %vm2319, %v2560, 0
      %2567 = vmatprep.subr.bf16.mxu0 0
      %2568 = vmatpush1.bf16.msra.mxu0 %v2565
      %2569 = vmatprep.subr.bf16.mxu0 0
      %2570 = vmatpush1.bf16.msra.mxu0 0
      %2571 = vmatprep.subr.bf16.mxu0 0
      %2572 = vmatpush1.bf16.msra.mxu0 0
      %2573 = vmatprep.subr.bf16.mxu0 0
      %2574 = vmatpush1.bf16.msra.mxu0 0
      %2575 = vmatprep.subr.bf16.mxu0 0
      %2576 = vmatpush1.bf16.msra.mxu0 0
      %2577 = vmatprep.subr.bf16.mxu0 0
      %2578 = vmatpush1.bf16.msra.mxu0 0
      %2579 = vmatprep.subr.bf16.mxu0 0
      %2580 = vmatpush1.bf16.msra.mxu0 0
      %2581 = vmatprep.subr.bf16.mxu0 0
      %2582 = vmatpush1.bf16.msra.mxu0 0
      %2583 = vmatprep.subr.bf16.mxu0 0
      %2584 = vmatpush1.bf16.msra.mxu0 0
      %2585 = vmatprep.subr.bf16.mxu0 0
      %2586 = vmatpush1.bf16.msra.mxu0 0
      %2587 = vmatprep.subr.bf16.mxu0 0
      %2588 = vmatpush1.bf16.msra.mxu0 0
      %2589 = vmatprep.subr.bf16.mxu0 0
      %2590 = vmatpush1.bf16.msra.mxu0 0
      %2591 = vmatprep.subr.bf16.mxu0 0
      %2592 = vmatpush1.bf16.msra.mxu0 0
      %2593 = vmatprep.subr.bf16.mxu0 0
      %2594 = vmatpush1.bf16.msra.mxu0 0
      %2595 = vmatprep.subr.bf16.mxu0 0
      %2596 = vmatpush1.bf16.msra.mxu0 0
      %2597 = vmatprep.subr.bf16.mxu0 0
      %2598 = vmatpush1.bf16.msra.mxu0 0
      %2599 = vmatprep.mubr.bf16.mxu0 0
      %2600 = vmatmul.mubr.bf16.gmra.mrb[0].mxu0 %v2562
      %v2601 = vpop.f32.mrb[0].mxu0
      %v2602 = vadd.f32 0.0, %v2601
      %v2603 = vpop.f32.mrb[0].mxu0
      %v2604 = vpop.f32.mrb[0].mxu0
      %v2605 = vpop.f32.mrb[0].mxu0
      %2606 = vdwg.mxu0
      %v2607 = vpack.c.bf16 %v2307, %v2307
      %v2608 = vpack.c.bf16 %v2311, %v2311
      %2609 = vrot.lane.b32.xlu0 %v2312, 32
      %v2610 = vpop.permute.xlu0 %2609
      %v2612 = vsel %vm2223, %v2607, 0
      %v2615 = vsel %vm2319, %v2610, 0
      %2617 = vmatprep.subr.bf16.mxu0 0
      %2618 = vmatpush1.bf16.msra.mxu0 %v2615
      %2619 = vmatprep.subr.bf16.mxu0 0
      %2620 = vmatpush1.bf16.msra.mxu0 0
      %2621 = vmatprep.subr.bf16.mxu0 0
      %2622 = vmatpush1.bf16.msra.mxu0 0
      %2623 = vmatprep.subr.bf16.mxu0 0
      %2624 = vmatpush1.bf16.msra.mxu0 0
      %2625 = vmatprep.subr.bf16.mxu0 0
      %2626 = vmatpush1.bf16.msra.mxu0 0
      %2627 = vmatprep.subr.bf16.mxu0 0
      %2628 = vmatpush1.bf16.msra.mxu0 0
      %2629 = vmatprep.subr.bf16.mxu0 0
      %2630 = vmatpush1.bf16.msra.mxu0 0
      %2631 = vmatprep.subr.bf16.mxu0 0
      %2632 = vmatpush1.bf16.msra.mxu0 0
      %2633 = vmatprep.subr.bf16.mxu0 0
      %2634 = vmatpush1.bf16.msra.mxu0 0
      %2635 = vmatprep.subr.bf16.mxu0 0
      %2636 = vmatpush1.bf16.msra.mxu0 0
      %2637 = vmatprep.subr.bf16.mxu0 0
      %2638 = vmatpush1.bf16.msra.mxu0 0
      %2639 = vmatprep.subr.bf16.mxu0 0
      %2640 = vmatpush1.bf16.msra.mxu0 0
      %2641 = vmatprep.subr.bf16.mxu0 0
      %2642 = vmatpush1.bf16.msra.mxu0 0
      %2643 = vmatprep.subr.bf16.mxu0 0
      %2644 = vmatpush1.bf16.msra.mxu0 0
      %2645 = vmatprep.subr.bf16.mxu0 0
      %2646 = vmatpush1.bf16.msra.mxu0 0
      %2647 = vmatprep.subr.bf16.mxu0 0
      %2648 = vmatpush1.bf16.msra.mxu0 0
      %2649 = vmatprep.mubr.bf16.mxu0 0
      %2650 = vmatmul.mubr.bf16.gmra.mrb[0].mxu0 %v2612
      %v2651 = vpop.f32.mrb[0].mxu0
      %v2652 = vadd.f32 0.0, %v2651
      %v2653 = vpop.f32.mrb[0].mxu0
      %v2654 = vpop.f32.mrb[0].mxu0
      %v2655 = vpop.f32.mrb[0].mxu0
      %2656 = vdwg.mxu0
      %2657 = vrot.lane.b32.xlu0 %v2313, 32
      %v2658 = vpop.permute.xlu0 %2657
      %v2660 = vsel %vm2223, %v2608, 0
      %v2663 = vsel %vm2319, %v2658, 0
      %2665 = vmatprep.subr.bf16.mxu0 0
      %2666 = vmatpush1.bf16.msra.mxu0 %v2663
      %2667 = vmatprep.subr.bf16.mxu0 0
      %2668 = vmatpush1.bf16.msra.mxu0 0
      %2669 = vmatprep.subr.bf16.mxu0 0
      %2670 = vmatpush1.bf16.msra.mxu0 0
      %2671 = vmatprep.subr.bf16.mxu0 0
      %2672 = vmatpush1.bf16.msra.mxu0 0
      %2673 = vmatprep.subr.bf16.mxu0 0
      %2674 = vmatpush1.bf16.msra.mxu0 0
      %2675 = vmatprep.subr.bf16.mxu0 0
      %2676 = vmatpush1.bf16.msra.mxu0 0
      %2677 = vmatprep.subr.bf16.mxu0 0
      %2678 = vmatpush1.bf16.msra.mxu0 0
      %2679 = vmatprep.subr.bf16.mxu0 0
      %2680 = vmatpush1.bf16.msra.mxu0 0
      %2681 = vmatprep.subr.bf16.mxu0 0
      %2682 = vmatpush1.bf16.msra.mxu0 0
      %2683 = vmatprep.subr.bf16.mxu0 0
      %2684 = vmatpush1.bf16.msra.mxu0 0
      %2685 = vmatprep.subr.bf16.mxu0 0
      %2686 = vmatpush1.bf16.msra.mxu0 0
      %2687 = vmatprep.subr.bf16.mxu0 0
      %2688 = vmatpush1.bf16.msra.mxu0 0
      %2689 = vmatprep.subr.bf16.mxu0 0
      %2690 = vmatpush1.bf16.msra.mxu0 0
      %2691 = vmatprep.subr.bf16.mxu0 0
      %2692 = vmatpush1.bf16.msra.mxu0 0
      %2693 = vmatprep.subr.bf16.mxu0 0
      %2694 = vmatpush1.bf16.msra.mxu0 0
      %2695 = vmatprep.subr.bf16.mxu0 0
      %2696 = vmatpush1.bf16.msra.mxu0 0
      %2697 = vmatprep.mubr.bf16.mxu0 0
      %2698 = vmatmul.mubr.bf16.gmra.mrb[0].mxu0 %v2660
      %v2699 = vpop.f32.mrb[0].mxu0
      %v2700 = vadd.f32 0.0, %v2699
      %v2701 = vpop.f32.mrb[0].mxu0
      %v2702 = vpop.f32.mrb[0].mxu0
      %v2703 = vpop.f32.mrb[0].mxu0
      %2704 = vdwg.mxu0
      %2707 = vrot.lane.b32.xlu0 %v2455, 32
      %v2708 = vpop.permute.xlu0 %2707
      %2709 = vrot.lane.b32.xlu0 %v2504, 32
      %v2710 = vpop.permute.xlu0 %2709
      %2715 = vrot.lane.b32.xlu0 %v2554, 64
      %v2716 = vpop.permute.xlu0 %2715
      %2717 = vrot.lane.b32.xlu0 %v2602, 64
      %v2718 = vpop.permute.xlu0 %2717
      %2723 = vrot.lane.b32.xlu0 %v2652, 96
      %v2724 = vpop.permute.xlu0 %2723
      %2725 = vrot.lane.b32.xlu0 %v2700, 96
      %v2726 = vpop.permute.xlu0 %2725
      %v2729 = vsel %vm1804, %v2358, %v2708
      %v2730 = vsel %vm1804, %v2404, %v2710
      %vm2731 = vcmask 523264
      %v2732 = vsel %vm2731, %v2729, %v2716
      %v2733 = vsel %vm2731, %v2730, %v2718
      %vm2734 = vcmask 785408
      %v2735 = vsel %vm2734, %v2732, %v2724
      %v2736 = vsel %vm2734, %v2733, %v2726
      %v2737 = vld [vmem:[%s1218] sm:$0xf]
      %v2738 = vld [vmem:[%s1218 + $0x4] sm:$0xf]
      %v2739 = vld [vmem:[%s1218 + $0x8] sm:$0xf]
      %v2740 = vld [vmem:[%s1218 + $0xc] sm:$0xf]
      %v2741 = vld [vmem:[%s1218 + $0x10] sm:$0xf]
      %v2742 = vld [vmem:[%s1218 + $0x14] sm:$0xf]
      %v2743 = vld [vmem:[%s1218 + $0x18] sm:$0xf]
      %v2744 = vld [vmem:[%s1218 + $0x1c] sm:$0xf]
      %v2745 = vld [vmem:[%s1218 + $0x20] sm:$0xf]
      %v2746 = vld [vmem:[%s1218 + $0x24] sm:$0xf]
      %v2747 = vld [vmem:[%s1218 + $0x28] sm:$0xf]
      %v2748 = vld [vmem:[%s1218 + $0x2c] sm:$0xf]
      %v2749 = vld [vmem:[%s1218 + $0x30] sm:$0xf]
      %v2750 = vld [vmem:[%s1218 + $0x34] sm:$0xf]
      %v2751 = vld [vmem:[%s1218 + $0x38] sm:$0xf]
      %v2752 = vld [vmem:[%s1218 + $0x3c] sm:$0xf]
      %v2753 = vpack.c.bf16 %v2736, %v2735
      %v2754 = vld [vmem:[%s1221] sm:$0x1]
      %v2756 = vlaneseq
      %v2757 = vshrl.u32 %v2756, 7
      %v2758 = vsub.s32 0, %v2757
      %v2759 = vrot.slane %v2754, %v2758
      %v2777 = vunpack.c.l.b16 %v2737
      %v2778 = vunpack.c.l.b16 %v2738
      %v2779 = vunpack.c.l.b16 %v2739
      %v2780 = vunpack.c.l.b16 %v2740
      %v2781 = vunpack.c.l.b16 %v2741
      %v2782 = vunpack.c.l.b16 %v2742
      %v2783 = vunpack.c.l.b16 %v2743
      %v2784 = vunpack.c.l.b16 %v2744
      %v2785 = vunpack.c.l.b16 %v2745
      %v2786 = vunpack.c.l.b16 %v2746
      %v2787 = vunpack.c.l.b16 %v2747
      %v2788 = vunpack.c.l.b16 %v2748
      %v2789 = vunpack.c.l.b16 %v2749
      %v2790 = vunpack.c.l.b16 %v2750
      %v2791 = vunpack.c.l.b16 %v2751
      %v2792 = vunpack.c.l.b16 %v2752
      %v2793 = vpack.c.b16 %v2778, %v2777
      %v2794 = vpack.c.b16 %v2780, %v2779
      %v2795 = vpack.c.b16 %v2782, %v2781
      %v2796 = vpack.c.b16 %v2784, %v2783
      %v2797 = vpack.c.b16 %v2786, %v2785
      %v2798 = vpack.c.b16 %v2788, %v2787
      %v2799 = vpack.c.b16 %v2790, %v2789
      %v2800 = vpack.c.b16 %v2792, %v2791
      %2809 = vmatprep.subr.bf16.mxu0 0
      %2810 = vmatpush1.bf16.msra.mxu0 %v2793
      %2811 = vmatprep.subr.bf16.mxu0 0
      %2812 = vmatpush1.bf16.msra.mxu0 %v2794
      %2813 = vmatprep.subr.bf16.mxu0 0
      %2814 = vmatpush1.bf16.msra.mxu0 %v2795
      %2815 = vmatprep.subr.bf16.mxu0 0
      %2816 = vmatpush1.bf16.msra.mxu0 %v2796
      %2817 = vmatprep.subr.bf16.mxu0 0
      %2818 = vmatpush1.bf16.msra.mxu0 %v2797
      %2819 = vmatprep.subr.bf16.mxu0 0
      %2820 = vmatpush1.bf16.msra.mxu0 %v2798
      %2821 = vmatprep.subr.bf16.mxu0 0
      %2822 = vmatpush1.bf16.msra.mxu0 %v2799
      %2823 = vmatprep.subr.bf16.mxu0 0
      %2824 = vmatpush1.bf16.msra.mxu0 %v2800
      %2825 = vmatprep.subr.bf16.mxu0 0
      %2826 = vmatpush1.bf16.msra.mxu0 0
      %2827 = vmatprep.subr.bf16.mxu0 0
      %2828 = vmatpush1.bf16.msra.mxu0 0
      %2829 = vmatprep.subr.bf16.mxu0 0
      %2830 = vmatpush1.bf16.msra.mxu0 0
      %2831 = vmatprep.subr.bf16.mxu0 0
      %2832 = vmatpush1.bf16.msra.mxu0 0
      %2833 = vmatprep.subr.bf16.mxu0 0
      %2834 = vmatpush1.bf16.msra.mxu0 0
      %2835 = vmatprep.subr.bf16.mxu0 0
      %2836 = vmatpush1.bf16.msra.mxu0 0
      %2837 = vmatprep.subr.bf16.mxu0 0
      %2838 = vmatpush1.bf16.msra.mxu0 0
      %2839 = vmatprep.subr.bf16.mxu0 0
      %2840 = vmatpush1.bf16.msra.mxu0 0
      %2841 = vmatprep.mubr.bf16.mxu0 0
      %2842 = vmatmul.mubr.bf16.gmra.mrb[0].mxu0 %v2753
      %v2843 = vpop.f32.mrb[0].mxu0
      %v2844 = vadd.f32 %v2759, %v2843
      %v2845 = vpop.f32.mrb[0].mxu0
      %v2846 = vpop.f32.mrb[0].mxu0
      %v2847 = vadd.f32 %v2759, %v2846
      %v2848 = vpop.f32.mrb[0].mxu0
      %2849 = vdwg.mxu0
      %v2850 = vadd.f32 %v1536, %v2844
      %v2851 = vadd.f32 %v1537, %v2847
      %v2852 = vld [vmem:[%s1224] sm:$0x1]
      %v2853 = vld [vmem:[%s1227] sm:$0x1]
      %2854 = vadd.xlane.f32.xlu0 %v2850
      %v2855 = vpop.xlane.xlu0 %2854
      %2856 = vadd.xlane.f32.xlu0 %v2851
      %v2857 = vpop.xlane.xlu0 %2856
      %v2858 = vrcp.pop 128.0
      %v2859 = vmul.f32 %v2855, %v2858
      %v2860 = vmul.f32 %v2857, %v2858
      %v2861 = vsub.f32 %v2850, %v2859
      %v2862 = vsub.f32 %v2851, %v2860
      %v2863 = vmul.f32 %v2861, %v2861
      %v2864 = vmul.f32 %v2862, %v2862
      %2865 = vadd.xlane.f32.xlu0 %v2863
      %v2866 = vpop.xlane.xlu0 %2865
      %2867 = vadd.xlane.f32.xlu0 %v2864
      %v2868 = vpop.xlane.xlu0 %2867
      %v2869 = vmul.f32 %v2866, %v2858
      %v2870 = vmul.f32 %v2868, %v2858
      %v2871 = vadd.f32 %v2869, 1e-05
      %v2872 = vadd.f32 %v2870, 1e-05
      %v2873 = vrsqrt.pop %v2871
      %v2874 = vrsqrt.pop %v2872
      %v2875 = vmul.f32 %v2861, %v2873
      %v2876 = vmul.f32 %v2862, %v2874
      %v2878 = vlaneseq
      %v2879 = vshrl.u32 %v2878, 7
      %v2880 = vsub.s32 0, %v2879
      %v2881 = vrot.slane %v2852, %v2880
      %v2883 = vmul.f32 %v2875, %v2881
      %v2884 = vmul.f32 %v2876, %v2881
      %v2886 = vlaneseq
      %v2887 = vshrl.u32 %v2886, 7
      %v2888 = vsub.s32 0, %v2887
      %v2889 = vrot.slane %v2853, %v2888
      %v2891 = vadd.f32 %v2883, %v2889
      %v2892 = vadd.f32 %v2884, %v2889
      %v2893 = vld [vmem:[%s1232] sm:$0xff]
      %v2894 = vld [vmem:[%s1232 + $0x8] sm:$0xff]
      %v2895 = vld [vmem:[%s1232 + $0x10] sm:$0xff]
      %v2896 = vld [vmem:[%s1232 + $0x18] sm:$0xff]
      %v2897 = vld [vmem:[%s1232 + $0x20] sm:$0xff]
      %v2898 = vld [vmem:[%s1232 + $0x28] sm:$0xff]
      %v2899 = vld [vmem:[%s1232 + $0x30] sm:$0xff]
      %v2900 = vld [vmem:[%s1232 + $0x38] sm:$0xff]
      %v2901 = vld [vmem:[%s1232 + $0x40] sm:$0xff]
      %v2902 = vld [vmem:[%s1232 + $0x48] sm:$0xff]
      %v2903 = vld [vmem:[%s1232 + $0x50] sm:$0xff]
      %v2904 = vld [vmem:[%s1232 + $0x58] sm:$0xff]
      %v2905 = vld [vmem:[%s1232 + $0x60] sm:$0xff]
      %v2906 = vld [vmem:[%s1232 + $0x68] sm:$0xff]
      %v2907 = vld [vmem:[%s1232 + $0x70] sm:$0xff]
      %v2908 = vld [vmem:[%s1232 + $0x78] sm:$0xff]
      %v2909 = vpack.c.bf16 %v2892, %v2891
      %v2910 = vld [vmem:[%s1236] sm:$0x3]
      %v2912 = vlaneseq
      %v2913 = vshrl.u32 %v2912, 7
      %v2914 = vsub.s32 0, %v2913
      %v2915 = vrot.slane %v2910, %v2914
      %v2916 = vlaneseq
      %v2917 = vshrl.u32 %v2916, 7
      %v2918 = vsub.s32 1, %v2917
      %v2919 = vrot.slane %v2910, %v2918
      %v2938 = vunpack.c.l.b16 %v2893
      %v2939 = vunpack.c.h.b16 %v2893
      %v2940 = vunpack.c.l.b16 %v2894
      %v2941 = vunpack.c.h.b16 %v2894
      %v2942 = vunpack.c.l.b16 %v2895
      %v2943 = vunpack.c.h.b16 %v2895
      %v2944 = vunpack.c.l.b16 %v2896
      %v2945 = vunpack.c.h.b16 %v2896
      %v2946 = vunpack.c.l.b16 %v2897
      %v2947 = vunpack.c.h.b16 %v2897
      %v2948 = vunpack.c.l.b16 %v2898
      %v2949 = vunpack.c.h.b16 %v2898
      %v2950 = vunpack.c.l.b16 %v2899
      %v2951 = vunpack.c.h.b16 %v2899
      %v2952 = vunpack.c.l.b16 %v2900
      %v2953 = vunpack.c.h.b16 %v2900
      %v2954 = vunpack.c.l.b16 %v2901
      %v2955 = vunpack.c.h.b16 %v2901
      %v2956 = vunpack.c.l.b16 %v2902
      %v2957 = vunpack.c.h.b16 %v2902
      %v2958 = vunpack.c.l.b16 %v2903
      %v2959 = vunpack.c.h.b16 %v2903
      %v2960 = vunpack.c.l.b16 %v2904
      %v2961 = vunpack.c.h.b16 %v2904
      %v2962 = vunpack.c.l.b16 %v2905
      %v2963 = vunpack.c.h.b16 %v2905
      %v2964 = vunpack.c.l.b16 %v2906
      %v2965 = vunpack.c.h.b16 %v2906
      %v2966 = vunpack.c.l.b16 %v2907
      %v2967 = vunpack.c.h.b16 %v2907
      %v2968 = vunpack.c.l.b16 %v2908
      %v2969 = vunpack.c.h.b16 %v2908
      %v2970 = vpack.c.b16 %v2940, %v2938
      %v2971 = vpack.c.b16 %v2941, %v2939
      %v2972 = vpack.c.b16 %v2944, %v2942
      %v2973 = vpack.c.b16 %v2945, %v2943
      %v2974 = vpack.c.b16 %v2948, %v2946
      %v2975 = vpack.c.b16 %v2949, %v2947
      %v2976 = vpack.c.b16 %v2952, %v2950
      %v2977 = vpack.c.b16 %v2953, %v2951
      %v2978 = vpack.c.b16 %v2956, %v2954
      %v2979 = vpack.c.b16 %v2957, %v2955
      %v2980 = vpack.c.b16 %v2960, %v2958
      %v2981 = vpack.c.b16 %v2961, %v2959
      %v2982 = vpack.c.b16 %v2964, %v2962
      %v2983 = vpack.c.b16 %v2965, %v2963
      %v2984 = vpack.c.b16 %v2968, %v2966
      %v2985 = vpack.c.b16 %v2969, %v2967
      %3002 = vmatprep.subr.bf16.mxu0 %v2971
      %3003 = vmatpush1.bf16.msra.mxu0 %v2970
      %3004 = vmatprep.subr.bf16.mxu0 %v2973
      %3005 = vmatpush1.bf16.msra.mxu0 %v2972
      %3006 = vmatprep.subr.bf16.mxu0 %v2975
      %3007 = vmatpush1.bf16.msra.mxu0 %v2974
      %3008 = vmatprep.subr.bf16.mxu0 %v2977
      %3009 = vmatpush1.bf16.msra.mxu0 %v2976
      %3010 = vmatprep.subr.bf16.mxu0 %v2979
      %3011 = vmatpush1.bf16.msra.mxu0 %v2978
      %3012 = vmatprep.subr.bf16.mxu0 %v2981
      %3013 = vmatpush1.bf16.msra.mxu0 %v2980
      %3014 = vmatprep.subr.bf16.mxu0 %v2983
      %3015 = vmatpush1.bf16.msra.mxu0 %v2982
      %3016 = vmatprep.subr.bf16.mxu0 %v2985
      %3017 = vmatpush1.bf16.msra.mxu0 %v2984
      %3018 = vmatprep.subr.bf16.mxu0 0
      %3019 = vmatpush1.bf16.msra.mxu0 0
      %3020 = vmatprep.subr.bf16.mxu0 0
      %3021 = vmatpush1.bf16.msra.mxu0 0
      %3022 = vmatprep.subr.bf16.mxu0 0
      %3023 = vmatpush1.bf16.msra.mxu0 0
      %3024 = vmatprep.subr.bf16.mxu0 0
      %3025 = vmatpush1.bf16.msra.mxu0 0
      %3026 = vmatprep.subr.bf16.mxu0 0
      %3027 = vmatpush1.bf16.msra.mxu0 0
      %3028 = vmatprep.subr.bf16.mxu0 0
      %3029 = vmatpush1.bf16.msra.mxu0 0
      %3030 = vmatprep.subr.bf16.mxu0 0
      %3031 = vmatpush1.bf16.msra.mxu0 0
      %3032 = vmatprep.subr.bf16.mxu0 0
      %3033 = vmatpush1.bf16.msra.mxu0 0
      %3034 = vmatprep.mubr.bf16.mxu0 0
      %3035 = vmatmul.mubr.bf16.gmra.mrb[0].mxu0 %v2909
      %v3036 = vpop.f32.mrb[0].mxu0
      %v3037 = vadd.f32 %v2915, %v3036
      %v3038 = vpop.f32.mrb[0].mxu0
      %v3039 = vadd.f32 %v2919, %v3038
      %v3040 = vpop.f32.mrb[0].mxu0
      %v3041 = vadd.f32 %v2915, %v3040
      %v3042 = vpop.f32.mrb[0].mxu0
      %v3043 = vadd.f32 %v2919, %v3042
      %3044 = vdwg.mxu0
      %v3045 = vmul.f32 %v3037, 0.5
      %v3046 = vmul.f32 %v3039, 0.5
      %v3047 = vmul.f32 %v3041, 0.5
      %v3048 = vmul.f32 %v3043, 0.5
      %v3049 = vmul.f32 %v3037, 0.70710677
      %v3050 = vmul.f32 %v3039, 0.70710677
      %v3051 = vmul.f32 %v3041, 0.70710677
      %v3052 = vmul.f32 %v3043, 0.70710677
      %v3053 = verf.f32.pop %v3049
      %v3054 = verf.f32.pop %v3050
      %v3055 = verf.f32.pop %v3051
      %v3056 = verf.f32.pop %v3052
      %v3057 = vadd.f32 %v3053, 1.0
      %v3058 = vadd.f32 %v3054, 1.0
      %v3059 = vadd.f32 %v3055, 1.0
      %v3060 = vadd.f32 %v3056, 1.0
      %v3061 = vmul.f32 %v3045, %v3057
      %v3062 = vmul.f32 %v3046, %v3058
      %v3063 = vmul.f32 %v3047, %v3059
      %v3064 = vmul.f32 %v3048, %v3060
      %v3065 = vld [vmem:[%s1241] sm:$0xf]
      %v3066 = vld [vmem:[%s1241 + $0x4] sm:$0xf]
      %v3067 = vld [vmem:[%s1241 + $0x8] sm:$0xf]
      %v3068 = vld [vmem:[%s1241 + $0xc] sm:$0xf]
      %v3069 = vld [vmem:[%s1241 + $0x10] sm:$0xf]
      %v3070 = vld [vmem:[%s1241 + $0x14] sm:$0xf]
      %v3071 = vld [vmem:[%s1241 + $0x18] sm:$0xf]
      %v3072 = vld [vmem:[%s1241 + $0x1c] sm:$0xf]
      %v3073 = vld [vmem:[%s1241 + $0x20] sm:$0xf]
      %v3074 = vld [vmem:[%s1241 + $0x24] sm:$0xf]
      %v3075 = vld [vmem:[%s1241 + $0x28] sm:$0xf]
      %v3076 = vld [vmem:[%s1241 + $0x2c] sm:$0xf]
      %v3077 = vld [vmem:[%s1241 + $0x30] sm:$0xf]
      %v3078 = vld [vmem:[%s1241 + $0x34] sm:$0xf]
      %v3079 = vld [vmem:[%s1241 + $0x38] sm:$0xf]
      %v3080 = vld [vmem:[%s1241 + $0x3c] sm:$0xf]
      %v3081 = vld [vmem:[%s1241 + $0x40] sm:$0xf]
      %v3082 = vld [vmem:[%s1241 + $0x44] sm:$0xf]
      %v3083 = vld [vmem:[%s1241 + $0x48] sm:$0xf]
      %v3084 = vld [vmem:[%s1241 + $0x4c] sm:$0xf]
      %v3085 = vld [vmem:[%s1241 + $0x50] sm:$0xf]
      %v3086 = vld [vmem:[%s1241 + $0x54] sm:$0xf]
      %v3087 = vld [vmem:[%s1241 + $0x58] sm:$0xf]
      %v3088 = vld [vmem:[%s1241 + $0x5c] sm:$0xf]
      %v3089 = vld [vmem:[%s1241 + $0x60] sm:$0xf]
      %v3090 = vld [vmem:[%s1241 + $0x64] sm:$0xf]
      %v3091 = vld [vmem:[%s1241 + $0x68] sm:$0xf]
      %v3092 = vld [vmem:[%s1241 + $0x6c] sm:$0xf]
      %v3093 = vld [vmem:[%s1241 + $0x70] sm:$0xf]
      %v3094 = vld [vmem:[%s1241 + $0x74] sm:$0xf]
      %v3095 = vld [vmem:[%s1241 + $0x78] sm:$0xf]
      %v3096 = vld [vmem:[%s1241 + $0x7c] sm:$0xf]
      %v3097 = vpack.c.bf16 %v3063, %v3061
      %v3098 = vpack.c.bf16 %v3064, %v3062
      %v3099 = vld [vmem:[%s1244] sm:$0x1]
      %v3101 = vlaneseq
      %v3102 = vshrl.u32 %v3101, 7
      %v3103 = vsub.s32 0, %v3102
      %v3104 = vrot.slane %v3099, %v3103
      %v3138 = vunpack.c.l.b16 %v3065
      %v3139 = vunpack.c.l.b16 %v3066
      %v3140 = vunpack.c.l.b16 %v3067
      %v3141 = vunpack.c.l.b16 %v3068
      %v3142 = vunpack.c.l.b16 %v3069
      %v3143 = vunpack.c.l.b16 %v3070
      %v3144 = vunpack.c.l.b16 %v3071
      %v3145 = vunpack.c.l.b16 %v3072
      %v3146 = vunpack.c.l.b16 %v3073
      %v3147 = vunpack.c.l.b16 %v3074
      %v3148 = vunpack.c.l.b16 %v3075
      %v3149 = vunpack.c.l.b16 %v3076
      %v3150 = vunpack.c.l.b16 %v3077
      %v3151 = vunpack.c.l.b16 %v3078
      %v3152 = vunpack.c.l.b16 %v3079
      %v3153 = vunpack.c.l.b16 %v3080
      %v3154 = vunpack.c.l.b16 %v3081
      %v3155 = vunpack.c.l.b16 %v3082
      %v3156 = vunpack.c.l.b16 %v3083
      %v3157 = vunpack.c.l.b16 %v3084
      %v3158 = vunpack.c.l.b16 %v3085
      %v3159 = vunpack.c.l.b16 %v3086
      %v3160 = vunpack.c.l.b16 %v3087
      %v3161 = vunpack.c.l.b16 %v3088
      %v3162 = vunpack.c.l.b16 %v3089
      %v3163 = vunpack.c.l.b16 %v3090
      %v3164 = vunpack.c.l.b16 %v3091
      %v3165 = vunpack.c.l.b16 %v3092
      %v3166 = vunpack.c.l.b16 %v3093
      %v3167 = vunpack.c.l.b16 %v3094
      %v3168 = vunpack.c.l.b16 %v3095
      %v3169 = vunpack.c.l.b16 %v3096
      %v3170 = vpack.c.b16 %v3139, %v3138
      %v3171 = vpack.c.b16 %v3141, %v3140
      %v3172 = vpack.c.b16 %v3143, %v3142
      %v3173 = vpack.c.b16 %v3145, %v3144
      %v3174 = vpack.c.b16 %v3147, %v3146
      %v3175 = vpack.c.b16 %v3149, %v3148
      %v3176 = vpack.c.b16 %v3151, %v3150
      %v3177 = vpack.c.b16 %v3153, %v3152
      %v3178 = vpack.c.b16 %v3155, %v3154
      %v3179 = vpack.c.b16 %v3157, %v3156
      %v3180 = vpack.c.b16 %v3159, %v3158
      %v3181 = vpack.c.b16 %v3161, %v3160
      %v3182 = vpack.c.b16 %v3163, %v3162
      %v3183 = vpack.c.b16 %v3165, %v3164
      %v3184 = vpack.c.b16 %v3167, %v3166
      %v3185 = vpack.c.b16 %v3169, %v3168
      %3202 = vmatprep.subr.bf16.mxu0 0
      %3203 = vmatpush1.bf16.msra.mxu0 %v3170
      %3204 = vmatprep.subr.bf16.mxu0 0
      %3205 = vmatpush1.bf16.msra.mxu0 %v3171
      %3206 = vmatprep.subr.bf16.mxu0 0
      %3207 = vmatpush1.bf16.msra.mxu0 %v3172
      %3208 = vmatprep.subr.bf16.mxu0 0
      %3209 = vmatpush1.bf16.msra.mxu0 %v3173
      %3210 = vmatprep.subr.bf16.mxu0 0
      %3211 = vmatpush1.bf16.msra.mxu0 %v3174
      %3212 = vmatprep.subr.bf16.mxu0 0
      %3213 = vmatpush1.bf16.msra.mxu0 %v3175
      %3214 = vmatprep.subr.bf16.mxu0 0
      %3215 = vmatpush1.bf16.msra.mxu0 %v3176
      %3216 = vmatprep.subr.bf16.mxu0 0
      %3217 = vmatpush1.bf16.msra.mxu0 %v3177
      %3218 = vmatprep.subr.bf16.mxu0 0
      %3219 = vmatpush1.bf16.msra.mxu0 %v3178
      %3220 = vmatprep.subr.bf16.mxu0 0
      %3221 = vmatpush1.bf16.msra.mxu0 %v3179
      %3222 = vmatprep.subr.bf16.mxu0 0
      %3223 = vmatpush1.bf16.msra.mxu0 %v3180
      %3224 = vmatprep.subr.bf16.mxu0 0
      %3225 = vmatpush1.bf16.msra.mxu0 %v3181
      %3226 = vmatprep.subr.bf16.mxu0 0
      %3227 = vmatpush1.bf16.msra.mxu0 %v3182
      %3228 = vmatprep.subr.bf16.mxu0 0
      %3229 = vmatpush1.bf16.msra.mxu0 %v3183
      %3230 = vmatprep.subr.bf16.mxu0 0
      %3231 = vmatpush1.bf16.msra.mxu0 %v3184
      %3232 = vmatprep.subr.bf16.mxu0 0
      %3233 = vmatpush1.bf16.msra.mxu0 %v3185
      %3234 = vmatprep.mubr.bf16.mxu0 %v3098
      %3235 = vmatmul.mubr.bf16.gmra.mrb[0].mxu0 %v3097
      %v3236 = vpop.f32.mrb[0].mxu0
      %v3237 = vadd.f32 %v3104, %v3236
      %v3238 = vpop.f32.mrb[0].mxu0
      %v3239 = vpop.f32.mrb[0].mxu0
      %v3240 = vadd.f32 %v3104, %v3239
      %v3241 = vpop.f32.mrb[0].mxu0
      %3242 = vdwg.mxu0
      %v3243 = vadd.f32 %v2891, %v3237
      %v3244 = vadd.f32 %v2892, %v3240
      %v3245 = vld [vmem:[%s1247] sm:$0x1]
      %v3246 = vld [vmem:[%s1250] sm:$0x1]
      %3247 = vadd.xlane.f32.xlu0 %v3243
      %v3248 = vpop.xlane.xlu0 %3247
      %3249 = vadd.xlane.f32.xlu0 %v3244
      %v3250 = vpop.xlane.xlu0 %3249
      %v3251 = vmul.f32 %v3248, %v2858
      %v3252 = vmul.f32 %v3250, %v2858
      %v3253 = vsub.f32 %v3243, %v3251
      %v3254 = vsub.f32 %v3244, %v3252
      %v3255 = vmul.f32 %v3253, %v3253
      %v3256 = vmul.f32 %v3254, %v3254
      %3257 = vadd.xlane.f32.xlu0 %v3255
      %v3258 = vpop.xlane.xlu0 %3257
      %3259 = vadd.xlane.f32.xlu0 %v3256
      %v3260 = vpop.xlane.xlu0 %3259
      %v3261 = vmul.f32 %v3258, %v2858
      %v3262 = vmul.f32 %v3260, %v2858
      %v3263 = vadd.f32 %v3261, 1e-05
      %v3264 = vadd.f32 %v3262, 1e-05
      %v3265 = vrsqrt.pop %v3263
      %v3266 = vrsqrt.pop %v3264
      %v3267 = vmul.f32 %v3253, %v3265
      %v3268 = vmul.f32 %v3254, %v3266
      %v3270 = vlaneseq
      %v3271 = vshrl.u32 %v3270, 7
      %v3272 = vsub.s32 0, %v3271
      %v3273 = vrot.slane %v3245, %v3272
      %v3275 = vmul.f32 %v3267, %v3273
      %v3276 = vmul.f32 %v3268, %v3273
      %v3278 = vlaneseq
      %v3279 = vshrl.u32 %v3278, 7
      %v3280 = vsub.s32 0, %v3279
      %v3281 = vrot.slane %v3246, %v3280
      %v3283 = vadd.f32 %v3275, %v3281
      %v3284 = vadd.f32 %v3276, %v3281
      %3285 = vst [vmem:[#allocation2] sm:$0xff] %v3283
      %3286 = vst [vmem:[#allocation2 + $0x8] sm:$0xff] %v3284
      %p3287 = scmp.eq.s32.totalorder %s79, 1
      // Predicated region
      $region149: #{brain_translator_forward.1} parent=143 // pred_check
        %p3288 = pneg %p3287
      $region150: #{brain_translator_forward.1} parent=143 // pred_check_branch
        %3290 = sbr.rel (%p3288) target = $region152
      $region151: #{brain_translator_forward.1} parent=143 // pred_region
        %v3291 = vld [vmem:[#allocation2] sm:$0xff]
        %v3292 = vld [vmem:[#allocation2 + $0x8] sm:$0xff]
        %v3293 = vld [vmem:[%s43] sm:$0x1]
        %v3294 = vld [vmem:[%s45] sm:$0x1]
        %3295 = vadd.xlane.f32.xlu0 %v3291
        %v3296 = vpop.xlane.xlu0 %3295
        %3297 = vadd.xlane.f32.xlu0 %v3292
        %v3298 = vpop.xlane.xlu0 %3297
        %v3299 = vmul.f32 %v3296, %v2858
        %v3300 = vmul.f32 %v3298, %v2858
        %v3301 = vsub.f32 %v3291, %v3299
        %v3302 = vsub.f32 %v3292, %v3300
        %v3303 = vmul.f32 %v3301, %v3301
        %v3304 = vmul.f32 %v3302, %v3302
        %3305 = vadd.xlane.f32.xlu0 %v3303
        %v3306 = vpop.xlane.xlu0 %3305
        %3307 = vadd.xlane.f32.xlu0 %v3304
        %v3308 = vpop.xlane.xlu0 %3307
        %v3309 = vmul.f32 %v3306, %v2858
        %v3310 = vmul.f32 %v3308, %v2858
        %v3311 = vadd.f32 %v3309, 1e-05
        %v3312 = vadd.f32 %v3310, 1e-05
        %v3313 = vrsqrt.pop %v3311
        %v3314 = vrsqrt.pop %v3312
        %v3315 = vmul.f32 %v3301, %v3313
        %v3316 = vmul.f32 %v3302, %v3314
        %v3318 = vlaneseq
        %v3319 = vshrl.u32 %v3318, 7
        %v3320 = vsub.s32 0, %v3319
        %v3321 = vrot.slane %v3293, %v3320
        %v3323 = vmul.f32 %v3315, %v3321
        %v3324 = vmul.f32 %v3316, %v3321
        %v3326 = vlaneseq
        %v3327 = vshrl.u32 %v3326, 7
        %v3328 = vsub.s32 0, %v3327
        %v3329 = vrot.slane %v3294, %v3328
        %v3331 = vadd.f32 %v3323, %v3329
        %v3332 = vadd.f32 %v3324, %v3329
        %v3333 = vld [vmem:[%s47] sm:$0xf]
        %v3334 = vld [vmem:[%s47 + $0x4] sm:$0xf]
        %v3335 = vld [vmem:[%s47 + $0x8] sm:$0xf]
        %v3336 = vld [vmem:[%s47 + $0xc] sm:$0xf]
        %v3337 = vld [vmem:[%s47 + $0x10] sm:$0xf]
        %v3338 = vld [vmem:[%s47 + $0x14] sm:$0xf]
        %v3339 = vld [vmem:[%s47 + $0x18] sm:$0xf]
        %v3340 = vld [vmem:[%s47 + $0x1c] sm:$0xf]
        %v3341 = vld [vmem:[%s47 + $0x20] sm:$0xf]
        %v3342 = vld [vmem:[%s47 + $0x24] sm:$0xf]
        %v3343 = vld [vmem:[%s47 + $0x28] sm:$0xf]
        %v3344 = vld [vmem:[%s47 + $0x2c] sm:$0xf]
        %v3345 = vld [vmem:[%s47 + $0x30] sm:$0xf]
        %v3346 = vld [vmem:[%s47 + $0x34] sm:$0xf]
        %v3347 = vld [vmem:[%s47 + $0x38] sm:$0xf]
        %v3348 = vld [vmem:[%s47 + $0x3c] sm:$0xf]
        %v3349 = vpack.c.bf16 %v3332, %v3331
        %v3350 = vld [vmem:[%s49] sm:$0x1]
        %v3352 = vlaneseq
        %v3353 = vshrl.u32 %v3352, 7
        %v3354 = vsub.s32 0, %v3353
        %v3355 = vrot.slane %v3350, %v3354
        %v3373 = vunpack.c.l.b16 %v3333
        %v3374 = vunpack.c.l.b16 %v3334
        %v3375 = vunpack.c.l.b16 %v3335
        %v3376 = vunpack.c.l.b16 %v3336
        %v3377 = vunpack.c.l.b16 %v3337
        %v3378 = vunpack.c.l.b16 %v3338
        %v3379 = vunpack.c.l.b16 %v3339
        %v3380 = vunpack.c.l.b16 %v3340
        %v3381 = vunpack.c.l.b16 %v3341
        %v3382 = vunpack.c.l.b16 %v3342
        %v3383 = vunpack.c.l.b16 %v3343
        %v3384 = vunpack.c.l.b16 %v3344
        %v3385 = vunpack.c.l.b16 %v3345
        %v3386 = vunpack.c.l.b16 %v3346
        %v3387 = vunpack.c.l.b16 %v3347
        %v3388 = vunpack.c.l.b16 %v3348
        %v3389 = vpack.c.b16 %v3374, %v3373
        %v3390 = vpack.c.b16 %v3376, %v3375
        %v3391 = vpack.c.b16 %v3378, %v3377
        %v3392 = vpack.c.b16 %v3380, %v3379
        %v3393 = vpack.c.b16 %v3382, %v3381
        %v3394 = vpack.c.b16 %v3384, %v3383
        %v3395 = vpack.c.b16 %v3386, %v3385
        %v3396 = vpack.c.b16 %v3388, %v3387
        %3405 = vmatprep.subr.bf16.mxu0 0
        %3406 = vmatpush1.bf16.msra.mxu0 %v3389
        %3407 = vmatprep.subr.bf16.mxu0 0
        %3408 = vmatpush1.bf16.msra.mxu0 %v3390
        %3409 = vmatprep.subr.bf16.mxu0 0
        %3410 = vmatpush1.bf16.msra.mxu0 %v3391
        %3411 = vmatprep.subr.bf16.mxu0 0
        %3412 = vmatpush1.bf16.msra.mxu0 %v3392
        %3413 = vmatprep.subr.bf16.mxu0 0
        %3414 = vmatpush1.bf16.msra.mxu0 %v3393
        %3415 = vmatprep.subr.bf16.mxu0 0
        %3416 = vmatpush1.bf16.msra.mxu0 %v3394
        %3417 = vmatprep.subr.bf16.mxu0 0
        %3418 = vmatpush1.bf16.msra.mxu0 %v3395
        %3419 = vmatprep.subr.bf16.mxu0 0
        %3420 = vmatpush1.bf16.msra.mxu0 %v3396
        %3421 = vmatprep.subr.bf16.mxu0 0
        %3422 = vmatpush1.bf16.msra.mxu0 0
        %3423 = vmatprep.subr.bf16.mxu0 0
        %3424 = vmatpush1.bf16.msra.mxu0 0
        %3425 = vmatprep.subr.bf16.mxu0 0
        %3426 = vmatpush1.bf16.msra.mxu0 0
        %3427 = vmatprep.subr.bf16.mxu0 0
        %3428 = vmatpush1.bf16.msra.mxu0 0
        %3429 = vmatprep.subr.bf16.mxu0 0
        %3430 = vmatpush1.bf16.msra.mxu0 0
        %3431 = vmatprep.subr.bf16.mxu0 0
        %3432 = vmatpush1.bf16.msra.mxu0 0
        %3433 = vmatprep.subr.bf16.mxu0 0
        %3434 = vmatpush1.bf16.msra.mxu0 0
        %3435 = vmatprep.subr.bf16.mxu0 0
        %3436 = vmatpush1.bf16.msra.mxu0 0
        %3437 = vmatprep.mubr.bf16.mxu0 0
        %3438 = vmatmul.mubr.bf16.gmra.mrb[0].mxu0 %v3349
        %v3439 = vpop.f32.mrb[0].mxu0
        %v3440 = vadd.f32 %v3355, %v3439
        %v3441 = vpop.f32.mrb[0].mxu0
        %v3442 = vpop.f32.mrb[0].mxu0
        %v3443 = vadd.f32 %v3355, %v3442
        %v3444 = vpop.f32.mrb[0].mxu0
        %3445 = vdwg.mxu0
        %v3446 = vmul.f32 %v3440, 0.5
        %v3447 = vmul.f32 %v3443, 0.5
        %v3448 = vmul.f32 %v3440, 0.70710677
        %v3449 = vmul.f32 %v3443, 0.70710677
        %v3450 = verf.f32.pop %v3448
        %v3451 = verf.f32.pop %v3449
        %v3452 = vadd.f32 %v3450, 1.0
        %v3453 = vadd.f32 %v3451, 1.0
        %v3454 = vmul.f32 %v3446, %v3452
        %v3455 = vmul.f32 %v3447, %v3453
        %v3456 = vld [vmem:[%s51] sm:$0xf]
        %v3457 = vld [vmem:[%s51 + $0x4] sm:$0xf]
        %v3458 = vld [vmem:[%s51 + $0x8] sm:$0xf]
        %v3459 = vld [vmem:[%s51 + $0xc] sm:$0xf]
        %v3460 = vld [vmem:[%s51 + $0x10] sm:$0xf]
        %v3461 = vld [vmem:[%s51 + $0x14] sm:$0xf]
        %v3462 = vld [vmem:[%s51 + $0x18] sm:$0xf]
        %v3463 = vld [vmem:[%s51 + $0x1c] sm:$0xf]
        %v3464 = vld [vmem:[%s51 + $0x20] sm:$0xf]
        %v3465 = vld [vmem:[%s51 + $0x24] sm:$0xf]
        %v3466 = vld [vmem:[%s51 + $0x28] sm:$0xf]
        %v3467 = vld [vmem:[%s51 + $0x2c] sm:$0xf]
        %v3468 = vld [vmem:[%s51 + $0x30] sm:$0xf]
        %v3469 = vld [vmem:[%s51 + $0x34] sm:$0xf]
        %v3470 = vld [vmem:[%s51 + $0x38] sm:$0xf]
        %v3471 = vld [vmem:[%s51 + $0x3c] sm:$0xf]
        %v3472 = vpack.c.bf16 %v3455, %v3454
        %v3473 = vld [vmem:[%s53] sm:$0x1]
        %v3475 = vlaneseq
        %v3476 = vshrl.u32 %v3475, 7
        %v3477 = vsub.s32 0, %v3476
        %v3478 = vrot.slane %v3473, %v3477
        %v3496 = vunpack.c.l.b16 %v3456
        %v3497 = vunpack.c.l.b16 %v3457
        %v3498 = vunpack.c.l.b16 %v3458
        %v3499 = vunpack.c.l.b16 %v3459
        %v3500 = vunpack.c.l.b16 %v3460
        %v3501 = vunpack.c.l.b16 %v3461
        %v3502 = vunpack.c.l.b16 %v3462
        %v3503 = vunpack.c.l.b16 %v3463
        %v3504 = vunpack.c.l.b16 %v3464
        %v3505 = vunpack.c.l.b16 %v3465
        %v3506 = vunpack.c.l.b16 %v3466
        %v3507 = vunpack.c.l.b16 %v3467
        %v3508 = vunpack.c.l.b16 %v3468
        %v3509 = vunpack.c.l.b16 %v3469
        %v3510 = vunpack.c.l.b16 %v3470
        %v3511 = vunpack.c.l.b16 %v3471
        %v3512 = vpack.c.b16 %v3497, %v3496
        %v3513 = vpack.c.b16 %v3499, %v3498
        %v3514 = vpack.c.b16 %v3501, %v3500
        %v3515 = vpack.c.b16 %v3503, %v3502
        %v3516 = vpack.c.b16 %v3505, %v3504
        %v3517 = vpack.c.b16 %v3507, %v3506
        %v3518 = vpack.c.b16 %v3509, %v3508
        %v3519 = vpack.c.b16 %v3511, %v3510
        %3528 = vmatprep.subr.bf16.mxu0 0
        %3529 = vmatpush1.bf16.msra.mxu0 %v3512
        %3530 = vmatprep.subr.bf16.mxu0 0
        %3531 = vmatpush1.bf16.msra.mxu0 %v3513
        %3532 = vmatprep.subr.bf16.mxu0 0
        %3533 = vmatpush1.bf16.msra.mxu0 %v3514
        %3534 = vmatprep.subr.bf16.mxu0 0
        %3535 = vmatpush1.bf16.msra.mxu0 %v3515
        %3536 = vmatprep.subr.bf16.mxu0 0
        %3537 = vmatpush1.bf16.msra.mxu0 %v3516
        %3538 = vmatprep.subr.bf16.mxu0 0
        %3539 = vmatpush1.bf16.msra.mxu0 %v3517
        %3540 = vmatprep.subr.bf16.mxu0 0
        %3541 = vmatpush1.bf16.msra.mxu0 %v3518
        %3542 = vmatprep.subr.bf16.mxu0 0
        %3543 = vmatpush1.bf16.msra.mxu0 %v3519
        %3544 = vmatprep.subr.bf16.mxu0 0
        %3545 = vmatpush1.bf16.msra.mxu0 0
        %3546 = vmatprep.subr.bf16.mxu0 0
        %3547 = vmatpush1.bf16.msra.mxu0 0
        %3548 = vmatprep.subr.bf16.mxu0 0
        %3549 = vmatpush1.bf16.msra.mxu0 0
        %3550 = vmatprep.subr.bf16.mxu0 0
        %3551 = vmatpush1.bf16.msra.mxu0 0
        %3552 = vmatprep.subr.bf16.mxu0 0
        %3553 = vmatpush1.bf16.msra.mxu0 0
        %3554 = vmatprep.subr.bf16.mxu0 0
        %3555 = vmatpush1.bf16.msra.mxu0 0
        %3556 = vmatprep.subr.bf16.mxu0 0
        %3557 = vmatpush1.bf16.msra.mxu0 0
        %3558 = vmatprep.subr.bf16.mxu0 0
        %3559 = vmatpush1.bf16.msra.mxu0 0
        %3560 = vmatprep.mubr.bf16.mxu0 0
        %3561 = vmatmul.mubr.bf16.gmra.mrb[0].mxu0 %v3472
        %v3562 = vpop.f32.mrb[0].mxu0
        %v3563 = vadd.f32 %v3478, %v3562
        %v3564 = vpop.f32.mrb[0].mxu0
        %v3565 = vpop.f32.mrb[0].mxu0
        %v3566 = vadd.f32 %v3478, %v3565
        %v3567 = vpop.f32.mrb[0].mxu0
        %3568 = vdwg.mxu0
        %v3569 = vadd.f32 %v3563, %v3440
        %v3570 = vadd.f32 %v3566, %v3443
        %v3571 = vld [vmem:[%s55] sm:$0xf]
        %v3572 = vld [vmem:[%s55 + $0x4] sm:$0xf]
        %v3573 = vld [vmem:[%s55 + $0x8] sm:$0xf]
        %v3574 = vld [vmem:[%s55 + $0xc] sm:$0xf]
        %v3575 = vld [vmem:[%s55 + $0x10] sm:$0xf]
        %v3576 = vld [vmem:[%s55 + $0x14] sm:$0xf]
        %v3577 = vld [vmem:[%s55 + $0x18] sm:$0xf]
        %v3578 = vld [vmem:[%s55 + $0x1c] sm:$0xf]
        %v3579 = vld [vmem:[%s55 + $0x20] sm:$0xf]
        %v3580 = vld [vmem:[%s55 + $0x24] sm:$0xf]
        %v3581 = vld [vmem:[%s55 + $0x28] sm:$0xf]
        %v3582 = vld [vmem:[%s55 + $0x2c] sm:$0xf]
        %v3583 = vld [vmem:[%s55 + $0x30] sm:$0xf]
        %v3584 = vld [vmem:[%s55 + $0x34] sm:$0xf]
        %v3585 = vld [vmem:[%s55 + $0x38] sm:$0xf]
        %v3586 = vld [vmem:[%s55 + $0x3c] sm:$0xf]
        %v3587 = vpack.c.bf16 %v3570, %v3569
        %v3588 = vld [vmem:[%s57] sm:$0x1]
        %v3590 = vlaneseq
        %v3591 = vshrl.u32 %v3590, 7
        %v3592 = vsub.s32 0, %v3591
        %v3593 = vrot.slane %v3588, %v3592
        %v3611 = vunpack.c.l.b16 %v3571
        %v3612 = vunpack.c.l.b16 %v3572
        %v3613 = vunpack.c.l.b16 %v3573
        %v3614 = vunpack.c.l.b16 %v3574
        %v3615 = vunpack.c.l.b16 %v3575
        %v3616 = vunpack.c.l.b16 %v3576
        %v3617 = vunpack.c.l.b16 %v3577
        %v3618 = vunpack.c.l.b16 %v3578
        %v3619 = vunpack.c.l.b16 %v3579
        %v3620 = vunpack.c.l.b16 %v3580
        %v3621 = vunpack.c.l.b16 %v3581
        %v3622 = vunpack.c.l.b16 %v3582
        %v3623 = vunpack.c.l.b16 %v3583
        %v3624 = vunpack.c.l.b16 %v3584
        %v3625 = vunpack.c.l.b16 %v3585
        %v3626 = vunpack.c.l.b16 %v3586
        %v3627 = vpack.c.b16 %v3612, %v3611
        %v3628 = vpack.c.b16 %v3614, %v3613
        %v3629 = vpack.c.b16 %v3616, %v3615
        %v3630 = vpack.c.b16 %v3618, %v3617
        %v3631 = vpack.c.b16 %v3620, %v3619
        %v3632 = vpack.c.b16 %v3622, %v3621
        %v3633 = vpack.c.b16 %v3624, %v3623
        %v3634 = vpack.c.b16 %v3626, %v3625
        %3643 = vmatprep.subr.bf16.mxu0 0
        %3644 = vmatpush1.bf16.msra.mxu0 %v3627
        %3645 = vmatprep.subr.bf16.mxu0 0
        %3646 = vmatpush1.bf16.msra.mxu0 %v3628
        %3647 = vmatprep.subr.bf16.mxu0 0
        %3648 = vmatpush1.bf16.msra.mxu0 %v3629
        %3649 = vmatprep.subr.bf16.mxu0 0
        %3650 = vmatpush1.bf16.msra.mxu0 %v3630
        %3651 = vmatprep.subr.bf16.mxu0 0
        %3652 = vmatpush1.bf16.msra.mxu0 %v3631
        %3653 = vmatprep.subr.bf16.mxu0 0
        %3654 = vmatpush1.bf16.msra.mxu0 %v3632
        %3655 = vmatprep.subr.bf16.mxu0 0
        %3656 = vmatpush1.bf16.msra.mxu0 %v3633
        %3657 = vmatprep.subr.bf16.mxu0 0
        %3658 = vmatpush1.bf16.msra.mxu0 %v3634
        %3659 = vmatprep.subr.bf16.mxu0 0
        %3660 = vmatpush1.bf16.msra.mxu0 0
        %3661 = vmatprep.subr.bf16.mxu0 0
        %3662 = vmatpush1.bf16.msra.mxu0 0
        %3663 = vmatprep.subr.bf16.mxu0 0
        %3664 = vmatpush1.bf16.msra.mxu0 0
        %3665 = vmatprep.subr.bf16.mxu0 0
        %3666 = vmatpush1.bf16.msra.mxu0 0
        %3667 = vmatprep.subr.bf16.mxu0 0
        %3668 = vmatpush1.bf16.msra.mxu0 0
        %3669 = vmatprep.subr.bf16.mxu0 0
        %3670 = vmatpush1.bf16.msra.mxu0 0
        %3671 = vmatprep.subr.bf16.mxu0 0
        %3672 = vmatpush1.bf16.msra.mxu0 0
        %3673 = vmatprep.subr.bf16.mxu0 0
        %3674 = vmatpush1.bf16.msra.mxu0 0
        %3675 = vmatprep.mubr.bf16.mxu0 0
        %3676 = vmatmul.mubr.bf16.gmra.mrb[0].mxu0 %v3587
        %v3677 = vpop.f32.mrb[0].mxu0
        %v3678 = vadd.f32 %v3593, %v3677
        %v3679 = vpop.f32.mrb[0].mxu0
        %v3680 = vpop.f32.mrb[0].mxu0
        %v3681 = vadd.f32 %v3593, %v3680
        %v3682 = vpop.f32.mrb[0].mxu0
        %3683 = vdwg.mxu0
        %v3684 = vld [vmem:[%s59] sm:$0x1]
        %v3685 = vld [vmem:[%s61] sm:$0x1]
        %3686 = vadd.xlane.f32.xlu0 %v3678
        %v3687 = vpop.xlane.xlu0 %3686
        %3688 = vadd.xlane.f32.xlu0 %v3681
        %v3689 = vpop.xlane.xlu0 %3688
        %v3690 = vmul.f32 %v3687, %v2858
        %v3691 = vmul.f32 %v3689, %v2858
        %v3692 = vsub.f32 %v3678, %v3690
        %v3693 = vsub.f32 %v3681, %v3691
        %v3694 = vmul.f32 %v3692, %v3692
        %v3695 = vmul.f32 %v3693, %v3693
        %3696 = vadd.xlane.f32.xlu0 %v3694
        %v3697 = vpop.xlane.xlu0 %3696
        %3698 = vadd.xlane.f32.xlu0 %v3695
        %v3699 = vpop.xlane.xlu0 %3698
        %v3700 = vmul.f32 %v3697, %v2858
        %v3701 = vmul.f32 %v3699, %v2858
        %v3702 = vadd.f32 %v3700, 1e-05
        %v3703 = vadd.f32 %v3701, 1e-05
        %v3704 = vrsqrt.pop %v3702
        %v3705 = vrsqrt.pop %v3703
        %v3706 = vmul.f32 %v3692, %v3704
        %v3707 = vmul.f32 %v3693, %v3705
        %v3709 = vlaneseq
        %v3710 = vshrl.u32 %v3709, 7
        %v3711 = vsub.s32 0, %v3710
        %v3712 = vrot.slane %v3684, %v3711
        %v3714 = vmul.f32 %v3706, %v3712
        %v3715 = vmul.f32 %v3707, %v3712
        %v3717 = vlaneseq
        %v3718 = vshrl.u32 %v3717, 7
        %v3719 = vsub.s32 0, %v3718
        %v3720 = vrot.slane %v3685, %v3719
        %v3722 = vadd.f32 %v3714, %v3720
        %v3723 = vadd.f32 %v3715, %v3720
        %v3724 = vmul.f32 %v3722, 0.5
        %v3725 = vmul.f32 %v3723, 0.5
        %v3726 = vmul.f32 %v3722, 0.70710677
        %v3727 = vmul.f32 %v3723, 0.70710677
        %v3728 = verf.f32.pop %v3726
        %v3729 = verf.f32.pop %v3727
        %v3730 = vadd.f32 %v3728, 1.0
        %v3731 = vadd.f32 %v3729, 1.0
        %v3732 = vmul.f32 %v3724, %v3730
        %v3733 = vmul.f32 %v3725, %v3731
        %3734 = vst [vmem:[%s1255] sm:$0xff] %v3732
        %3735 = vst [vmem:[%s1255 + $0x8] sm:$0xff] %v3733
      $region152: #{brain_translator_forward.1} parent=143 // pred_fallthru
        _
      %s3736 = smul.u32 2, %s78
      %p3737 = scmp.lt.s32.totalorder %s3736, 1
      %s3738 = scalar_select %p3737, %s3736, 1
      %s3739 = smul.addr %s3738, 8
      %s3740 = scalar_lea.vmem %s63, %s3739
      // Predicated region
      $region153: #{brain_translator_forward.1} parent=143 // pred_check
        %p3741 = pneg %p840
      $region154: #{brain_translator_forward.1} parent=143 // pred_check_branch
        %3743 = sbr.rel (%p3741) target = $region156
      $region155: #{brain_translator_forward.1} parent=143 // pred_region
        %s3744 = smul.u32 2, %s78
      $region156: #{brain_translator_forward.1} parent=143 // pred_fallthru
        _
      // Predicated region
      $region157: #{brain_translator_forward.1} parent=143 // pred_check
        %p3745 = pneg %p840
      $region158: #{brain_translator_forward.1} parent=143 // pred_check_branch
        %3747 = sbr.rel (%p3745) target = $region160
      $region159: #{brain_translator_forward.1} parent=143 // pred_region
        %s3748 = smul.u32 2, %s78
        %p3749 = scmp.lt.s32.totalorder %s3748, 1
        %s3750 = scalar_select %p3749, %s3748, 1
        %s3751 = smul.addr %s3750, 8
        %s3752 = scalar_lea.vmem %s63, %s3751
      $region160: #{brain_translator_forward.1} parent=143 // pred_fallthru
        _
    $region144: #{brain_translator_forward.1} parent=5 // pred_fallthru
      _
    %p3753 = scmp.le.s32.totalorder 2, %s69
    // Predicated region
    $region161: #{brain_translator_forward.1} parent=5 // pred_check
      %p3754 = pneg %p3753
    $region162: #{brain_translator_forward.1} parent=5 // pred_check_branch
      %3756 = sbr.rel (%p3754) target = $region164
    $region163: #{brain_translator_forward.1} parent=5 // pred_region
      %s3757 = ssub.s32 %s69, 2
    $region164: #{brain_translator_forward.1} parent=5 // pred_fallthru
      _
  $region6: #{brain_translator_forward.1} parent=0 // loop_footer
    %s73 = sadd.s32 1, %s69
  $region7: #{brain_translator_forward.1} parent=0 // loop_footer_branch
    %68 = sbr.rel target = $region3
  $region8: #{brain_translator_forward.1} parent=0 // loop_exit
    _

</llo_original>
